<compile_context>
chip_gen: v7x
topology: tpu7x:2x2x1
jax: 0.10.0
libtpu: 0.0.40
codegen_flags: <defaults>
</compile_context>

<pallas_src>
import functools

import jax
import jax.numpy as jnp
from jax.experimental import pallas as pl
from jax.experimental.pallas import tpu as pltpu


def _distnet_kernel(x_ref, w1_ref, b1_ref, w2_ref, b2_ref, w3_ref, b3_ref, o_ref):
    x = x_ref[...]                                   # (TB, N, D) f32
    TB, N, _ = x.shape
    H = w2_ref.shape[0]

    w1 = w1_ref[...].reshape(1, 1, H)                # (1, 1, H)
    b1 = b1_ref[...].reshape(1, 1, H)                # (1, 1, H)

    # Fused cdist + phi1 + inner set-sum:
    #   s1[b, i, :] = sum_j relu(||x[b,i] - x[b,j]|| * w1 + b1)
    # Static unrolled loop over the inner point index j (N = 16). Every
    # intermediate is a small (TB, N, *) slab with H in the lane dim; the pairwise
    # difference uses a natural sublane broadcast of x[:, j], the D=4 reduction is
    # a lane reduce, and d_j broadcasts once across the H lanes.  No MXU round
    # trip for the K=4 "Gram" contraction, no (N, N, H) rank-3/4 intermediates.
    s1 = jnp.zeros((TB, N, H), jnp.float32)
    for j in range(N):
        pj = x[:, j:j + 1, :]                                         # (TB, 1, D)
        diff = x - pj                                                 # (TB, N, D)
        d_j = jnp.sqrt(jnp.sum(diff * diff, axis=-1, keepdims=True))  # (TB, N, 1)  (EUP)
        s1 = s1 + jnp.maximum(d_j * w1 + b1, 0.0)                     # (TB, N, H)

    # phi2 (H -> H) over all TB*N points in one MXU matmul, + ReLU.
    s1_2d = s1.reshape(TB * N, H)
    h2 = jnp.maximum(
        jnp.dot(s1_2d, w2_ref[...], preferred_element_type=jnp.float32) + b2_ref[...],
        0.0,
    )                                                                  # (TB*N, H)

    # Outer set-sum over points i.
    s2 = jnp.sum(h2.reshape(TB, N, H), axis=1)                         # (TB, H)

    # rho (H -> 128 zero-padded labels): lane-dense (TB, 128) result,
    # one unmasked full-width store per grid step.
    out = jnp.dot(s2, w3_ref[...], preferred_element_type=jnp.float32) + b3_ref[...]
    o_ref[0] = out                                                     # (TB, 128)


@functools.partial(jax.jit, static_argnames=("batch_tile",))
def pc_feature_net(X, params, *, batch_tile=None):
    """PCFeatureNet.forward with only the matds (DistNet) branch active -> (B, 16)."""
    w1, b1, w2, b2, w3, b3 = params
    B, N, D = X.shape
    H = w2.shape[0]
    F = w3.shape[1]
    FP = 128  # pad label dim to a full lane width for unmasked stores

    # Batch tile: big enough to amortize per-step overhead, capped to keep the
    # live per-step intermediates comfortably small, and chosen so there are at
    # least 2 ("parallel") grid steps whenever B >= 2 (v7x has 2 TensorCores).
    if batch_tile is None:
        batch_tile = max(1, min(64, pl.cdiv(B, 2)))
    tb = int(batch_tile)
    nsteps = pl.cdiv(B, tb)
    b_pad = nsteps * tb
    if b_pad != B:
        X = jnp.concatenate([X, jnp.zeros((b_pad - B, N, D), X.dtype)], axis=0)
    X = X.astype(jnp.float32)

    # Zero-pad rho weights to 128 output lanes (sliced back to F in the wrapper).
    w3p = jnp.zeros((H, FP), jnp.float32).at[:, :F].set(w3)
    b3p = jnp.zeros((1, FP), jnp.float32).at[:, :F].set(b3)

    out = pl.pallas_call(
        _distnet_kernel,
        out_shape=jax.ShapeDtypeStruct((nsteps, tb, FP), jnp.float32),
        grid=(nsteps,),
        in_specs=[
            pl.BlockSpec((tb, N, D), lambda s: (s, 0, 0)),   # X batch tile
            pl.BlockSpec((1, H), lambda s: (0, 0)),          # w1 (VMEM-resident)
            pl.BlockSpec((1, H), lambda s: (0, 0)),          # b1
            pl.BlockSpec((H, H), lambda s: (0, 0)),          # w2
            pl.BlockSpec((1, H), lambda s: (0, 0)),          # b2
            pl.BlockSpec((H, FP), lambda s: (0, 0)),         # w3 (padded)
            pl.BlockSpec((1, FP), lambda s: (0, 0)),         # b3 (padded)
        ],
        out_specs=pl.BlockSpec((1, tb, FP), lambda s: (s, 0, 0)),
        compiler_params=pltpu.CompilerParams(
            dimension_semantics=("parallel",),
        ),
    )(X, w1, b1, w2, b2, w3p, b3p)

    # torch.cat(rep_vec_list, dim=1) with a single active branch -> (B, 16).
    return out.reshape(b_pad, FP)[:B, :F]


def ref_forward(X, params):
    """Pure-JAX reference (same math as the kernel)."""
    w1, b1, w2, b2, w3, b3 = params
    diff = X[:, :, None, :] - X[:, None, :, :]                        # (B, N, N, D)
    d = jnp.sqrt(jnp.sum(diff * diff, axis=-1))                       # (B, N, N)  == cdist
    h1 = jnp.maximum(d[..., None] * w1.reshape(1, 1, 1, -1) + b1.reshape(1, 1, 1, -1), 0.0)
    s1 = jnp.sum(h1, axis=2)                                          # (B, N, H)
    h2 = jnp.maximum(jnp.einsum("bnh,hk->bnk", s1, w2) + b2.reshape(1, 1, -1), 0.0)
    s2 = jnp.sum(h2, axis=1)                                          # (B, H)
    return s2 @ w3 + b3.reshape(1, -1)                                # (B, 16)


def init_params(key, hidden=32, num_labels=16):
    k1, k2, k3, k4, k5, k6 = jax.random.split(key, 6)
    w1 = 0.1 * jax.random.normal(k1, (1, hidden), jnp.float32)
    b1 = 0.1 * jax.random.normal(k2, (1, hidden), jnp.float32)
    w2 = 0.1 * jax.random.normal(k3, (hidden, hidden), jnp.float32)
    b2 = 0.1 * jax.random.normal(k4, (1, hidden), jnp.float32)
    w3 = 0.1 * jax.random.normal(k5, (hidden, num_labels), jnp.float32)
    b3 = 0.1 * jax.random.normal(k6, (1, num_labels), jnp.float32)
    return (w1, b1, w2, b2, w3, b3)


if __name__ == "__main__":
    key = jax.random.PRNGKey(0)
    kx, kp = jax.random.split(key)

    B, N, D = 8, 16, 4          # batch, num_points, input_dim
    X = jax.random.normal(kx, (B, N, D), jnp.float32)
    params = init_params(kp, hidden=32, num_labels=16)

    out = jax.block_until_ready(pc_feature_net(X, params))   # tb=4 -> 2 parallel steps

    ref = ref_forward(X, params)
    assert out.shape == (B, 16), out.shape
    assert jnp.allclose(out, ref, rtol=1e-3, atol=1e-3), (out, ref)

    print("KERNEL_OK")
</pallas_src>

<mosaic_0001>
module attributes {stable_mosaic.version = 11 : i64} {
  func.func @_distnet_kernel(%arg0: i32, %arg1: memref<4x16x4xf32, #tpu.memory_space<vmem>>, %arg2: memref<1x32xf32, #tpu.memory_space<vmem>>, %arg3: memref<1x32xf32, #tpu.memory_space<vmem>>, %arg4: memref<32x32xf32, #tpu.memory_space<vmem>>, %arg5: memref<1x32xf32, #tpu.memory_space<vmem>>, %arg6: memref<32x128xf32, #tpu.memory_space<vmem>>, %arg7: memref<1x128xf32, #tpu.memory_space<vmem>>, %arg8: memref<1x4x128xf32, #tpu.memory_space<vmem>>) attributes {dimension_semantics = [#tpu.dimension_semantics<parallel>], iteration_bounds = array<i64: 2>, scalar_prefetch = 0 : i64, scratch_operands = 0 : i64, tpu.core_type = #tpu.core_type<tc>, window_params = [{transform_indices = @transform_0, window_bounds = array<i64: 4, 16, 4>}, {pipeline_mode = #tpu.pipeline_mode<synchronous>, transform_indices = @transform_1, window_bounds = array<i64: 1, 32>}, {pipeline_mode = #tpu.pipeline_mode<synchronous>, transform_indices = @transform_2, window_bounds = array<i64: 1, 32>}, {pipeline_mode = #tpu.pipeline_mode<synchronous>, transform_indices = @transform_3, window_bounds = array<i64: 32, 32>}, {pipeline_mode = #tpu.pipeline_mode<synchronous>, transform_indices = @transform_4, window_bounds = array<i64: 1, 32>}, {pipeline_mode = #tpu.pipeline_mode<synchronous>, transform_indices = @transform_5, window_bounds = array<i64: 32, 128>}, {pipeline_mode = #tpu.pipeline_mode<synchronous>, transform_indices = @transform_6, window_bounds = array<i64: 1, 128>}, {transform_indices = @transform_7, window_bounds = array<i64: 1, 4, 128>}]} {
    %c0 = arith.constant 0 : index
    %c0_0 = arith.constant 0 : index
    %c0_1 = arith.constant 0 : index
    %0 = vector.load %arg1[%c0, %c0_0, %c0_1] : memref<4x16x4xf32, #tpu.memory_space<vmem>>, vector<4x16x4xf32>
    %c0_2 = arith.constant 0 : index
    %c0_3 = arith.constant 0 : index
    %1 = vector.load %arg2[%c0_2, %c0_3] : memref<1x32xf32, #tpu.memory_space<vmem>>, vector<1x32xf32>
    %2 = vector.shape_cast %1 : vector<1x32xf32> to vector<1x1x32xf32>
    %c0_4 = arith.constant 0 : index
    %c0_5 = arith.constant 0 : index
    %3 = vector.load %arg3[%c0_4, %c0_5] : memref<1x32xf32, #tpu.memory_space<vmem>>, vector<1x32xf32>
    %4 = vector.shape_cast %3 : vector<1x32xf32> to vector<1x1x32xf32>
    %cst = arith.constant 0.000000e+00 : f32
    %5 = vector.broadcast %cst : f32 to vector<4x16x32xf32>
    %6 = vector.extract_strided_slice %0 {offsets = [0, 0, 0], sizes = [4, 1, 4], strides = [1, 1, 1]} : vector<4x16x4xf32> to vector<4x1x4xf32>
    %7 = vector.broadcast %6 : vector<4x1x4xf32> to vector<4x16x4xf32>
    %8 = arith.subf %0, %7 : vector<4x16x4xf32>
    %9 = arith.mulf %8, %8 : vector<4x16x4xf32>
    %cst_6 = arith.constant dense<0.000000e+00> : vector<4x16xf32>
    %10 = vector.multi_reduction <add>, %9, %cst_6 [2] : vector<4x16x4xf32> to vector<4x16xf32>
    %11 = vector.shape_cast %10 : vector<4x16xf32> to vector<4x16x1xf32>
    %12 = math.sqrt %11 : vector<4x16x1xf32>
    %13 = vector.broadcast %12 : vector<4x16x1xf32> to vector<4x16x32xf32>
    %14 = vector.broadcast %2 : vector<1x1x32xf32> to vector<4x16x32xf32>
    %15 = arith.mulf %13, %14 : vector<4x16x32xf32>
    %16 = vector.broadcast %4 : vector<1x1x32xf32> to vector<4x16x32xf32>
    %17 = arith.addf %15, %16 : vector<4x16x32xf32>
    %cst_7 = arith.constant 0.000000e+00 : f32
    %18 = vector.broadcast %cst_7 : f32 to vector<4x16x32xf32>
    %19 = arith.maximumf %17, %18 : vector<4x16x32xf32>
    %20 = arith.addf %5, %19 : vector<4x16x32xf32>
    %21 = vector.extract_strided_slice %0 {offsets = [0, 1, 0], sizes = [4, 1, 4], strides = [1, 1, 1]} : vector<4x16x4xf32> to vector<4x1x4xf32>
    %22 = vector.broadcast %21 : vector<4x1x4xf32> to vector<4x16x4xf32>
    %23 = arith.subf %0, %22 : vector<4x16x4xf32>
    %24 = arith.mulf %23, %23 : vector<4x16x4xf32>
    %cst_8 = arith.constant dense<0.000000e+00> : vector<4x16xf32>
    %25 = vector.multi_reduction <add>, %24, %cst_8 [2] : vector<4x16x4xf32> to vector<4x16xf32>
    %26 = vector.shape_cast %25 : vector<4x16xf32> to vector<4x16x1xf32>
    %27 = math.sqrt %26 : vector<4x16x1xf32>
    %28 = vector.broadcast %27 : vector<4x16x1xf32> to vector<4x16x32xf32>
    %29 = vector.broadcast %2 : vector<1x1x32xf32> to vector<4x16x32xf32>
    %30 = arith.mulf %28, %29 : vector<4x16x32xf32>
    %31 = vector.broadcast %4 : vector<1x1x32xf32> to vector<4x16x32xf32>
    %32 = arith.addf %30, %31 : vector<4x16x32xf32>
    %cst_9 = arith.constant 0.000000e+00 : f32
    %33 = vector.broadcast %cst_9 : f32 to vector<4x16x32xf32>
    %34 = arith.maximumf %32, %33 : vector<4x16x32xf32>
    %35 = arith.addf %20, %34 : vector<4x16x32xf32>
    %36 = vector.extract_strided_slice %0 {offsets = [0, 2, 0], sizes = [4, 1, 4], strides = [1, 1, 1]} : vector<4x16x4xf32> to vector<4x1x4xf32>
    %37 = vector.broadcast %36 : vector<4x1x4xf32> to vector<4x16x4xf32>
    %38 = arith.subf %0, %37 : vector<4x16x4xf32>
    %39 = arith.mulf %38, %38 : vector<4x16x4xf32>
    %cst_10 = arith.constant dense<0.000000e+00> : vector<4x16xf32>
    %40 = vector.multi_reduction <add>, %39, %cst_10 [2] : vector<4x16x4xf32> to vector<4x16xf32>
    %41 = vector.shape_cast %40 : vector<4x16xf32> to vector<4x16x1xf32>
    %42 = math.sqrt %41 : vector<4x16x1xf32>
    %43 = vector.broadcast %42 : vector<4x16x1xf32> to vector<4x16x32xf32>
    %44 = vector.broadcast %2 : vector<1x1x32xf32> to vector<4x16x32xf32>
    %45 = arith.mulf %43, %44 : vector<4x16x32xf32>
    %46 = vector.broadcast %4 : vector<1x1x32xf32> to vector<4x16x32xf32>
    %47 = arith.addf %45, %46 : vector<4x16x32xf32>
    %cst_11 = arith.constant 0.000000e+00 : f32
    %48 = vector.broadcast %cst_11 : f32 to vector<4x16x32xf32>
    %49 = arith.maximumf %47, %48 : vector<4x16x32xf32>
    %50 = arith.addf %35, %49 : vector<4x16x32xf32>
    %51 = vector.extract_strided_slice %0 {offsets = [0, 3, 0], sizes = [4, 1, 4], strides = [1, 1, 1]} : vector<4x16x4xf32> to vector<4x1x4xf32>
    %52 = vector.broadcast %51 : vector<4x1x4xf32> to vector<4x16x4xf32>
    %53 = arith.subf %0, %52 : vector<4x16x4xf32>
    %54 = arith.mulf %53, %53 : vector<4x16x4xf32>
    %cst_12 = arith.constant dense<0.000000e+00> : vector<4x16xf32>
    %55 = vector.multi_reduction <add>, %54, %cst_12 [2] : vector<4x16x4xf32> to vector<4x16xf32>
    %56 = vector.shape_cast %55 : vector<4x16xf32> to vector<4x16x1xf32>
    %57 = math.sqrt %56 : vector<4x16x1xf32>
    %58 = vector.broadcast %57 : vector<4x16x1xf32> to vector<4x16x32xf32>
    %59 = vector.broadcast %2 : vector<1x1x32xf32> to vector<4x16x32xf32>
    %60 = arith.mulf %58, %59 : vector<4x16x32xf32>
    %61 = vector.broadcast %4 : vector<1x1x32xf32> to vector<4x16x32xf32>
    %62 = arith.addf %60, %61 : vector<4x16x32xf32>
    %cst_13 = arith.constant 0.000000e+00 : f32
    %63 = vector.broadcast %cst_13 : f32 to vector<4x16x32xf32>
    %64 = arith.maximumf %62, %63 : vector<4x16x32xf32>
    %65 = arith.addf %50, %64 : vector<4x16x32xf32>
    %66 = vector.extract_strided_slice %0 {offsets = [0, 4, 0], sizes = [4, 1, 4], strides = [1, 1, 1]} : vector<4x16x4xf32> to vector<4x1x4xf32>
    %67 = vector.broadcast %66 : vector<4x1x4xf32> to vector<4x16x4xf32>
    %68 = arith.subf %0, %67 : vector<4x16x4xf32>
    %69 = arith.mulf %68, %68 : vector<4x16x4xf32>
    %cst_14 = arith.constant dense<0.000000e+00> : vector<4x16xf32>
    %70 = vector.multi_reduction <add>, %69, %cst_14 [2] : vector<4x16x4xf32> to vector<4x16xf32>
    %71 = vector.shape_cast %70 : vector<4x16xf32> to vector<4x16x1xf32>
    %72 = math.sqrt %71 : vector<4x16x1xf32>
    %73 = vector.broadcast %72 : vector<4x16x1xf32> to vector<4x16x32xf32>
    %74 = vector.broadcast %2 : vector<1x1x32xf32> to vector<4x16x32xf32>
    %75 = arith.mulf %73, %74 : vector<4x16x32xf32>
    %76 = vector.broadcast %4 : vector<1x1x32xf32> to vector<4x16x32xf32>
    %77 = arith.addf %75, %76 : vector<4x16x32xf32>
    %cst_15 = arith.constant 0.000000e+00 : f32
    %78 = vector.broadcast %cst_15 : f32 to vector<4x16x32xf32>
    %79 = arith.maximumf %77, %78 : vector<4x16x32xf32>
    %80 = arith.addf %65, %79 : vector<4x16x32xf32>
    %81 = vector.extract_strided_slice %0 {offsets = [0, 5, 0], sizes = [4, 1, 4], strides = [1, 1, 1]} : vector<4x16x4xf32> to vector<4x1x4xf32>
    %82 = vector.broadcast %81 : vector<4x1x4xf32> to vector<4x16x4xf32>
    %83 = arith.subf %0, %82 : vector<4x16x4xf32>
    %84 = arith.mulf %83, %83 : vector<4x16x4xf32>
    %cst_16 = arith.constant dense<0.000000e+00> : vector<4x16xf32>
    %85 = vector.multi_reduction <add>, %84, %cst_16 [2] : vector<4x16x4xf32> to vector<4x16xf32>
    %86 = vector.shape_cast %85 : vector<4x16xf32> to vector<4x16x1xf32>
    %87 = math.sqrt %86 : vector<4x16x1xf32>
    %88 = vector.broadcast %87 : vector<4x16x1xf32> to vector<4x16x32xf32>
    %89 = vector.broadcast %2 : vector<1x1x32xf32> to vector<4x16x32xf32>
    %90 = arith.mulf %88, %89 : vector<4x16x32xf32>
    %91 = vector.broadcast %4 : vector<1x1x32xf32> to vector<4x16x32xf32>
    %92 = arith.addf %90, %91 : vector<4x16x32xf32>
    %cst_17 = arith.constant 0.000000e+00 : f32
    %93 = vector.broadcast %cst_17 : f32 to vector<4x16x32xf32>
    %94 = arith.maximumf %92, %93 : vector<4x16x32xf32>
    %95 = arith.addf %80, %94 : vector<4x16x32xf32>
    %96 = vector.extract_strided_slice %0 {offsets = [0, 6, 0], sizes = [4, 1, 4], strides = [1, 1, 1]} : vector<4x16x4xf32> to vector<4x1x4xf32>
    %97 = vector.broadcast %96 : vector<4x1x4xf32> to vector<4x16x4xf32>
    %98 = arith.subf %0, %97 : vector<4x16x4xf32>
    %99 = arith.mulf %98, %98 : vector<4x16x4xf32>
    %cst_18 = arith.constant dense<0.000000e+00> : vector<4x16xf32>
    %100 = vector.multi_reduction <add>, %99, %cst_18 [2] : vector<4x16x4xf32> to vector<4x16xf32>
    %101 = vector.shape_cast %100 : vector<4x16xf32> to vector<4x16x1xf32>
    %102 = math.sqrt %101 : vector<4x16x1xf32>
    %103 = vector.broadcast %102 : vector<4x16x1xf32> to vector<4x16x32xf32>
    %104 = vector.broadcast %2 : vector<1x1x32xf32> to vector<4x16x32xf32>
    %105 = arith.mulf %103, %104 : vector<4x16x32xf32>
    %106 = vector.broadcast %4 : vector<1x1x32xf32> to vector<4x16x32xf32>
    %107 = arith.addf %105, %106 : vector<4x16x32xf32>
    %cst_19 = arith.constant 0.000000e+00 : f32
    %108 = vector.broadcast %cst_19 : f32 to vector<4x16x32xf32>
    %109 = arith.maximumf %107, %108 : vector<4x16x32xf32>
    %110 = arith.addf %95, %109 : vector<4x16x32xf32>
    %111 = vector.extract_strided_slice %0 {offsets = [0, 7, 0], sizes = [4, 1, 4], strides = [1, 1, 1]} : vector<4x16x4xf32> to vector<4x1x4xf32>
    %112 = vector.broadcast %111 : vector<4x1x4xf32> to vector<4x16x4xf32>
    %113 = arith.subf %0, %112 : vector<4x16x4xf32>
    %114 = arith.mulf %113, %113 : vector<4x16x4xf32>
    %cst_20 = arith.constant dense<0.000000e+00> : vector<4x16xf32>
    %115 = vector.multi_reduction <add>, %114, %cst_20 [2] : vector<4x16x4xf32> to vector<4x16xf32>
    %116 = vector.shape_cast %115 : vector<4x16xf32> to vector<4x16x1xf32>
    %117 = math.sqrt %116 : vector<4x16x1xf32>
    %118 = vector.broadcast %117 : vector<4x16x1xf32> to vector<4x16x32xf32>
    %119 = vector.broadcast %2 : vector<1x1x32xf32> to vector<4x16x32xf32>
    %120 = arith.mulf %118, %119 : vector<4x16x32xf32>
    %121 = vector.broadcast %4 : vector<1x1x32xf32> to vector<4x16x32xf32>
    %122 = arith.addf %120, %121 : vector<4x16x32xf32>
    %cst_21 = arith.constant 0.000000e+00 : f32
    %123 = vector.broadcast %cst_21 : f32 to vector<4x16x32xf32>
    %124 = arith.maximumf %122, %123 : vector<4x16x32xf32>
    %125 = arith.addf %110, %124 : vector<4x16x32xf32>
    %126 = vector.extract_strided_slice %0 {offsets = [0, 8, 0], sizes = [4, 1, 4], strides = [1, 1, 1]} : vector<4x16x4xf32> to vector<4x1x4xf32>
    %127 = vector.broadcast %126 : vector<4x1x4xf32> to vector<4x16x4xf32>
    %128 = arith.subf %0, %127 : vector<4x16x4xf32>
    %129 = arith.mulf %128, %128 : vector<4x16x4xf32>
    %cst_22 = arith.constant dense<0.000000e+00> : vector<4x16xf32>
    %130 = vector.multi_reduction <add>, %129, %cst_22 [2] : vector<4x16x4xf32> to vector<4x16xf32>
    %131 = vector.shape_cast %130 : vector<4x16xf32> to vector<4x16x1xf32>
    %132 = math.sqrt %131 : vector<4x16x1xf32>
    %133 = vector.broadcast %132 : vector<4x16x1xf32> to vector<4x16x32xf32>
    %134 = vector.broadcast %2 : vector<1x1x32xf32> to vector<4x16x32xf32>
    %135 = arith.mulf %133, %134 : vector<4x16x32xf32>
    %136 = vector.broadcast %4 : vector<1x1x32xf32> to vector<4x16x32xf32>
    %137 = arith.addf %135, %136 : vector<4x16x32xf32>
    %cst_23 = arith.constant 0.000000e+00 : f32
    %138 = vector.broadcast %cst_23 : f32 to vector<4x16x32xf32>
    %139 = arith.maximumf %137, %138 : vector<4x16x32xf32>
    %140 = arith.addf %125, %139 : vector<4x16x32xf32>
    %141 = vector.extract_strided_slice %0 {offsets = [0, 9, 0], sizes = [4, 1, 4], strides = [1, 1, 1]} : vector<4x16x4xf32> to vector<4x1x4xf32>
    %142 = vector.broadcast %141 : vector<4x1x4xf32> to vector<4x16x4xf32>
    %143 = arith.subf %0, %142 : vector<4x16x4xf32>
    %144 = arith.mulf %143, %143 : vector<4x16x4xf32>
    %cst_24 = arith.constant dense<0.000000e+00> : vector<4x16xf32>
    %145 = vector.multi_reduction <add>, %144, %cst_24 [2] : vector<4x16x4xf32> to vector<4x16xf32>
    %146 = vector.shape_cast %145 : vector<4x16xf32> to vector<4x16x1xf32>
    %147 = math.sqrt %146 : vector<4x16x1xf32>
    %148 = vector.broadcast %147 : vector<4x16x1xf32> to vector<4x16x32xf32>
    %149 = vector.broadcast %2 : vector<1x1x32xf32> to vector<4x16x32xf32>
    %150 = arith.mulf %148, %149 : vector<4x16x32xf32>
    %151 = vector.broadcast %4 : vector<1x1x32xf32> to vector<4x16x32xf32>
    %152 = arith.addf %150, %151 : vector<4x16x32xf32>
    %cst_25 = arith.constant 0.000000e+00 : f32
    %153 = vector.broadcast %cst_25 : f32 to vector<4x16x32xf32>
    %154 = arith.maximumf %152, %153 : vector<4x16x32xf32>
    %155 = arith.addf %140, %154 : vector<4x16x32xf32>
    %156 = vector.extract_strided_slice %0 {offsets = [0, 10, 0], sizes = [4, 1, 4], strides = [1, 1, 1]} : vector<4x16x4xf32> to vector<4x1x4xf32>
    %157 = vector.broadcast %156 : vector<4x1x4xf32> to vector<4x16x4xf32>
    %158 = arith.subf %0, %157 : vector<4x16x4xf32>
    %159 = arith.mulf %158, %158 : vector<4x16x4xf32>
    %cst_26 = arith.constant dense<0.000000e+00> : vector<4x16xf32>
    %160 = vector.multi_reduction <add>, %159, %cst_26 [2] : vector<4x16x4xf32> to vector<4x16xf32>
    %161 = vector.shape_cast %160 : vector<4x16xf32> to vector<4x16x1xf32>
    %162 = math.sqrt %161 : vector<4x16x1xf32>
    %163 = vector.broadcast %162 : vector<4x16x1xf32> to vector<4x16x32xf32>
    %164 = vector.broadcast %2 : vector<1x1x32xf32> to vector<4x16x32xf32>
    %165 = arith.mulf %163, %164 : vector<4x16x32xf32>
    %166 = vector.broadcast %4 : vector<1x1x32xf32> to vector<4x16x32xf32>
    %167 = arith.addf %165, %166 : vector<4x16x32xf32>
    %cst_27 = arith.constant 0.000000e+00 : f32
    %168 = vector.broadcast %cst_27 : f32 to vector<4x16x32xf32>
    %169 = arith.maximumf %167, %168 : vector<4x16x32xf32>
    %170 = arith.addf %155, %169 : vector<4x16x32xf32>
    %171 = vector.extract_strided_slice %0 {offsets = [0, 11, 0], sizes = [4, 1, 4], strides = [1, 1, 1]} : vector<4x16x4xf32> to vector<4x1x4xf32>
    %172 = vector.broadcast %171 : vector<4x1x4xf32> to vector<4x16x4xf32>
    %173 = arith.subf %0, %172 : vector<4x16x4xf32>
    %174 = arith.mulf %173, %173 : vector<4x16x4xf32>
    %cst_28 = arith.constant dense<0.000000e+00> : vector<4x16xf32>
    %175 = vector.multi_reduction <add>, %174, %cst_28 [2] : vector<4x16x4xf32> to vector<4x16xf32>
    %176 = vector.shape_cast %175 : vector<4x16xf32> to vector<4x16x1xf32>
    %177 = math.sqrt %176 : vector<4x16x1xf32>
    %178 = vector.broadcast %177 : vector<4x16x1xf32> to vector<4x16x32xf32>
    %179 = vector.broadcast %2 : vector<1x1x32xf32> to vector<4x16x32xf32>
    %180 = arith.mulf %178, %179 : vector<4x16x32xf32>
    %181 = vector.broadcast %4 : vector<1x1x32xf32> to vector<4x16x32xf32>
    %182 = arith.addf %180, %181 : vector<4x16x32xf32>
    %cst_29 = arith.constant 0.000000e+00 : f32
    %183 = vector.broadcast %cst_29 : f32 to vector<4x16x32xf32>
    %184 = arith.maximumf %182, %183 : vector<4x16x32xf32>
    %185 = arith.addf %170, %184 : vector<4x16x32xf32>
    %186 = vector.extract_strided_slice %0 {offsets = [0, 12, 0], sizes = [4, 1, 4], strides = [1, 1, 1]} : vector<4x16x4xf32> to vector<4x1x4xf32>
    %187 = vector.broadcast %186 : vector<4x1x4xf32> to vector<4x16x4xf32>
    %188 = arith.subf %0, %187 : vector<4x16x4xf32>
    %189 = arith.mulf %188, %188 : vector<4x16x4xf32>
    %cst_30 = arith.constant dense<0.000000e+00> : vector<4x16xf32>
    %190 = vector.multi_reduction <add>, %189, %cst_30 [2] : vector<4x16x4xf32> to vector<4x16xf32>
    %191 = vector.shape_cast %190 : vector<4x16xf32> to vector<4x16x1xf32>
    %192 = math.sqrt %191 : vector<4x16x1xf32>
    %193 = vector.broadcast %192 : vector<4x16x1xf32> to vector<4x16x32xf32>
    %194 = vector.broadcast %2 : vector<1x1x32xf32> to vector<4x16x32xf32>
    %195 = arith.mulf %193, %194 : vector<4x16x32xf32>
    %196 = vector.broadcast %4 : vector<1x1x32xf32> to vector<4x16x32xf32>
    %197 = arith.addf %195, %196 : vector<4x16x32xf32>
    %cst_31 = arith.constant 0.000000e+00 : f32
    %198 = vector.broadcast %cst_31 : f32 to vector<4x16x32xf32>
    %199 = arith.maximumf %197, %198 : vector<4x16x32xf32>
    %200 = arith.addf %185, %199 : vector<4x16x32xf32>
    %201 = vector.extract_strided_slice %0 {offsets = [0, 13, 0], sizes = [4, 1, 4], strides = [1, 1, 1]} : vector<4x16x4xf32> to vector<4x1x4xf32>
    %202 = vector.broadcast %201 : vector<4x1x4xf32> to vector<4x16x4xf32>
    %203 = arith.subf %0, %202 : vector<4x16x4xf32>
    %204 = arith.mulf %203, %203 : vector<4x16x4xf32>
    %cst_32 = arith.constant dense<0.000000e+00> : vector<4x16xf32>
    %205 = vector.multi_reduction <add>, %204, %cst_32 [2] : vector<4x16x4xf32> to vector<4x16xf32>
    %206 = vector.shape_cast %205 : vector<4x16xf32> to vector<4x16x1xf32>
    %207 = math.sqrt %206 : vector<4x16x1xf32>
    %208 = vector.broadcast %207 : vector<4x16x1xf32> to vector<4x16x32xf32>
    %209 = vector.broadcast %2 : vector<1x1x32xf32> to vector<4x16x32xf32>
    %210 = arith.mulf %208, %209 : vector<4x16x32xf32>
    %211 = vector.broadcast %4 : vector<1x1x32xf32> to vector<4x16x32xf32>
    %212 = arith.addf %210, %211 : vector<4x16x32xf32>
    %cst_33 = arith.constant 0.000000e+00 : f32
    %213 = vector.broadcast %cst_33 : f32 to vector<4x16x32xf32>
    %214 = arith.maximumf %212, %213 : vector<4x16x32xf32>
    %215 = arith.addf %200, %214 : vector<4x16x32xf32>
    %216 = vector.extract_strided_slice %0 {offsets = [0, 14, 0], sizes = [4, 1, 4], strides = [1, 1, 1]} : vector<4x16x4xf32> to vector<4x1x4xf32>
    %217 = vector.broadcast %216 : vector<4x1x4xf32> to vector<4x16x4xf32>
    %218 = arith.subf %0, %217 : vector<4x16x4xf32>
    %219 = arith.mulf %218, %218 : vector<4x16x4xf32>
    %cst_34 = arith.constant dense<0.000000e+00> : vector<4x16xf32>
    %220 = vector.multi_reduction <add>, %219, %cst_34 [2] : vector<4x16x4xf32> to vector<4x16xf32>
    %221 = vector.shape_cast %220 : vector<4x16xf32> to vector<4x16x1xf32>
    %222 = math.sqrt %221 : vector<4x16x1xf32>
    %223 = vector.broadcast %222 : vector<4x16x1xf32> to vector<4x16x32xf32>
    %224 = vector.broadcast %2 : vector<1x1x32xf32> to vector<4x16x32xf32>
    %225 = arith.mulf %223, %224 : vector<4x16x32xf32>
    %226 = vector.broadcast %4 : vector<1x1x32xf32> to vector<4x16x32xf32>
    %227 = arith.addf %225, %226 : vector<4x16x32xf32>
    %cst_35 = arith.constant 0.000000e+00 : f32
    %228 = vector.broadcast %cst_35 : f32 to vector<4x16x32xf32>
    %229 = arith.maximumf %227, %228 : vector<4x16x32xf32>
    %230 = arith.addf %215, %229 : vector<4x16x32xf32>
    %231 = vector.extract_strided_slice %0 {offsets = [0, 15, 0], sizes = [4, 1, 4], strides = [1, 1, 1]} : vector<4x16x4xf32> to vector<4x1x4xf32>
    %232 = vector.broadcast %231 : vector<4x1x4xf32> to vector<4x16x4xf32>
    %233 = arith.subf %0, %232 : vector<4x16x4xf32>
    %234 = arith.mulf %233, %233 : vector<4x16x4xf32>
    %cst_36 = arith.constant dense<0.000000e+00> : vector<4x16xf32>
    %235 = vector.multi_reduction <add>, %234, %cst_36 [2] : vector<4x16x4xf32> to vector<4x16xf32>
    %236 = vector.shape_cast %235 : vector<4x16xf32> to vector<4x16x1xf32>
    %237 = math.sqrt %236 : vector<4x16x1xf32>
    %238 = vector.broadcast %237 : vector<4x16x1xf32> to vector<4x16x32xf32>
    %239 = vector.broadcast %2 : vector<1x1x32xf32> to vector<4x16x32xf32>
    %240 = arith.mulf %238, %239 : vector<4x16x32xf32>
    %241 = vector.broadcast %4 : vector<1x1x32xf32> to vector<4x16x32xf32>
    %242 = arith.addf %240, %241 : vector<4x16x32xf32>
    %cst_37 = arith.constant 0.000000e+00 : f32
    %243 = vector.broadcast %cst_37 : f32 to vector<4x16x32xf32>
    %244 = arith.maximumf %242, %243 : vector<4x16x32xf32>
    %245 = arith.addf %230, %244 : vector<4x16x32xf32>
    %246 = vector.shape_cast %245 : vector<4x16x32xf32> to vector<64x32xf32>
    %c0_38 = arith.constant 0 : index
    %c0_39 = arith.constant 0 : index
    %247 = vector.load %arg4[%c0_38, %c0_39] : memref<32x32xf32, #tpu.memory_space<vmem>>, vector<32x32xf32>
    %cst_40 = arith.constant dense<0.000000e+00> : vector<64x32xf32>
    %248 = tpu.matmul %246, %247, %cst_40 {dimension_numbers = #tpu.dot_dimension_numbers<[1], [0], [0], [1], [0, 0, 1, 1], [], []>} : vector<64x32xf32>, vector<32x32xf32>, vector<64x32xf32> -> vector<64x32xf32>
    %c0_41 = arith.constant 0 : index
    %c0_42 = arith.constant 0 : index
    %249 = vector.load %arg5[%c0_41, %c0_42] : memref<1x32xf32, #tpu.memory_space<vmem>>, vector<1x32xf32>
    %250 = vector.broadcast %249 : vector<1x32xf32> to vector<64x32xf32>
    %251 = arith.addf %248, %250 : vector<64x32xf32>
    %cst_43 = arith.constant 0.000000e+00 : f32
    %252 = vector.broadcast %cst_43 : f32 to vector<64x32xf32>
    %253 = arith.maximumf %251, %252 : vector<64x32xf32>
    %254 = vector.shape_cast %253 : vector<64x32xf32> to vector<4x16x32xf32>
    %cst_44 = arith.constant dense<0.000000e+00> : vector<4x32xf32>
    %255 = vector.multi_reduction <add>, %254, %cst_44 [1] : vector<4x16x32xf32> to vector<4x32xf32>
    %c0_45 = arith.constant 0 : index
    %c0_46 = arith.constant 0 : index
    %256 = vector.load %arg6[%c0_45, %c0_46] : memref<32x128xf32, #tpu.memory_space<vmem>>, vector<32x128xf32>
    %cst_47 = arith.constant dense<0.000000e+00> : vector<4x128xf32>
    %257 = tpu.matmul %255, %256, %cst_47 {dimension_numbers = #tpu.dot_dimension_numbers<[1], [0], [0], [1], [0, 0, 1, 1], [], []>} : vector<4x32xf32>, vector<32x128xf32>, vector<4x128xf32> -> vector<4x128xf32>
    %c0_48 = arith.constant 0 : index
    %c0_49 = arith.constant 0 : index
    %258 = vector.load %arg7[%c0_48, %c0_49] : memref<1x128xf32, #tpu.memory_space<vmem>>, vector<1x128xf32>
    %259 = vector.broadcast %258 : vector<1x128xf32> to vector<4x128xf32>
    %260 = arith.addf %257, %259 : vector<4x128xf32>
    %c0_50 = arith.constant 0 : index
    %c0_51 = arith.constant 0 : index
    %c0_52 = arith.constant 0 : index
    %261 = vector.load %arg8[%c0_50, %c0_51, %c0_52] : memref<1x4x128xf32, #tpu.memory_space<vmem>>, vector<1x4x128xf32>
    %262 = vector.shape_cast %261 : vector<1x4x128xf32> to vector<4x128xf32>
    %263 = vector.shape_cast %260 : vector<4x128xf32> to vector<1x4x128xf32>
    tpu.vector_store %arg8[%c0_50, %c0_51, %c0_52], %263 {strides = array<i32>} : memref<1x4x128xf32, #tpu.memory_space<vmem>>, vector<1x4x128xf32>,
    return
  }
  func.func @transform_0(%arg0: i32) -> (i32, i32, i32) {
    %c0_i32 = arith.constant 0 : i32
    %c0_i32_0 = arith.constant 0 : i32
    %c0_i32_1 = arith.constant 0 : i32
    return %arg0, %c0_i32, %c0_i32_0 : i32, i32, i32
  }
  func.func @transform_1(%arg0: i32) -> (i32, i32) {
    %c0_i32 = arith.constant 0 : i32
    %c0_i32_0 = arith.constant 0 : i32
    %c0_i32_1 = arith.constant 0 : i32
    return %c0_i32, %c0_i32_0 : i32, i32
  }
  func.func @transform_2(%arg0: i32) -> (i32, i32) {
    %c0_i32 = arith.constant 0 : i32
    %c0_i32_0 = arith.constant 0 : i32
    %c0_i32_1 = arith.constant 0 : i32
    return %c0_i32, %c0_i32_0 : i32, i32
  }
  func.func @transform_3(%arg0: i32) -> (i32, i32) {
    %c0_i32 = arith.constant 0 : i32
    %c0_i32_0 = arith.constant 0 : i32
    %c0_i32_1 = arith.constant 0 : i32
    return %c0_i32, %c0_i32_0 : i32, i32
  }
  func.func @transform_4(%arg0: i32) -> (i32, i32) {
    %c0_i32 = arith.constant 0 : i32
    %c0_i32_0 = arith.constant 0 : i32
    %c0_i32_1 = arith.constant 0 : i32
    return %c0_i32, %c0_i32_0 : i32, i32
  }
  func.func @transform_5(%arg0: i32) -> (i32, i32) {
    %c0_i32 = arith.constant 0 : i32
    %c0_i32_0 = arith.constant 0 : i32
    %c0_i32_1 = arith.constant 0 : i32
    return %c0_i32, %c0_i32_0 : i32, i32
  }
  func.func @transform_6(%arg0: i32) -> (i32, i32) {
    %c0_i32 = arith.constant 0 : i32
    %c0_i32_0 = arith.constant 0 : i32
    %c0_i32_1 = arith.constant 0 : i32
    return %c0_i32, %c0_i32_0 : i32, i32
  }
  func.func @transform_7(%arg0: i32) -> (i32, i32, i32) {
    %c0_i32 = arith.constant 0 : i32
    %c0_i32_0 = arith.constant 0 : i32
    %c0_i32_1 = arith.constant 0 : i32
    return %arg0, %c0_i32, %c0_i32_0 : i32, i32, i32
  }
}

</mosaic_0001>

<llo_original>
// kernel: pc_feature_net.1
$region0: #{pc_feature_net.1}
  #allocation0 [shape = 'u32[]', space=smem, size = 0x4, offset = 0x4, fixed_abs, tag = 'smem constant byte address 0x4 - core index']
  #allocation1 [shape = 'u32[144,128]{1,0:T(1,128)}', space=vmem, size = 0x12000, scoped, tag = 'internal scratch']
  %s0 = inlined_call_operand.vmem [shape: f32[8,16,4], index: 0, kind: input, shape index: {}]
  %s1 = inlined_call_operand.vmem [shape: f32[1,32], index: 1, kind: input, shape index: {}]
  %s2 = inlined_call_operand.vmem [shape: f32[1,32], index: 2, kind: input, shape index: {}]
  %s3 = inlined_call_operand.vmem [shape: f32[32,32], index: 3, kind: input, shape index: {}]
  %s4 = inlined_call_operand.vmem [shape: f32[1,32], index: 4, kind: input, shape index: {}]
  %s5 = inlined_call_operand.vmem [shape: f32[32,128], index: 5, kind: input, shape index: {}]
  %s6 = inlined_call_operand.vmem [shape: f32[1,128], index: 6, kind: input, shape index: {}]
  %s7 = inlined_call_operand.hbm [shape: f32[2,4,128], index: 7, kind: output, shape index: {}]
  %s8 = sld [smem:[#allocation0]]
  $region61: #{pc_feature_net.1} parent=0
    _
  %s10 = ssub.s32 1, %s8
  %s11 = scalar_select 0, %s10, %s8
  $region1: #{pc_feature_net.1} parent=0
    #allocation2 [shape = 'u8[4096]{0}', space=vmem, size = 0x1000, scoped, tag = 'output window, operand 0']
    #allocation3 [shape = 's32[2]{0}', space=sflag, size = 0x8, scoped, tag = 'scoped memory for pc_feature_net.1']
    %12 = vsyncpa [#allocation3], 0
    %s13 = scalar_lea.sflag [#allocation3], 1
    %14 = vsyncpa %s13, 0
    loop: start=0, step=1, limit=4
    $region2: #{pc_feature_net.1} parent=1 // loop_pre_header
      _
    $region3: #{pc_feature_net.1} parent=1 // loop_header
      %s16 = sphi 0, %s20
      %p17 = scmp.ge.s32.totalorder %s16, 4
      %s26 = sphi 0, %s28
      %s29 = sphi 0, %s26
      %s30 = sphi 0, %s29
      %s46 = sphi 0, %s30
      %s50 = sphi 0, %s50
      %s52 = sphi 0, %s50
      %s53 = sphi 0, %s52
      %s67 = sphi 0, %s53
      %s71 = sphi 0, %s71
      %s73 = sphi 0, %s71
      %s74 = sphi 0, %s73
      %s88 = sphi 0, %s74
      %s92 = sphi 0, %s92
      %s94 = sphi 0, %s92
      %s95 = sphi 0, %s94
      %s109 = sphi 0, %s95
      %s113 = sphi 0, %s113
      %s115 = sphi 0, %s113
      %s116 = sphi 0, %s115
      %s130 = sphi 0, %s116
      %s134 = sphi 0, %s134
      %s136 = sphi 0, %s134
      %s137 = sphi 0, %s136
      %s151 = sphi 0, %s137
      %s155 = sphi 0, %s155
      %s157 = sphi 0, %s155
      %s158 = sphi 0, %s157
      %s172 = sphi 0, %s158
      %s178 = sphi 0, %s180
      %s181 = sphi 0, %s178
      %s182 = sphi 0, %s181
      %s198 = sphi 0, %s182
    $region4: #{pc_feature_net.1} parent=1 // loop_header_branch
      %19 = sbr.rel (%p17) target = $region8
    $region5: #{pc_feature_net.1} parent=1 // loop_body
      %s21 = ssub.s32 %s16, 1
      %s22 = ssub.s32 %s16, 2
      %s23 = sadd.s32 %s16, 1
      %s24 = ssub.s32 %s16, %s23
      %p25 = scmp.eq.s32.totalorder %s24, 0
      %s27 = sadd.s32 %s26, 1
      %s28 = scalar_select %p25, %s26, %s27
      %p31 = pneg %p25
      %p32 = scmp.eq.s32.totalorder %s16, 1
      %p33 = por %p31, %p32
      %p34 = scmp.ne.s32.totalorder %s26, %s29
      %p35 = scmp.eq.s32.totalorder %s16, 0
      %p36 = por %p34, %p35
      %p37 = scmp.ne.s32.totalorder %s26, %s29
      %p38 = scmp.eq.s32.totalorder %s21, 1
      %p39 = por %p37, %p38
      %p40 = scmp.ne.s32.totalorder %s29, %s30
      %p41 = scmp.eq.s32.totalorder %s21, 0
      %p42 = por %p40, %p41
      %p43 = scmp.ne.s32.totalorder %s29, %s30
      %p44 = scmp.eq.s32.totalorder %s22, 1
      %p45 = por %p43, %p44
      %p47 = scmp.ne.s32.totalorder %s30, %s46
      %p48 = scmp.eq.s32.totalorder %s22, 0
      %p49 = por %p47, %p48
      %s51 = sadd.s32 %s50, 1
      %p54 = scmp.eq.s32.totalorder %s16, 1
      %p55 = scmp.ne.s32.totalorder %s50, %s52
      %p56 = scmp.eq.s32.totalorder %s16, 0
      %p57 = por %p55, %p56
      %p58 = scmp.ne.s32.totalorder %s50, %s52
      %p59 = scmp.eq.s32.totalorder %s21, 1
      %p60 = por %p58, %p59
      %p61 = scmp.ne.s32.totalorder %s52, %s53
      %p62 = scmp.eq.s32.totalorder %s21, 0
      %p63 = por %p61, %p62
      %p64 = scmp.ne.s32.totalorder %s52, %s53
      %p65 = scmp.eq.s32.totalorder %s22, 1
      %p66 = por %p64, %p65
      %p68 = scmp.ne.s32.totalorder %s53, %s67
      %p69 = scmp.eq.s32.totalorder %s22, 0
      %p70 = por %p68, %p69
      %s72 = sadd.s32 %s71, 1
      %p75 = scmp.eq.s32.totalorder %s16, 1
      %p76 = scmp.ne.s32.totalorder %s71, %s73
      %p77 = scmp.eq.s32.totalorder %s16, 0
      %p78 = por %p76, %p77
      %p79 = scmp.ne.s32.totalorder %s71, %s73
      %p80 = scmp.eq.s32.totalorder %s21, 1
      %p81 = por %p79, %p80
      %p82 = scmp.ne.s32.totalorder %s73, %s74
      %p83 = scmp.eq.s32.totalorder %s21, 0
      %p84 = por %p82, %p83
      %p85 = scmp.ne.s32.totalorder %s73, %s74
      %p86 = scmp.eq.s32.totalorder %s22, 1
      %p87 = por %p85, %p86
      %p89 = scmp.ne.s32.totalorder %s74, %s88
      %p90 = scmp.eq.s32.totalorder %s22, 0
      %p91 = por %p89, %p90
      %s93 = sadd.s32 %s92, 1
      %p96 = scmp.eq.s32.totalorder %s16, 1
      %p97 = scmp.ne.s32.totalorder %s92, %s94
      %p98 = scmp.eq.s32.totalorder %s16, 0
      %p99 = por %p97, %p98
      %p100 = scmp.ne.s32.totalorder %s92, %s94
      %p101 = scmp.eq.s32.totalorder %s21, 1
      %p102 = por %p100, %p101
      %p103 = scmp.ne.s32.totalorder %s94, %s95
      %p104 = scmp.eq.s32.totalorder %s21, 0
      %p105 = por %p103, %p104
      %p106 = scmp.ne.s32.totalorder %s94, %s95
      %p107 = scmp.eq.s32.totalorder %s22, 1
      %p108 = por %p106, %p107
      %p110 = scmp.ne.s32.totalorder %s95, %s109
      %p111 = scmp.eq.s32.totalorder %s22, 0
      %p112 = por %p110, %p111
      %s114 = sadd.s32 %s113, 1
      %p117 = scmp.eq.s32.totalorder %s16, 1
      %p118 = scmp.ne.s32.totalorder %s113, %s115
      %p119 = scmp.eq.s32.totalorder %s16, 0
      %p120 = por %p118, %p119
      %p121 = scmp.ne.s32.totalorder %s113, %s115
      %p122 = scmp.eq.s32.totalorder %s21, 1
      %p123 = por %p121, %p122
      %p124 = scmp.ne.s32.totalorder %s115, %s116
      %p125 = scmp.eq.s32.totalorder %s21, 0
      %p126 = por %p124, %p125
      %p127 = scmp.ne.s32.totalorder %s115, %s116
      %p128 = scmp.eq.s32.totalorder %s22, 1
      %p129 = por %p127, %p128
      %p131 = scmp.ne.s32.totalorder %s116, %s130
      %p132 = scmp.eq.s32.totalorder %s22, 0
      %p133 = por %p131, %p132
      %s135 = sadd.s32 %s134, 1
      %p138 = scmp.eq.s32.totalorder %s16, 1
      %p139 = scmp.ne.s32.totalorder %s134, %s136
      %p140 = scmp.eq.s32.totalorder %s16, 0
      %p141 = por %p139, %p140
      %p142 = scmp.ne.s32.totalorder %s134, %s136
      %p143 = scmp.eq.s32.totalorder %s21, 1
      %p144 = por %p142, %p143
      %p145 = scmp.ne.s32.totalorder %s136, %s137
      %p146 = scmp.eq.s32.totalorder %s21, 0
      %p147 = por %p145, %p146
      %p148 = scmp.ne.s32.totalorder %s136, %s137
      %p149 = scmp.eq.s32.totalorder %s22, 1
      %p150 = por %p148, %p149
      %p152 = scmp.ne.s32.totalorder %s137, %s151
      %p153 = scmp.eq.s32.totalorder %s22, 0
      %p154 = por %p152, %p153
      %s156 = sadd.s32 %s155, 1
      %p159 = scmp.eq.s32.totalorder %s16, 1
      %p160 = scmp.ne.s32.totalorder %s155, %s157
      %p161 = scmp.eq.s32.totalorder %s16, 0
      %p162 = por %p160, %p161
      %p163 = scmp.ne.s32.totalorder %s155, %s157
      %p164 = scmp.eq.s32.totalorder %s21, 1
      %p165 = por %p163, %p164
      %p166 = scmp.ne.s32.totalorder %s157, %s158
      %p167 = scmp.eq.s32.totalorder %s21, 0
      %p168 = por %p166, %p167
      %p169 = scmp.ne.s32.totalorder %s157, %s158
      %p170 = scmp.eq.s32.totalorder %s22, 1
      %p171 = por %p169, %p170
      %p173 = scmp.ne.s32.totalorder %s158, %s172
      %p174 = scmp.eq.s32.totalorder %s22, 0
      %p175 = por %p173, %p174
      %s176 = ssub.s32 %s16, %s23
      %p177 = scmp.eq.s32.totalorder %s176, 0
      %s179 = sadd.s32 %s178, 1
      %s180 = scalar_select %p177, %s178, %s179
      %p183 = pneg %p177
      %p184 = scmp.eq.s32.totalorder %s16, 1
      %p185 = por %p183, %p184
      %p186 = scmp.ne.s32.totalorder %s178, %s181
      %p187 = scmp.eq.s32.totalorder %s16, 0
      %p188 = por %p186, %p187
      %p189 = scmp.ne.s32.totalorder %s178, %s181
      %p190 = scmp.eq.s32.totalorder %s21, 1
      %p191 = por %p189, %p190
      %p192 = scmp.ne.s32.totalorder %s181, %s182
      %p193 = scmp.eq.s32.totalorder %s21, 0
      %p194 = por %p192, %p193
      %p195 = scmp.ne.s32.totalorder %s181, %s182
      %p196 = scmp.eq.s32.totalorder %s22, 1
      %p197 = por %p195, %p196
      %p199 = scmp.ne.s32.totalorder %s182, %s198
      %p200 = scmp.eq.s32.totalorder %s22, 0
      %p201 = por %p199, %p200
      %p202 = scmp.le.s32.totalorder 1, %s16
      %p203 = scmp.lt.s32.totalorder %s16, 3
      %p204 = pnand %p202, %p203
      %p205 = pneg %p204
      // Predicated region
      $region9: #{pc_feature_net.1} parent=5 // pred_check
        _
      $region10: #{pc_feature_net.1} parent=5 // pred_check_branch
        %207 = sbr.rel (%p204) target = $region12
      $region11: #{pc_feature_net.1} parent=5 // pred_region
        %s208 = ssub.s32 %s16, 1
        // Predicated region
        $region13: #{pc_feature_net.1} parent=11 // pred_check
          %p209 = pneg %p63
        $region14: #{pc_feature_net.1} parent=11 // pred_check_branch
          %211 = sbr.rel (%p209) target = $region16
        $region15: #{pc_feature_net.1} parent=11 // pred_region
          _
        $region16: #{pc_feature_net.1} parent=11 // pred_fallthru
          _
        // Predicated region
        $region17: #{pc_feature_net.1} parent=11 // pred_check
          %p212 = pneg %p84
        $region18: #{pc_feature_net.1} parent=11 // pred_check_branch
          %214 = sbr.rel (%p212) target = $region20
        $region19: #{pc_feature_net.1} parent=11 // pred_region
          _
        $region20: #{pc_feature_net.1} parent=11 // pred_fallthru
          _
        // Predicated region
        $region21: #{pc_feature_net.1} parent=11 // pred_check
          %p215 = pneg %p105
        $region22: #{pc_feature_net.1} parent=11 // pred_check_branch
          %217 = sbr.rel (%p215) target = $region24
        $region23: #{pc_feature_net.1} parent=11 // pred_region
          _
        $region24: #{pc_feature_net.1} parent=11 // pred_fallthru
          _
        // Predicated region
        $region25: #{pc_feature_net.1} parent=11 // pred_check
          %p218 = pneg %p126
        $region26: #{pc_feature_net.1} parent=11 // pred_check_branch
          %220 = sbr.rel (%p218) target = $region28
        $region27: #{pc_feature_net.1} parent=11 // pred_region
          _
        $region28: #{pc_feature_net.1} parent=11 // pred_fallthru
          _
        // Predicated region
        $region29: #{pc_feature_net.1} parent=11 // pred_check
          %p221 = pneg %p147
        $region30: #{pc_feature_net.1} parent=11 // pred_check_branch
          %223 = sbr.rel (%p221) target = $region32
        $region31: #{pc_feature_net.1} parent=11 // pred_region
          _
        $region32: #{pc_feature_net.1} parent=11 // pred_fallthru
          _
        // Predicated region
        $region33: #{pc_feature_net.1} parent=11 // pred_check
          %p224 = pneg %p168
        $region34: #{pc_feature_net.1} parent=11 // pred_check_branch
          %226 = sbr.rel (%p224) target = $region36
        $region35: #{pc_feature_net.1} parent=11 // pred_region
          _
        $region36: #{pc_feature_net.1} parent=11 // pred_fallthru
          _
      $region12: #{pc_feature_net.1} parent=5 // pred_fallthru
        _
      %p227 = scmp.lt.s32.totalorder %s16, 2
      // Predicated region
      $region37: #{pc_feature_net.1} parent=5 // pred_check
        %p228 = pneg %p227
      $region38: #{pc_feature_net.1} parent=5 // pred_check_branch
        %230 = sbr.rel (%p228) target = $region40
      $region39: #{pc_feature_net.1} parent=5 // pred_region
        // Predicated region
        $region41: #{pc_feature_net.1} parent=39 // pred_check
          %p231 = pneg %p36
        $region42: #{pc_feature_net.1} parent=39 // pred_check_branch
          %233 = sbr.rel (%p231) target = $region44
        $region43: #{pc_feature_net.1} parent=39 // pred_region
          %s234 = smul.u32 4, %s16
          %p235 = scmp.lt.s32.totalorder %s234, 7
          %s236 = scalar_select %p235, %s234, 7
          %s237 = smul.addr %s236, 2
          %s238 = smul.addr %s237, 8
          %s239 = scalar_lea.vmem %s0, %s238
          %s240 = smul.u32 4, %s16
        $region44: #{pc_feature_net.1} parent=39 // pred_fallthru
          _
      $region40: #{pc_feature_net.1} parent=5 // pred_fallthru
        _
      %p241 = scmp.le.s32.totalorder 1, %s16
      %p242 = scmp.lt.s32.totalorder %s16, 3
      %p243 = pnand %p241, %p242
      %p244 = pneg %p243
      // Predicated region
      $region45: #{pc_feature_net.1} parent=5 // pred_check
        _
      $region46: #{pc_feature_net.1} parent=5 // pred_check_branch
        %246 = sbr.rel (%p243) target = $region48
      $region47: #{pc_feature_net.1} parent=5 // pred_region
        %s247 = ssub.s32 %s16, 1
        %s248 = smul.u32 4, %s21
        %p249 = scmp.lt.s32.totalorder %s248, 7
        %s250 = scalar_select %p249, %s248, 7
        %s251 = smul.addr %s250, 2
        %s252 = smul.addr %s251, 8
        %s253 = scalar_lea.vmem %s0, %s252
        %p254 = pneg %p42
        %p255 = pneg %p39
        %p256 = pneg %p63
        %p257 = pneg %p60
        %p258 = pneg %p84
        %p259 = pneg %p81
        %p260 = pneg %p105
        %p261 = pneg %p102
        %p262 = pneg %p126
        %p263 = pneg %p123
        %p264 = pneg %p147
        %p265 = pneg %p144
        %p266 = pneg %p168
        %p267 = pneg %p165
        %p268 = pneg %p194
        %p269 = pneg %p191
        %s270 = sand.u32 %s181, 1
        %s271 = scalar_lea.sflag [#allocation3], %s270
        %s272 = sand.u32 %s181, 1
        %s273 = smul.addr %s272, 4
        %s274 = scalar_lea.vmem [#allocation2], %s273
        %s275 = smul.u32 4, %s21
        %p276 = scmp.lt.s32.totalorder %s275, 7
        %s277 = scalar_select %p276, %s275, 7
        %s278 = smul.addr %s277, 2
        %s279 = smul.addr %s278, 8
        %s280 = scalar_lea.vmem %s0, %s279
        %s281 = smul.u32 4, %s21
        %v282 = vld [vmem:[%s280] sm:$0xff]
        %v283 = vld [vmem:[%s280 + $0x8] sm:$0xff]
        %v284 = vld [vmem:[%s280 + $0x10] sm:$0xff]
        %v285 = vld [vmem:[%s280 + $0x18] sm:$0xff]
        %v286 = vld [vmem:[%s280 + $0x20] sm:$0xff]
        %v287 = vld [vmem:[%s280 + $0x28] sm:$0xff]
        %v288 = vld [vmem:[%s280 + $0x30] sm:$0xff]
        %v289 = vld [vmem:[%s280 + $0x38] sm:$0xff]
        %v290 = vld [vmem:[%s1] sm:$0x1]
        %v291 = vld [vmem:[%s2] sm:$0x1]
        %v292 = vlaneseq
        %v293 = vshrl.u32 %v292, 7
        %v294 = vsub.s32 0, %v293
        %v295 = vrot.slane %v282, %v294
        %v296 = vlaneseq
        %v297 = vshrl.u32 %v296, 7
        %v298 = vsub.s32 0, %v297
        %v299 = vrot.slane %v284, %v298
        %v300 = vlaneseq
        %v301 = vshrl.u32 %v300, 7
        %v302 = vsub.s32 0, %v301
        %v303 = vrot.slane %v286, %v302
        %v304 = vlaneseq
        %v305 = vshrl.u32 %v304, 7
        %v306 = vsub.s32 0, %v305
        %v307 = vrot.slane %v288, %v306
        %v308 = vsub.f32 %v282, %v295
        %v309 = vsub.f32 %v283, %v295
        %v310 = vsub.f32 %v284, %v299
        %v311 = vsub.f32 %v285, %v299
        %v312 = vsub.f32 %v286, %v303
        %v313 = vsub.f32 %v287, %v303
        %v314 = vsub.f32 %v288, %v307
        %v315 = vsub.f32 %v289, %v307
        %v316 = vmul.f32 %v308, %v308
        %v317 = vmul.f32 %v309, %v309
        %v318 = vmul.f32 %v310, %v310
        %v319 = vmul.f32 %v311, %v311
        %v320 = vmul.f32 %v312, %v312
        %v321 = vmul.f32 %v313, %v313
        %v322 = vmul.f32 %v314, %v314
        %v323 = vmul.f32 %v315, %v315
        %vm324 = vcmask 31744
        %v325 = vsel %vm324, %v316, 0.0
        %326 = vadd.xlane.f32.xlu0 %v325
        %v327 = vpop.xlane.xlu0 %326
        %v328 = vsel %vm324, %v317, 0.0
        %329 = vadd.xlane.f32.xlu0 %v328
        %v330 = vpop.xlane.xlu0 %329
        %v331 = vsel %vm324, %v318, 0.0
        %332 = vadd.xlane.f32.xlu0 %v331
        %v333 = vpop.xlane.xlu0 %332
        %v334 = vsel %vm324, %v319, 0.0
        %335 = vadd.xlane.f32.xlu0 %v334
        %v336 = vpop.xlane.xlu0 %335
        %v337 = vsel %vm324, %v320, 0.0
        %338 = vadd.xlane.f32.xlu0 %v337
        %v339 = vpop.xlane.xlu0 %338
        %v340 = vsel %vm324, %v321, 0.0
        %341 = vadd.xlane.f32.xlu0 %v340
        %v342 = vpop.xlane.xlu0 %341
        %v343 = vsel %vm324, %v322, 0.0
        %344 = vadd.xlane.f32.xlu0 %v343
        %v345 = vpop.xlane.xlu0 %344
        %v346 = vsel %vm324, %v323, 0.0
        %347 = vadd.xlane.f32.xlu0 %v346
        %v348 = vpop.xlane.xlu0 %347
        %v349 = vrsqrt.pop %v327
        %v350 = vmul.f32 %v327, %v349
        %vm351 = vcmp.eq.f32.partialorder %v327, inf
        %v352 = vsel %vm351, %v327, %v350
        %vm353 = vcmp.eq.f32.partialorder %v327, 0.0
        %v354 = vand.u32 %v327, 2147483648
        %v355 = vsel %vm353, %v354, %v352
        %v356 = vrsqrt.pop %v330
        %v357 = vmul.f32 %v330, %v356
        %vm358 = vcmp.eq.f32.partialorder %v330, inf
        %v359 = vsel %vm358, %v330, %v357
        %vm360 = vcmp.eq.f32.partialorder %v330, 0.0
        %v361 = vand.u32 %v330, 2147483648
        %v362 = vsel %vm360, %v361, %v359
        %v363 = vrsqrt.pop %v333
        %v364 = vmul.f32 %v333, %v363
        %vm365 = vcmp.eq.f32.partialorder %v333, inf
        %v366 = vsel %vm365, %v333, %v364
        %vm367 = vcmp.eq.f32.partialorder %v333, 0.0
        %v368 = vand.u32 %v333, 2147483648
        %v369 = vsel %vm367, %v368, %v366
        %v370 = vrsqrt.pop %v336
        %v371 = vmul.f32 %v336, %v370
        %vm372 = vcmp.eq.f32.partialorder %v336, inf
        %v373 = vsel %vm372, %v336, %v371
        %vm374 = vcmp.eq.f32.partialorder %v336, 0.0
        %v375 = vand.u32 %v336, 2147483648
        %v376 = vsel %vm374, %v375, %v373
        %v377 = vrsqrt.pop %v339
        %v378 = vmul.f32 %v339, %v377
        %vm379 = vcmp.eq.f32.partialorder %v339, inf
        %v380 = vsel %vm379, %v339, %v378
        %vm381 = vcmp.eq.f32.partialorder %v339, 0.0
        %v382 = vand.u32 %v339, 2147483648
        %v383 = vsel %vm381, %v382, %v380
        %v384 = vrsqrt.pop %v342
        %v385 = vmul.f32 %v342, %v384
        %vm386 = vcmp.eq.f32.partialorder %v342, inf
        %v387 = vsel %vm386, %v342, %v385
        %vm388 = vcmp.eq.f32.partialorder %v342, 0.0
        %v389 = vand.u32 %v342, 2147483648
        %v390 = vsel %vm388, %v389, %v387
        %v391 = vrsqrt.pop %v345
        %v392 = vmul.f32 %v345, %v391
        %vm393 = vcmp.eq.f32.partialorder %v345, inf
        %v394 = vsel %vm393, %v345, %v392
        %vm395 = vcmp.eq.f32.partialorder %v345, 0.0
        %v396 = vand.u32 %v345, 2147483648
        %v397 = vsel %vm395, %v396, %v394
        %v398 = vrsqrt.pop %v348
        %v399 = vmul.f32 %v348, %v398
        %vm400 = vcmp.eq.f32.partialorder %v348, inf
        %v401 = vsel %vm400, %v348, %v399
        %vm402 = vcmp.eq.f32.partialorder %v348, 0.0
        %v403 = vand.u32 %v348, 2147483648
        %v404 = vsel %vm402, %v403, %v401
        %v406 = vlaneseq
        %v407 = vshrl.u32 %v406, 7
        %v408 = vsub.s32 0, %v407
        %v409 = vrot.slane %v290, %v408
        %v411 = vmul.f32 %v355, %v409
        %v412 = vmul.f32 %v362, %v409
        %v413 = vmul.f32 %v369, %v409
        %v414 = vmul.f32 %v376, %v409
        %v415 = vmul.f32 %v383, %v409
        %v416 = vmul.f32 %v390, %v409
        %v417 = vmul.f32 %v397, %v409
        %v418 = vmul.f32 %v404, %v409
        %v420 = vlaneseq
        %v421 = vshrl.u32 %v420, 7
        %v422 = vsub.s32 0, %v421
        %v423 = vrot.slane %v291, %v422
        %v425 = vadd.f32 %v411, %v423
        %v426 = vadd.f32 %v412, %v423
        %v427 = vadd.f32 %v413, %v423
        %v428 = vadd.f32 %v414, %v423
        %v429 = vadd.f32 %v415, %v423
        %v430 = vadd.f32 %v416, %v423
        %v431 = vadd.f32 %v417, %v423
        %v432 = vadd.f32 %v418, %v423
        %v433 = vmax.f32 %v425, 0.0
        %v434 = vmax.f32 %v426, 0.0
        %v435 = vmax.f32 %v427, 0.0
        %v436 = vmax.f32 %v428, 0.0
        %v437 = vmax.f32 %v429, 0.0
        %v438 = vmax.f32 %v430, 0.0
        %v439 = vmax.f32 %v431, 0.0
        %v440 = vmax.f32 %v432, 0.0
        %v441 = vadd.f32 %v433, 0.0
        %v442 = vadd.f32 %v434, 0.0
        %v443 = vadd.f32 %v435, 0.0
        %v444 = vadd.f32 %v436, 0.0
        %v445 = vadd.f32 %v437, 0.0
        %v446 = vadd.f32 %v438, 0.0
        %v447 = vadd.f32 %v439, 0.0
        %v448 = vadd.f32 %v440, 0.0
        %v449 = vlaneseq
        %v450 = vshrl.u32 %v449, 7
        %v451 = vsub.s32 1, %v450
        %v452 = vrot.slane %v282, %v451
        %v453 = vlaneseq
        %v454 = vshrl.u32 %v453, 7
        %v455 = vsub.s32 1, %v454
        %v456 = vrot.slane %v284, %v455
        %v457 = vlaneseq
        %v458 = vshrl.u32 %v457, 7
        %v459 = vsub.s32 1, %v458
        %v460 = vrot.slane %v286, %v459
        %v461 = vlaneseq
        %v462 = vshrl.u32 %v461, 7
        %v463 = vsub.s32 1, %v462
        %v464 = vrot.slane %v288, %v463
        %v465 = vsub.f32 %v282, %v452
        %v466 = vsub.f32 %v283, %v452
        %v467 = vsub.f32 %v284, %v456
        %v468 = vsub.f32 %v285, %v456
        %v469 = vsub.f32 %v286, %v460
        %v470 = vsub.f32 %v287, %v460
        %v471 = vsub.f32 %v288, %v464
        %v472 = vsub.f32 %v289, %v464
        %v473 = vmul.f32 %v465, %v465
        %v474 = vmul.f32 %v466, %v466
        %v475 = vmul.f32 %v467, %v467
        %v476 = vmul.f32 %v468, %v468
        %v477 = vmul.f32 %v469, %v469
        %v478 = vmul.f32 %v470, %v470
        %v479 = vmul.f32 %v471, %v471
        %v480 = vmul.f32 %v472, %v472
        %v481 = vsel %vm324, %v473, 0.0
        %482 = vadd.xlane.f32.xlu0 %v481
        %v483 = vpop.xlane.xlu0 %482
        %v484 = vsel %vm324, %v474, 0.0
        %485 = vadd.xlane.f32.xlu0 %v484
        %v486 = vpop.xlane.xlu0 %485
        %v487 = vsel %vm324, %v475, 0.0
        %488 = vadd.xlane.f32.xlu0 %v487
        %v489 = vpop.xlane.xlu0 %488
        %v490 = vsel %vm324, %v476, 0.0
        %491 = vadd.xlane.f32.xlu0 %v490
        %v492 = vpop.xlane.xlu0 %491
        %v493 = vsel %vm324, %v477, 0.0
        %494 = vadd.xlane.f32.xlu0 %v493
        %v495 = vpop.xlane.xlu0 %494
        %v496 = vsel %vm324, %v478, 0.0
        %497 = vadd.xlane.f32.xlu0 %v496
        %v498 = vpop.xlane.xlu0 %497
        %v499 = vsel %vm324, %v479, 0.0
        %500 = vadd.xlane.f32.xlu0 %v499
        %v501 = vpop.xlane.xlu0 %500
        %v502 = vsel %vm324, %v480, 0.0
        %503 = vadd.xlane.f32.xlu0 %v502
        %v504 = vpop.xlane.xlu0 %503
        %v505 = vrsqrt.pop %v483
        %v506 = vmul.f32 %v483, %v505
        %vm507 = vcmp.eq.f32.partialorder %v483, inf
        %v508 = vsel %vm507, %v483, %v506
        %vm509 = vcmp.eq.f32.partialorder %v483, 0.0
        %v510 = vand.u32 %v483, 2147483648
        %v511 = vsel %vm509, %v510, %v508
        %v512 = vrsqrt.pop %v486
        %v513 = vmul.f32 %v486, %v512
        %vm514 = vcmp.eq.f32.partialorder %v486, inf
        %v515 = vsel %vm514, %v486, %v513
        %vm516 = vcmp.eq.f32.partialorder %v486, 0.0
        %v517 = vand.u32 %v486, 2147483648
        %v518 = vsel %vm516, %v517, %v515
        %v519 = vrsqrt.pop %v489
        %v520 = vmul.f32 %v489, %v519
        %vm521 = vcmp.eq.f32.partialorder %v489, inf
        %v522 = vsel %vm521, %v489, %v520
        %vm523 = vcmp.eq.f32.partialorder %v489, 0.0
        %v524 = vand.u32 %v489, 2147483648
        %v525 = vsel %vm523, %v524, %v522
        %v526 = vrsqrt.pop %v492
        %v527 = vmul.f32 %v492, %v526
        %vm528 = vcmp.eq.f32.partialorder %v492, inf
        %v529 = vsel %vm528, %v492, %v527
        %vm530 = vcmp.eq.f32.partialorder %v492, 0.0
        %v531 = vand.u32 %v492, 2147483648
        %v532 = vsel %vm530, %v531, %v529
        %v533 = vrsqrt.pop %v495
        %v534 = vmul.f32 %v495, %v533
        %vm535 = vcmp.eq.f32.partialorder %v495, inf
        %v536 = vsel %vm535, %v495, %v534
        %vm537 = vcmp.eq.f32.partialorder %v495, 0.0
        %v538 = vand.u32 %v495, 2147483648
        %v539 = vsel %vm537, %v538, %v536
        %v540 = vrsqrt.pop %v498
        %v541 = vmul.f32 %v498, %v540
        %vm542 = vcmp.eq.f32.partialorder %v498, inf
        %v543 = vsel %vm542, %v498, %v541
        %vm544 = vcmp.eq.f32.partialorder %v498, 0.0
        %v545 = vand.u32 %v498, 2147483648
        %v546 = vsel %vm544, %v545, %v543
        %v547 = vrsqrt.pop %v501
        %v548 = vmul.f32 %v501, %v547
        %vm549 = vcmp.eq.f32.partialorder %v501, inf
        %v550 = vsel %vm549, %v501, %v548
        %vm551 = vcmp.eq.f32.partialorder %v501, 0.0
        %v552 = vand.u32 %v501, 2147483648
        %v553 = vsel %vm551, %v552, %v550
        %v554 = vrsqrt.pop %v504
        %v555 = vmul.f32 %v504, %v554
        %vm556 = vcmp.eq.f32.partialorder %v504, inf
        %v557 = vsel %vm556, %v504, %v555
        %vm558 = vcmp.eq.f32.partialorder %v504, 0.0
        %v559 = vand.u32 %v504, 2147483648
        %v560 = vsel %vm558, %v559, %v557
        %v561 = vmul.f32 %v511, %v409
        %v562 = vmul.f32 %v518, %v409
        %v563 = vmul.f32 %v525, %v409
        %v564 = vmul.f32 %v532, %v409
        %v565 = vmul.f32 %v539, %v409
        %v566 = vmul.f32 %v546, %v409
        %v567 = vmul.f32 %v553, %v409
        %v568 = vmul.f32 %v560, %v409
        %v569 = vadd.f32 %v561, %v423
        %v570 = vadd.f32 %v562, %v423
        %v571 = vadd.f32 %v563, %v423
        %v572 = vadd.f32 %v564, %v423
        %v573 = vadd.f32 %v565, %v423
        %v574 = vadd.f32 %v566, %v423
        %v575 = vadd.f32 %v567, %v423
        %v576 = vadd.f32 %v568, %v423
        %v577 = vmax.f32 %v569, 0.0
        %v578 = vmax.f32 %v570, 0.0
        %v579 = vmax.f32 %v571, 0.0
        %v580 = vmax.f32 %v572, 0.0
        %v581 = vmax.f32 %v573, 0.0
        %v582 = vmax.f32 %v574, 0.0
        %v583 = vmax.f32 %v575, 0.0
        %v584 = vmax.f32 %v576, 0.0
        %v585 = vadd.f32 %v441, %v577
        %v586 = vadd.f32 %v442, %v578
        %v587 = vadd.f32 %v443, %v579
        %v588 = vadd.f32 %v444, %v580
        %v589 = vadd.f32 %v445, %v581
        %v590 = vadd.f32 %v446, %v582
        %v591 = vadd.f32 %v447, %v583
        %v592 = vadd.f32 %v448, %v584
        %v593 = vlaneseq
        %v594 = vshrl.u32 %v593, 7
        %v595 = vsub.s32 2, %v594
        %v596 = vrot.slane %v282, %v595
        %v597 = vlaneseq
        %v598 = vshrl.u32 %v597, 7
        %v599 = vsub.s32 2, %v598
        %v600 = vrot.slane %v284, %v599
        %v601 = vlaneseq
        %v602 = vshrl.u32 %v601, 7
        %v603 = vsub.s32 2, %v602
        %v604 = vrot.slane %v286, %v603
        %v605 = vlaneseq
        %v606 = vshrl.u32 %v605, 7
        %v607 = vsub.s32 2, %v606
        %v608 = vrot.slane %v288, %v607
        %v609 = vsub.f32 %v282, %v596
        %v610 = vsub.f32 %v283, %v596
        %v611 = vsub.f32 %v284, %v600
        %v612 = vsub.f32 %v285, %v600
        %v613 = vsub.f32 %v286, %v604
        %v614 = vsub.f32 %v287, %v604
        %v615 = vsub.f32 %v288, %v608
        %v616 = vsub.f32 %v289, %v608
        %v617 = vmul.f32 %v609, %v609
        %v618 = vmul.f32 %v610, %v610
        %v619 = vmul.f32 %v611, %v611
        %v620 = vmul.f32 %v612, %v612
        %v621 = vmul.f32 %v613, %v613
        %v622 = vmul.f32 %v614, %v614
        %v623 = vmul.f32 %v615, %v615
        %v624 = vmul.f32 %v616, %v616
        %v625 = vsel %vm324, %v617, 0.0
        %626 = vadd.xlane.f32.xlu0 %v625
        %v627 = vpop.xlane.xlu0 %626
        %v628 = vsel %vm324, %v618, 0.0
        %629 = vadd.xlane.f32.xlu0 %v628
        %v630 = vpop.xlane.xlu0 %629
        %v631 = vsel %vm324, %v619, 0.0
        %632 = vadd.xlane.f32.xlu0 %v631
        %v633 = vpop.xlane.xlu0 %632
        %v634 = vsel %vm324, %v620, 0.0
        %635 = vadd.xlane.f32.xlu0 %v634
        %v636 = vpop.xlane.xlu0 %635
        %v637 = vsel %vm324, %v621, 0.0
        %638 = vadd.xlane.f32.xlu0 %v637
        %v639 = vpop.xlane.xlu0 %638
        %v640 = vsel %vm324, %v622, 0.0
        %641 = vadd.xlane.f32.xlu0 %v640
        %v642 = vpop.xlane.xlu0 %641
        %v643 = vsel %vm324, %v623, 0.0
        %644 = vadd.xlane.f32.xlu0 %v643
        %v645 = vpop.xlane.xlu0 %644
        %v646 = vsel %vm324, %v624, 0.0
        %647 = vadd.xlane.f32.xlu0 %v646
        %v648 = vpop.xlane.xlu0 %647
        %v649 = vrsqrt.pop %v627
        %v650 = vmul.f32 %v627, %v649
        %vm651 = vcmp.eq.f32.partialorder %v627, inf
        %v652 = vsel %vm651, %v627, %v650
        %vm653 = vcmp.eq.f32.partialorder %v627, 0.0
        %v654 = vand.u32 %v627, 2147483648
        %v655 = vsel %vm653, %v654, %v652
        %v656 = vrsqrt.pop %v630
        %v657 = vmul.f32 %v630, %v656
        %vm658 = vcmp.eq.f32.partialorder %v630, inf
        %v659 = vsel %vm658, %v630, %v657
        %vm660 = vcmp.eq.f32.partialorder %v630, 0.0
        %v661 = vand.u32 %v630, 2147483648
        %v662 = vsel %vm660, %v661, %v659
        %v663 = vrsqrt.pop %v633
        %v664 = vmul.f32 %v633, %v663
        %vm665 = vcmp.eq.f32.partialorder %v633, inf
        %v666 = vsel %vm665, %v633, %v664
        %vm667 = vcmp.eq.f32.partialorder %v633, 0.0
        %v668 = vand.u32 %v633, 2147483648
        %v669 = vsel %vm667, %v668, %v666
        %v670 = vrsqrt.pop %v636
        %v671 = vmul.f32 %v636, %v670
        %vm672 = vcmp.eq.f32.partialorder %v636, inf
        %v673 = vsel %vm672, %v636, %v671
        %vm674 = vcmp.eq.f32.partialorder %v636, 0.0
        %v675 = vand.u32 %v636, 2147483648
        %v676 = vsel %vm674, %v675, %v673
        %v677 = vrsqrt.pop %v639
        %v678 = vmul.f32 %v639, %v677
        %vm679 = vcmp.eq.f32.partialorder %v639, inf
        %v680 = vsel %vm679, %v639, %v678
        %vm681 = vcmp.eq.f32.partialorder %v639, 0.0
        %v682 = vand.u32 %v639, 2147483648
        %v683 = vsel %vm681, %v682, %v680
        %v684 = vrsqrt.pop %v642
        %v685 = vmul.f32 %v642, %v684
        %vm686 = vcmp.eq.f32.partialorder %v642, inf
        %v687 = vsel %vm686, %v642, %v685
        %vm688 = vcmp.eq.f32.partialorder %v642, 0.0
        %v689 = vand.u32 %v642, 2147483648
        %v690 = vsel %vm688, %v689, %v687
        %v691 = vrsqrt.pop %v645
        %v692 = vmul.f32 %v645, %v691
        %vm693 = vcmp.eq.f32.partialorder %v645, inf
        %v694 = vsel %vm693, %v645, %v692
        %vm695 = vcmp.eq.f32.partialorder %v645, 0.0
        %v696 = vand.u32 %v645, 2147483648
        %v697 = vsel %vm695, %v696, %v694
        %v698 = vrsqrt.pop %v648
        %v699 = vmul.f32 %v648, %v698
        %vm700 = vcmp.eq.f32.partialorder %v648, inf
        %v701 = vsel %vm700, %v648, %v699
        %vm702 = vcmp.eq.f32.partialorder %v648, 0.0
        %v703 = vand.u32 %v648, 2147483648
        %v704 = vsel %vm702, %v703, %v701
        %v705 = vmul.f32 %v655, %v409
        %v706 = vmul.f32 %v662, %v409
        %v707 = vmul.f32 %v669, %v409
        %v708 = vmul.f32 %v676, %v409
        %v709 = vmul.f32 %v683, %v409
        %v710 = vmul.f32 %v690, %v409
        %v711 = vmul.f32 %v697, %v409
        %v712 = vmul.f32 %v704, %v409
        %v713 = vadd.f32 %v705, %v423
        %v714 = vadd.f32 %v706, %v423
        %v715 = vadd.f32 %v707, %v423
        %v716 = vadd.f32 %v708, %v423
        %v717 = vadd.f32 %v709, %v423
        %v718 = vadd.f32 %v710, %v423
        %v719 = vadd.f32 %v711, %v423
        %v720 = vadd.f32 %v712, %v423
        %v721 = vmax.f32 %v713, 0.0
        %v722 = vmax.f32 %v714, 0.0
        %v723 = vmax.f32 %v715, 0.0
        %v724 = vmax.f32 %v716, 0.0
        %v725 = vmax.f32 %v717, 0.0
        %v726 = vmax.f32 %v718, 0.0
        %v727 = vmax.f32 %v719, 0.0
        %v728 = vmax.f32 %v720, 0.0
        %v729 = vadd.f32 %v585, %v721
        %v730 = vadd.f32 %v586, %v722
        %v731 = vadd.f32 %v587, %v723
        %v732 = vadd.f32 %v588, %v724
        %v733 = vadd.f32 %v589, %v725
        %v734 = vadd.f32 %v590, %v726
        %v735 = vadd.f32 %v591, %v727
        %v736 = vadd.f32 %v592, %v728
        %v737 = vlaneseq
        %v738 = vshrl.u32 %v737, 7
        %v739 = vsub.s32 3, %v738
        %v740 = vrot.slane %v282, %v739
        %v741 = vlaneseq
        %v742 = vshrl.u32 %v741, 7
        %v743 = vsub.s32 3, %v742
        %v744 = vrot.slane %v284, %v743
        %v745 = vlaneseq
        %v746 = vshrl.u32 %v745, 7
        %v747 = vsub.s32 3, %v746
        %v748 = vrot.slane %v286, %v747
        %v749 = vlaneseq
        %v750 = vshrl.u32 %v749, 7
        %v751 = vsub.s32 3, %v750
        %v752 = vrot.slane %v288, %v751
        %v753 = vsub.f32 %v282, %v740
        %v754 = vsub.f32 %v283, %v740
        %v755 = vsub.f32 %v284, %v744
        %v756 = vsub.f32 %v285, %v744
        %v757 = vsub.f32 %v286, %v748
        %v758 = vsub.f32 %v287, %v748
        %v759 = vsub.f32 %v288, %v752
        %v760 = vsub.f32 %v289, %v752
        %v761 = vmul.f32 %v753, %v753
        %v762 = vmul.f32 %v754, %v754
        %v763 = vmul.f32 %v755, %v755
        %v764 = vmul.f32 %v756, %v756
        %v765 = vmul.f32 %v757, %v757
        %v766 = vmul.f32 %v758, %v758
        %v767 = vmul.f32 %v759, %v759
        %v768 = vmul.f32 %v760, %v760
        %v769 = vsel %vm324, %v761, 0.0
        %770 = vadd.xlane.f32.xlu0 %v769
        %v771 = vpop.xlane.xlu0 %770
        %v772 = vsel %vm324, %v762, 0.0
        %773 = vadd.xlane.f32.xlu0 %v772
        %v774 = vpop.xlane.xlu0 %773
        %v775 = vsel %vm324, %v763, 0.0
        %776 = vadd.xlane.f32.xlu0 %v775
        %v777 = vpop.xlane.xlu0 %776
        %v778 = vsel %vm324, %v764, 0.0
        %779 = vadd.xlane.f32.xlu0 %v778
        %v780 = vpop.xlane.xlu0 %779
        %v781 = vsel %vm324, %v765, 0.0
        %782 = vadd.xlane.f32.xlu0 %v781
        %v783 = vpop.xlane.xlu0 %782
        %v784 = vsel %vm324, %v766, 0.0
        %785 = vadd.xlane.f32.xlu0 %v784
        %v786 = vpop.xlane.xlu0 %785
        %v787 = vsel %vm324, %v767, 0.0
        %788 = vadd.xlane.f32.xlu0 %v787
        %v789 = vpop.xlane.xlu0 %788
        %v790 = vsel %vm324, %v768, 0.0
        %791 = vadd.xlane.f32.xlu0 %v790
        %v792 = vpop.xlane.xlu0 %791
        %v793 = vrsqrt.pop %v771
        %v794 = vmul.f32 %v771, %v793
        %vm795 = vcmp.eq.f32.partialorder %v771, inf
        %v796 = vsel %vm795, %v771, %v794
        %vm797 = vcmp.eq.f32.partialorder %v771, 0.0
        %v798 = vand.u32 %v771, 2147483648
        %v799 = vsel %vm797, %v798, %v796
        %v800 = vrsqrt.pop %v774
        %v801 = vmul.f32 %v774, %v800
        %vm802 = vcmp.eq.f32.partialorder %v774, inf
        %v803 = vsel %vm802, %v774, %v801
        %vm804 = vcmp.eq.f32.partialorder %v774, 0.0
        %v805 = vand.u32 %v774, 2147483648
        %v806 = vsel %vm804, %v805, %v803
        %v807 = vrsqrt.pop %v777
        %v808 = vmul.f32 %v777, %v807
        %vm809 = vcmp.eq.f32.partialorder %v777, inf
        %v810 = vsel %vm809, %v777, %v808
        %vm811 = vcmp.eq.f32.partialorder %v777, 0.0
        %v812 = vand.u32 %v777, 2147483648
        %v813 = vsel %vm811, %v812, %v810
        %v814 = vrsqrt.pop %v780
        %v815 = vmul.f32 %v780, %v814
        %vm816 = vcmp.eq.f32.partialorder %v780, inf
        %v817 = vsel %vm816, %v780, %v815
        %vm818 = vcmp.eq.f32.partialorder %v780, 0.0
        %v819 = vand.u32 %v780, 2147483648
        %v820 = vsel %vm818, %v819, %v817
        %v821 = vrsqrt.pop %v783
        %v822 = vmul.f32 %v783, %v821
        %vm823 = vcmp.eq.f32.partialorder %v783, inf
        %v824 = vsel %vm823, %v783, %v822
        %vm825 = vcmp.eq.f32.partialorder %v783, 0.0
        %v826 = vand.u32 %v783, 2147483648
        %v827 = vsel %vm825, %v826, %v824
        %v828 = vrsqrt.pop %v786
        %v829 = vmul.f32 %v786, %v828
        %vm830 = vcmp.eq.f32.partialorder %v786, inf
        %v831 = vsel %vm830, %v786, %v829
        %vm832 = vcmp.eq.f32.partialorder %v786, 0.0
        %v833 = vand.u32 %v786, 2147483648
        %v834 = vsel %vm832, %v833, %v831
        %v835 = vrsqrt.pop %v789
        %v836 = vmul.f32 %v789, %v835
        %vm837 = vcmp.eq.f32.partialorder %v789, inf
        %v838 = vsel %vm837, %v789, %v836
        %vm839 = vcmp.eq.f32.partialorder %v789, 0.0
        %v840 = vand.u32 %v789, 2147483648
        %v841 = vsel %vm839, %v840, %v838
        %v842 = vrsqrt.pop %v792
        %v843 = vmul.f32 %v792, %v842
        %vm844 = vcmp.eq.f32.partialorder %v792, inf
        %v845 = vsel %vm844, %v792, %v843
        %vm846 = vcmp.eq.f32.partialorder %v792, 0.0
        %v847 = vand.u32 %v792, 2147483648
        %v848 = vsel %vm846, %v847, %v845
        %v849 = vmul.f32 %v799, %v409
        %v850 = vmul.f32 %v806, %v409
        %v851 = vmul.f32 %v813, %v409
        %v852 = vmul.f32 %v820, %v409
        %v853 = vmul.f32 %v827, %v409
        %v854 = vmul.f32 %v834, %v409
        %v855 = vmul.f32 %v841, %v409
        %v856 = vmul.f32 %v848, %v409
        %v857 = vadd.f32 %v849, %v423
        %v858 = vadd.f32 %v850, %v423
        %v859 = vadd.f32 %v851, %v423
        %v860 = vadd.f32 %v852, %v423
        %v861 = vadd.f32 %v853, %v423
        %v862 = vadd.f32 %v854, %v423
        %v863 = vadd.f32 %v855, %v423
        %v864 = vadd.f32 %v856, %v423
        %v865 = vmax.f32 %v857, 0.0
        %v866 = vmax.f32 %v858, 0.0
        %v867 = vmax.f32 %v859, 0.0
        %v868 = vmax.f32 %v860, 0.0
        %v869 = vmax.f32 %v861, 0.0
        %v870 = vmax.f32 %v862, 0.0
        %v871 = vmax.f32 %v863, 0.0
        %v872 = vmax.f32 %v864, 0.0
        %v873 = vadd.f32 %v729, %v865
        %v874 = vadd.f32 %v730, %v866
        %v875 = vadd.f32 %v731, %v867
        %v876 = vadd.f32 %v732, %v868
        %v877 = vadd.f32 %v733, %v869
        %v878 = vadd.f32 %v734, %v870
        %v879 = vadd.f32 %v735, %v871
        %v880 = vadd.f32 %v736, %v872
        %v881 = vlaneseq
        %v882 = vshrl.u32 %v881, 7
        %v883 = vsub.s32 4, %v882
        %v884 = vrot.slane %v282, %v883
        %v885 = vlaneseq
        %v886 = vshrl.u32 %v885, 7
        %v887 = vsub.s32 4, %v886
        %v888 = vrot.slane %v284, %v887
        %v889 = vlaneseq
        %v890 = vshrl.u32 %v889, 7
        %v891 = vsub.s32 4, %v890
        %v892 = vrot.slane %v286, %v891
        %v893 = vlaneseq
        %v894 = vshrl.u32 %v893, 7
        %v895 = vsub.s32 4, %v894
        %v896 = vrot.slane %v288, %v895
        %v897 = vsub.f32 %v282, %v884
        %v898 = vsub.f32 %v283, %v884
        %v899 = vsub.f32 %v284, %v888
        %v900 = vsub.f32 %v285, %v888
        %v901 = vsub.f32 %v286, %v892
        %v902 = vsub.f32 %v287, %v892
        %v903 = vsub.f32 %v288, %v896
        %v904 = vsub.f32 %v289, %v896
        %v905 = vmul.f32 %v897, %v897
        %v906 = vmul.f32 %v898, %v898
        %v907 = vmul.f32 %v899, %v899
        %v908 = vmul.f32 %v900, %v900
        %v909 = vmul.f32 %v901, %v901
        %v910 = vmul.f32 %v902, %v902
        %v911 = vmul.f32 %v903, %v903
        %v912 = vmul.f32 %v904, %v904
        %v913 = vsel %vm324, %v905, 0.0
        %914 = vadd.xlane.f32.xlu0 %v913
        %v915 = vpop.xlane.xlu0 %914
        %v916 = vsel %vm324, %v906, 0.0
        %917 = vadd.xlane.f32.xlu0 %v916
        %v918 = vpop.xlane.xlu0 %917
        %v919 = vsel %vm324, %v907, 0.0
        %920 = vadd.xlane.f32.xlu0 %v919
        %v921 = vpop.xlane.xlu0 %920
        %v922 = vsel %vm324, %v908, 0.0
        %923 = vadd.xlane.f32.xlu0 %v922
        %v924 = vpop.xlane.xlu0 %923
        %v925 = vsel %vm324, %v909, 0.0
        %926 = vadd.xlane.f32.xlu0 %v925
        %v927 = vpop.xlane.xlu0 %926
        %v928 = vsel %vm324, %v910, 0.0
        %929 = vadd.xlane.f32.xlu0 %v928
        %v930 = vpop.xlane.xlu0 %929
        %v931 = vsel %vm324, %v911, 0.0
        %932 = vadd.xlane.f32.xlu0 %v931
        %v933 = vpop.xlane.xlu0 %932
        %v934 = vsel %vm324, %v912, 0.0
        %935 = vadd.xlane.f32.xlu0 %v934
        %v936 = vpop.xlane.xlu0 %935
        %v937 = vrsqrt.pop %v915
        %v938 = vmul.f32 %v915, %v937
        %vm939 = vcmp.eq.f32.partialorder %v915, inf
        %v940 = vsel %vm939, %v915, %v938
        %vm941 = vcmp.eq.f32.partialorder %v915, 0.0
        %v942 = vand.u32 %v915, 2147483648
        %v943 = vsel %vm941, %v942, %v940
        %v944 = vrsqrt.pop %v918
        %v945 = vmul.f32 %v918, %v944
        %vm946 = vcmp.eq.f32.partialorder %v918, inf
        %v947 = vsel %vm946, %v918, %v945
        %vm948 = vcmp.eq.f32.partialorder %v918, 0.0
        %v949 = vand.u32 %v918, 2147483648
        %v950 = vsel %vm948, %v949, %v947
        %v951 = vrsqrt.pop %v921
        %v952 = vmul.f32 %v921, %v951
        %vm953 = vcmp.eq.f32.partialorder %v921, inf
        %v954 = vsel %vm953, %v921, %v952
        %vm955 = vcmp.eq.f32.partialorder %v921, 0.0
        %v956 = vand.u32 %v921, 2147483648
        %v957 = vsel %vm955, %v956, %v954
        %v958 = vrsqrt.pop %v924
        %v959 = vmul.f32 %v924, %v958
        %vm960 = vcmp.eq.f32.partialorder %v924, inf
        %v961 = vsel %vm960, %v924, %v959
        %vm962 = vcmp.eq.f32.partialorder %v924, 0.0
        %v963 = vand.u32 %v924, 2147483648
        %v964 = vsel %vm962, %v963, %v961
        %v965 = vrsqrt.pop %v927
        %v966 = vmul.f32 %v927, %v965
        %vm967 = vcmp.eq.f32.partialorder %v927, inf
        %v968 = vsel %vm967, %v927, %v966
        %vm969 = vcmp.eq.f32.partialorder %v927, 0.0
        %v970 = vand.u32 %v927, 2147483648
        %v971 = vsel %vm969, %v970, %v968
        %v972 = vrsqrt.pop %v930
        %v973 = vmul.f32 %v930, %v972
        %vm974 = vcmp.eq.f32.partialorder %v930, inf
        %v975 = vsel %vm974, %v930, %v973
        %vm976 = vcmp.eq.f32.partialorder %v930, 0.0
        %v977 = vand.u32 %v930, 2147483648
        %v978 = vsel %vm976, %v977, %v975
        %v979 = vrsqrt.pop %v933
        %v980 = vmul.f32 %v933, %v979
        %vm981 = vcmp.eq.f32.partialorder %v933, inf
        %v982 = vsel %vm981, %v933, %v980
        %vm983 = vcmp.eq.f32.partialorder %v933, 0.0
        %v984 = vand.u32 %v933, 2147483648
        %v985 = vsel %vm983, %v984, %v982
        %v986 = vrsqrt.pop %v936
        %v987 = vmul.f32 %v936, %v986
        %vm988 = vcmp.eq.f32.partialorder %v936, inf
        %v989 = vsel %vm988, %v936, %v987
        %vm990 = vcmp.eq.f32.partialorder %v936, 0.0
        %v991 = vand.u32 %v936, 2147483648
        %v992 = vsel %vm990, %v991, %v989
        %v993 = vmul.f32 %v943, %v409
        %v994 = vmul.f32 %v950, %v409
        %v995 = vmul.f32 %v957, %v409
        %v996 = vmul.f32 %v964, %v409
        %v997 = vmul.f32 %v971, %v409
        %v998 = vmul.f32 %v978, %v409
        %v999 = vmul.f32 %v985, %v409
        %v1000 = vmul.f32 %v992, %v409
        %v1001 = vadd.f32 %v993, %v423
        %v1002 = vadd.f32 %v994, %v423
        %v1003 = vadd.f32 %v995, %v423
        %v1004 = vadd.f32 %v996, %v423
        %v1005 = vadd.f32 %v997, %v423
        %v1006 = vadd.f32 %v998, %v423
        %v1007 = vadd.f32 %v999, %v423
        %v1008 = vadd.f32 %v1000, %v423
        %v1009 = vmax.f32 %v1001, 0.0
        %v1010 = vmax.f32 %v1002, 0.0
        %v1011 = vmax.f32 %v1003, 0.0
        %v1012 = vmax.f32 %v1004, 0.0
        %v1013 = vmax.f32 %v1005, 0.0
        %v1014 = vmax.f32 %v1006, 0.0
        %v1015 = vmax.f32 %v1007, 0.0
        %v1016 = vmax.f32 %v1008, 0.0
        %v1017 = vadd.f32 %v873, %v1009
        %v1018 = vadd.f32 %v874, %v1010
        %v1019 = vadd.f32 %v875, %v1011
        %v1020 = vadd.f32 %v876, %v1012
        %v1021 = vadd.f32 %v877, %v1013
        %v1022 = vadd.f32 %v878, %v1014
        %v1023 = vadd.f32 %v879, %v1015
        %v1024 = vadd.f32 %v880, %v1016
        %v1025 = vlaneseq
        %v1026 = vshrl.u32 %v1025, 7
        %v1027 = vsub.s32 5, %v1026
        %v1028 = vrot.slane %v282, %v1027
        %v1029 = vlaneseq
        %v1030 = vshrl.u32 %v1029, 7
        %v1031 = vsub.s32 5, %v1030
        %v1032 = vrot.slane %v284, %v1031
        %v1033 = vlaneseq
        %v1034 = vshrl.u32 %v1033, 7
        %v1035 = vsub.s32 5, %v1034
        %v1036 = vrot.slane %v286, %v1035
        %v1037 = vlaneseq
        %v1038 = vshrl.u32 %v1037, 7
        %v1039 = vsub.s32 5, %v1038
        %v1040 = vrot.slane %v288, %v1039
        %v1041 = vsub.f32 %v282, %v1028
        %v1042 = vsub.f32 %v283, %v1028
        %v1043 = vsub.f32 %v284, %v1032
        %v1044 = vsub.f32 %v285, %v1032
        %v1045 = vsub.f32 %v286, %v1036
        %v1046 = vsub.f32 %v287, %v1036
        %v1047 = vsub.f32 %v288, %v1040
        %v1048 = vsub.f32 %v289, %v1040
        %v1049 = vmul.f32 %v1041, %v1041
        %v1050 = vmul.f32 %v1042, %v1042
        %v1051 = vmul.f32 %v1043, %v1043
        %v1052 = vmul.f32 %v1044, %v1044
        %v1053 = vmul.f32 %v1045, %v1045
        %v1054 = vmul.f32 %v1046, %v1046
        %v1055 = vmul.f32 %v1047, %v1047
        %v1056 = vmul.f32 %v1048, %v1048
        %v1057 = vsel %vm324, %v1049, 0.0
        %1058 = vadd.xlane.f32.xlu0 %v1057
        %v1059 = vpop.xlane.xlu0 %1058
        %v1060 = vsel %vm324, %v1050, 0.0
        %1061 = vadd.xlane.f32.xlu0 %v1060
        %v1062 = vpop.xlane.xlu0 %1061
        %v1063 = vsel %vm324, %v1051, 0.0
        %1064 = vadd.xlane.f32.xlu0 %v1063
        %v1065 = vpop.xlane.xlu0 %1064
        %v1066 = vsel %vm324, %v1052, 0.0
        %1067 = vadd.xlane.f32.xlu0 %v1066
        %v1068 = vpop.xlane.xlu0 %1067
        %v1069 = vsel %vm324, %v1053, 0.0
        %1070 = vadd.xlane.f32.xlu0 %v1069
        %v1071 = vpop.xlane.xlu0 %1070
        %v1072 = vsel %vm324, %v1054, 0.0
        %1073 = vadd.xlane.f32.xlu0 %v1072
        %v1074 = vpop.xlane.xlu0 %1073
        %v1075 = vsel %vm324, %v1055, 0.0
        %1076 = vadd.xlane.f32.xlu0 %v1075
        %v1077 = vpop.xlane.xlu0 %1076
        %v1078 = vsel %vm324, %v1056, 0.0
        %1079 = vadd.xlane.f32.xlu0 %v1078
        %v1080 = vpop.xlane.xlu0 %1079
        %v1081 = vrsqrt.pop %v1059
        %v1082 = vmul.f32 %v1059, %v1081
        %vm1083 = vcmp.eq.f32.partialorder %v1059, inf
        %v1084 = vsel %vm1083, %v1059, %v1082
        %vm1085 = vcmp.eq.f32.partialorder %v1059, 0.0
        %v1086 = vand.u32 %v1059, 2147483648
        %v1087 = vsel %vm1085, %v1086, %v1084
        %v1088 = vrsqrt.pop %v1062
        %v1089 = vmul.f32 %v1062, %v1088
        %vm1090 = vcmp.eq.f32.partialorder %v1062, inf
        %v1091 = vsel %vm1090, %v1062, %v1089
        %vm1092 = vcmp.eq.f32.partialorder %v1062, 0.0
        %v1093 = vand.u32 %v1062, 2147483648
        %v1094 = vsel %vm1092, %v1093, %v1091
        %v1095 = vrsqrt.pop %v1065
        %v1096 = vmul.f32 %v1065, %v1095
        %vm1097 = vcmp.eq.f32.partialorder %v1065, inf
        %v1098 = vsel %vm1097, %v1065, %v1096
        %vm1099 = vcmp.eq.f32.partialorder %v1065, 0.0
        %v1100 = vand.u32 %v1065, 2147483648
        %v1101 = vsel %vm1099, %v1100, %v1098
        %v1102 = vrsqrt.pop %v1068
        %v1103 = vmul.f32 %v1068, %v1102
        %vm1104 = vcmp.eq.f32.partialorder %v1068, inf
        %v1105 = vsel %vm1104, %v1068, %v1103
        %vm1106 = vcmp.eq.f32.partialorder %v1068, 0.0
        %v1107 = vand.u32 %v1068, 2147483648
        %v1108 = vsel %vm1106, %v1107, %v1105
        %v1109 = vrsqrt.pop %v1071
        %v1110 = vmul.f32 %v1071, %v1109
        %vm1111 = vcmp.eq.f32.partialorder %v1071, inf
        %v1112 = vsel %vm1111, %v1071, %v1110
        %vm1113 = vcmp.eq.f32.partialorder %v1071, 0.0
        %v1114 = vand.u32 %v1071, 2147483648
        %v1115 = vsel %vm1113, %v1114, %v1112
        %v1116 = vrsqrt.pop %v1074
        %v1117 = vmul.f32 %v1074, %v1116
        %vm1118 = vcmp.eq.f32.partialorder %v1074, inf
        %v1119 = vsel %vm1118, %v1074, %v1117
        %vm1120 = vcmp.eq.f32.partialorder %v1074, 0.0
        %v1121 = vand.u32 %v1074, 2147483648
        %v1122 = vsel %vm1120, %v1121, %v1119
        %v1123 = vrsqrt.pop %v1077
        %v1124 = vmul.f32 %v1077, %v1123
        %vm1125 = vcmp.eq.f32.partialorder %v1077, inf
        %v1126 = vsel %vm1125, %v1077, %v1124
        %vm1127 = vcmp.eq.f32.partialorder %v1077, 0.0
        %v1128 = vand.u32 %v1077, 2147483648
        %v1129 = vsel %vm1127, %v1128, %v1126
        %v1130 = vrsqrt.pop %v1080
        %v1131 = vmul.f32 %v1080, %v1130
        %vm1132 = vcmp.eq.f32.partialorder %v1080, inf
        %v1133 = vsel %vm1132, %v1080, %v1131
        %vm1134 = vcmp.eq.f32.partialorder %v1080, 0.0
        %v1135 = vand.u32 %v1080, 2147483648
        %v1136 = vsel %vm1134, %v1135, %v1133
        %v1137 = vmul.f32 %v1087, %v409
        %v1138 = vmul.f32 %v1094, %v409
        %v1139 = vmul.f32 %v1101, %v409
        %v1140 = vmul.f32 %v1108, %v409
        %v1141 = vmul.f32 %v1115, %v409
        %v1142 = vmul.f32 %v1122, %v409
        %v1143 = vmul.f32 %v1129, %v409
        %v1144 = vmul.f32 %v1136, %v409
        %v1145 = vadd.f32 %v1137, %v423
        %v1146 = vadd.f32 %v1138, %v423
        %v1147 = vadd.f32 %v1139, %v423
        %v1148 = vadd.f32 %v1140, %v423
        %v1149 = vadd.f32 %v1141, %v423
        %v1150 = vadd.f32 %v1142, %v423
        %v1151 = vadd.f32 %v1143, %v423
        %v1152 = vadd.f32 %v1144, %v423
        %v1153 = vmax.f32 %v1145, 0.0
        %v1154 = vmax.f32 %v1146, 0.0
        %v1155 = vmax.f32 %v1147, 0.0
        %v1156 = vmax.f32 %v1148, 0.0
        %v1157 = vmax.f32 %v1149, 0.0
        %v1158 = vmax.f32 %v1150, 0.0
        %v1159 = vmax.f32 %v1151, 0.0
        %v1160 = vmax.f32 %v1152, 0.0
        %v1161 = vadd.f32 %v1017, %v1153
        %v1162 = vadd.f32 %v1018, %v1154
        %v1163 = vadd.f32 %v1019, %v1155
        %v1164 = vadd.f32 %v1020, %v1156
        %v1165 = vadd.f32 %v1021, %v1157
        %v1166 = vadd.f32 %v1022, %v1158
        %v1167 = vadd.f32 %v1023, %v1159
        %v1168 = vadd.f32 %v1024, %v1160
        %v1169 = vlaneseq
        %v1170 = vshrl.u32 %v1169, 7
        %v1171 = vsub.s32 6, %v1170
        %v1172 = vrot.slane %v282, %v1171
        %v1173 = vlaneseq
        %v1174 = vshrl.u32 %v1173, 7
        %v1175 = vsub.s32 6, %v1174
        %v1176 = vrot.slane %v284, %v1175
        %v1177 = vlaneseq
        %v1178 = vshrl.u32 %v1177, 7
        %v1179 = vsub.s32 6, %v1178
        %v1180 = vrot.slane %v286, %v1179
        %v1181 = vlaneseq
        %v1182 = vshrl.u32 %v1181, 7
        %v1183 = vsub.s32 6, %v1182
        %v1184 = vrot.slane %v288, %v1183
        %v1185 = vsub.f32 %v282, %v1172
        %v1186 = vsub.f32 %v283, %v1172
        %v1187 = vsub.f32 %v284, %v1176
        %v1188 = vsub.f32 %v285, %v1176
        %v1189 = vsub.f32 %v286, %v1180
        %v1190 = vsub.f32 %v287, %v1180
        %v1191 = vsub.f32 %v288, %v1184
        %v1192 = vsub.f32 %v289, %v1184
        %v1193 = vmul.f32 %v1185, %v1185
        %v1194 = vmul.f32 %v1186, %v1186
        %v1195 = vmul.f32 %v1187, %v1187
        %v1196 = vmul.f32 %v1188, %v1188
        %v1197 = vmul.f32 %v1189, %v1189
        %v1198 = vmul.f32 %v1190, %v1190
        %v1199 = vmul.f32 %v1191, %v1191
        %v1200 = vmul.f32 %v1192, %v1192
        %v1201 = vsel %vm324, %v1193, 0.0
        %1202 = vadd.xlane.f32.xlu0 %v1201
        %v1203 = vpop.xlane.xlu0 %1202
        %v1204 = vsel %vm324, %v1194, 0.0
        %1205 = vadd.xlane.f32.xlu0 %v1204
        %v1206 = vpop.xlane.xlu0 %1205
        %v1207 = vsel %vm324, %v1195, 0.0
        %1208 = vadd.xlane.f32.xlu0 %v1207
        %v1209 = vpop.xlane.xlu0 %1208
        %v1210 = vsel %vm324, %v1196, 0.0
        %1211 = vadd.xlane.f32.xlu0 %v1210
        %v1212 = vpop.xlane.xlu0 %1211
        %v1213 = vsel %vm324, %v1197, 0.0
        %1214 = vadd.xlane.f32.xlu0 %v1213
        %v1215 = vpop.xlane.xlu0 %1214
        %v1216 = vsel %vm324, %v1198, 0.0
        %1217 = vadd.xlane.f32.xlu0 %v1216
        %v1218 = vpop.xlane.xlu0 %1217
        %v1219 = vsel %vm324, %v1199, 0.0
        %1220 = vadd.xlane.f32.xlu0 %v1219
        %v1221 = vpop.xlane.xlu0 %1220
        %v1222 = vsel %vm324, %v1200, 0.0
        %1223 = vadd.xlane.f32.xlu0 %v1222
        %v1224 = vpop.xlane.xlu0 %1223
        %v1225 = vrsqrt.pop %v1203
        %v1226 = vmul.f32 %v1203, %v1225
        %vm1227 = vcmp.eq.f32.partialorder %v1203, inf
        %v1228 = vsel %vm1227, %v1203, %v1226
        %vm1229 = vcmp.eq.f32.partialorder %v1203, 0.0
        %v1230 = vand.u32 %v1203, 2147483648
        %v1231 = vsel %vm1229, %v1230, %v1228
        %v1232 = vrsqrt.pop %v1206
        %v1233 = vmul.f32 %v1206, %v1232
        %vm1234 = vcmp.eq.f32.partialorder %v1206, inf
        %v1235 = vsel %vm1234, %v1206, %v1233
        %vm1236 = vcmp.eq.f32.partialorder %v1206, 0.0
        %v1237 = vand.u32 %v1206, 2147483648
        %v1238 = vsel %vm1236, %v1237, %v1235
        %v1239 = vrsqrt.pop %v1209
        %v1240 = vmul.f32 %v1209, %v1239
        %vm1241 = vcmp.eq.f32.partialorder %v1209, inf
        %v1242 = vsel %vm1241, %v1209, %v1240
        %vm1243 = vcmp.eq.f32.partialorder %v1209, 0.0
        %v1244 = vand.u32 %v1209, 2147483648
        %v1245 = vsel %vm1243, %v1244, %v1242
        %v1246 = vrsqrt.pop %v1212
        %v1247 = vmul.f32 %v1212, %v1246
        %vm1248 = vcmp.eq.f32.partialorder %v1212, inf
        %v1249 = vsel %vm1248, %v1212, %v1247
        %vm1250 = vcmp.eq.f32.partialorder %v1212, 0.0
        %v1251 = vand.u32 %v1212, 2147483648
        %v1252 = vsel %vm1250, %v1251, %v1249
        %v1253 = vrsqrt.pop %v1215
        %v1254 = vmul.f32 %v1215, %v1253
        %vm1255 = vcmp.eq.f32.partialorder %v1215, inf
        %v1256 = vsel %vm1255, %v1215, %v1254
        %vm1257 = vcmp.eq.f32.partialorder %v1215, 0.0
        %v1258 = vand.u32 %v1215, 2147483648
        %v1259 = vsel %vm1257, %v1258, %v1256
        %v1260 = vrsqrt.pop %v1218
        %v1261 = vmul.f32 %v1218, %v1260
        %vm1262 = vcmp.eq.f32.partialorder %v1218, inf
        %v1263 = vsel %vm1262, %v1218, %v1261
        %vm1264 = vcmp.eq.f32.partialorder %v1218, 0.0
        %v1265 = vand.u32 %v1218, 2147483648
        %v1266 = vsel %vm1264, %v1265, %v1263
        %v1267 = vrsqrt.pop %v1221
        %v1268 = vmul.f32 %v1221, %v1267
        %vm1269 = vcmp.eq.f32.partialorder %v1221, inf
        %v1270 = vsel %vm1269, %v1221, %v1268
        %vm1271 = vcmp.eq.f32.partialorder %v1221, 0.0
        %v1272 = vand.u32 %v1221, 2147483648
        %v1273 = vsel %vm1271, %v1272, %v1270
        %v1274 = vrsqrt.pop %v1224
        %v1275 = vmul.f32 %v1224, %v1274
        %vm1276 = vcmp.eq.f32.partialorder %v1224, inf
        %v1277 = vsel %vm1276, %v1224, %v1275
        %vm1278 = vcmp.eq.f32.partialorder %v1224, 0.0
        %v1279 = vand.u32 %v1224, 2147483648
        %v1280 = vsel %vm1278, %v1279, %v1277
        %v1281 = vmul.f32 %v1231, %v409
        %v1282 = vmul.f32 %v1238, %v409
        %v1283 = vmul.f32 %v1245, %v409
        %v1284 = vmul.f32 %v1252, %v409
        %v1285 = vmul.f32 %v1259, %v409
        %v1286 = vmul.f32 %v1266, %v409
        %v1287 = vmul.f32 %v1273, %v409
        %v1288 = vmul.f32 %v1280, %v409
        %v1289 = vadd.f32 %v1281, %v423
        %v1290 = vadd.f32 %v1282, %v423
        %v1291 = vadd.f32 %v1283, %v423
        %v1292 = vadd.f32 %v1284, %v423
        %v1293 = vadd.f32 %v1285, %v423
        %v1294 = vadd.f32 %v1286, %v423
        %v1295 = vadd.f32 %v1287, %v423
        %v1296 = vadd.f32 %v1288, %v423
        %v1297 = vmax.f32 %v1289, 0.0
        %v1298 = vmax.f32 %v1290, 0.0
        %v1299 = vmax.f32 %v1291, 0.0
        %v1300 = vmax.f32 %v1292, 0.0
        %v1301 = vmax.f32 %v1293, 0.0
        %v1302 = vmax.f32 %v1294, 0.0
        %v1303 = vmax.f32 %v1295, 0.0
        %v1304 = vmax.f32 %v1296, 0.0
        %v1305 = vadd.f32 %v1161, %v1297
        %v1306 = vadd.f32 %v1162, %v1298
        %v1307 = vadd.f32 %v1163, %v1299
        %v1308 = vadd.f32 %v1164, %v1300
        %v1309 = vadd.f32 %v1165, %v1301
        %v1310 = vadd.f32 %v1166, %v1302
        %v1311 = vadd.f32 %v1167, %v1303
        %v1312 = vadd.f32 %v1168, %v1304
        %v1313 = vlaneseq
        %v1314 = vshrl.u32 %v1313, 7
        %v1315 = vsub.s32 7, %v1314
        %v1316 = vrot.slane %v282, %v1315
        %v1317 = vlaneseq
        %v1318 = vshrl.u32 %v1317, 7
        %v1319 = vsub.s32 7, %v1318
        %v1320 = vrot.slane %v284, %v1319
        %v1321 = vlaneseq
        %v1322 = vshrl.u32 %v1321, 7
        %v1323 = vsub.s32 7, %v1322
        %v1324 = vrot.slane %v286, %v1323
        %v1325 = vlaneseq
        %v1326 = vshrl.u32 %v1325, 7
        %v1327 = vsub.s32 7, %v1326
        %v1328 = vrot.slane %v288, %v1327
        %v1329 = vsub.f32 %v282, %v1316
        %v1330 = vsub.f32 %v283, %v1316
        %v1331 = vsub.f32 %v284, %v1320
        %v1332 = vsub.f32 %v285, %v1320
        %v1333 = vsub.f32 %v286, %v1324
        %v1334 = vsub.f32 %v287, %v1324
        %v1335 = vsub.f32 %v288, %v1328
        %v1336 = vsub.f32 %v289, %v1328
        %v1337 = vmul.f32 %v1329, %v1329
        %v1338 = vmul.f32 %v1330, %v1330
        %v1339 = vmul.f32 %v1331, %v1331
        %v1340 = vmul.f32 %v1332, %v1332
        %v1341 = vmul.f32 %v1333, %v1333
        %v1342 = vmul.f32 %v1334, %v1334
        %v1343 = vmul.f32 %v1335, %v1335
        %v1344 = vmul.f32 %v1336, %v1336
        %v1345 = vsel %vm324, %v1337, 0.0
        %1346 = vadd.xlane.f32.xlu0 %v1345
        %v1347 = vpop.xlane.xlu0 %1346
        %v1348 = vsel %vm324, %v1338, 0.0
        %1349 = vadd.xlane.f32.xlu0 %v1348
        %v1350 = vpop.xlane.xlu0 %1349
        %v1351 = vsel %vm324, %v1339, 0.0
        %1352 = vadd.xlane.f32.xlu0 %v1351
        %v1353 = vpop.xlane.xlu0 %1352
        %v1354 = vsel %vm324, %v1340, 0.0
        %1355 = vadd.xlane.f32.xlu0 %v1354
        %v1356 = vpop.xlane.xlu0 %1355
        %v1357 = vsel %vm324, %v1341, 0.0
        %1358 = vadd.xlane.f32.xlu0 %v1357
        %v1359 = vpop.xlane.xlu0 %1358
        %v1360 = vsel %vm324, %v1342, 0.0
        %1361 = vadd.xlane.f32.xlu0 %v1360
        %v1362 = vpop.xlane.xlu0 %1361
        %v1363 = vsel %vm324, %v1343, 0.0
        %1364 = vadd.xlane.f32.xlu0 %v1363
        %v1365 = vpop.xlane.xlu0 %1364
        %v1366 = vsel %vm324, %v1344, 0.0
        %1367 = vadd.xlane.f32.xlu0 %v1366
        %v1368 = vpop.xlane.xlu0 %1367
        %v1369 = vrsqrt.pop %v1347
        %v1370 = vmul.f32 %v1347, %v1369
        %vm1371 = vcmp.eq.f32.partialorder %v1347, inf
        %v1372 = vsel %vm1371, %v1347, %v1370
        %vm1373 = vcmp.eq.f32.partialorder %v1347, 0.0
        %v1374 = vand.u32 %v1347, 2147483648
        %v1375 = vsel %vm1373, %v1374, %v1372
        %v1376 = vrsqrt.pop %v1350
        %v1377 = vmul.f32 %v1350, %v1376
        %vm1378 = vcmp.eq.f32.partialorder %v1350, inf
        %v1379 = vsel %vm1378, %v1350, %v1377
        %vm1380 = vcmp.eq.f32.partialorder %v1350, 0.0
        %v1381 = vand.u32 %v1350, 2147483648
        %v1382 = vsel %vm1380, %v1381, %v1379
        %v1383 = vrsqrt.pop %v1353
        %v1384 = vmul.f32 %v1353, %v1383
        %vm1385 = vcmp.eq.f32.partialorder %v1353, inf
        %v1386 = vsel %vm1385, %v1353, %v1384
        %vm1387 = vcmp.eq.f32.partialorder %v1353, 0.0
        %v1388 = vand.u32 %v1353, 2147483648
        %v1389 = vsel %vm1387, %v1388, %v1386
        %v1390 = vrsqrt.pop %v1356
        %v1391 = vmul.f32 %v1356, %v1390
        %vm1392 = vcmp.eq.f32.partialorder %v1356, inf
        %v1393 = vsel %vm1392, %v1356, %v1391
        %vm1394 = vcmp.eq.f32.partialorder %v1356, 0.0
        %v1395 = vand.u32 %v1356, 2147483648
        %v1396 = vsel %vm1394, %v1395, %v1393
        %v1397 = vrsqrt.pop %v1359
        %v1398 = vmul.f32 %v1359, %v1397
        %vm1399 = vcmp.eq.f32.partialorder %v1359, inf
        %v1400 = vsel %vm1399, %v1359, %v1398
        %vm1401 = vcmp.eq.f32.partialorder %v1359, 0.0
        %v1402 = vand.u32 %v1359, 2147483648
        %v1403 = vsel %vm1401, %v1402, %v1400
        %v1404 = vrsqrt.pop %v1362
        %v1405 = vmul.f32 %v1362, %v1404
        %vm1406 = vcmp.eq.f32.partialorder %v1362, inf
        %v1407 = vsel %vm1406, %v1362, %v1405
        %vm1408 = vcmp.eq.f32.partialorder %v1362, 0.0
        %v1409 = vand.u32 %v1362, 2147483648
        %v1410 = vsel %vm1408, %v1409, %v1407
        %v1411 = vrsqrt.pop %v1365
        %v1412 = vmul.f32 %v1365, %v1411
        %vm1413 = vcmp.eq.f32.partialorder %v1365, inf
        %v1414 = vsel %vm1413, %v1365, %v1412
        %vm1415 = vcmp.eq.f32.partialorder %v1365, 0.0
        %v1416 = vand.u32 %v1365, 2147483648
        %v1417 = vsel %vm1415, %v1416, %v1414
        %v1418 = vrsqrt.pop %v1368
        %v1419 = vmul.f32 %v1368, %v1418
        %vm1420 = vcmp.eq.f32.partialorder %v1368, inf
        %v1421 = vsel %vm1420, %v1368, %v1419
        %vm1422 = vcmp.eq.f32.partialorder %v1368, 0.0
        %v1423 = vand.u32 %v1368, 2147483648
        %v1424 = vsel %vm1422, %v1423, %v1421
        %v1425 = vmul.f32 %v1375, %v409
        %v1426 = vmul.f32 %v1382, %v409
        %v1427 = vmul.f32 %v1389, %v409
        %v1428 = vmul.f32 %v1396, %v409
        %v1429 = vmul.f32 %v1403, %v409
        %v1430 = vmul.f32 %v1410, %v409
        %v1431 = vmul.f32 %v1417, %v409
        %v1432 = vmul.f32 %v1424, %v409
        %v1433 = vadd.f32 %v1425, %v423
        %v1434 = vadd.f32 %v1426, %v423
        %v1435 = vadd.f32 %v1427, %v423
        %v1436 = vadd.f32 %v1428, %v423
        %v1437 = vadd.f32 %v1429, %v423
        %v1438 = vadd.f32 %v1430, %v423
        %v1439 = vadd.f32 %v1431, %v423
        %v1440 = vadd.f32 %v1432, %v423
        %v1441 = vmax.f32 %v1433, 0.0
        %v1442 = vmax.f32 %v1434, 0.0
        %v1443 = vmax.f32 %v1435, 0.0
        %v1444 = vmax.f32 %v1436, 0.0
        %v1445 = vmax.f32 %v1437, 0.0
        %v1446 = vmax.f32 %v1438, 0.0
        %v1447 = vmax.f32 %v1439, 0.0
        %v1448 = vmax.f32 %v1440, 0.0
        %v1449 = vadd.f32 %v1305, %v1441
        %v1450 = vadd.f32 %v1306, %v1442
        %v1451 = vadd.f32 %v1307, %v1443
        %v1452 = vadd.f32 %v1308, %v1444
        %v1453 = vadd.f32 %v1309, %v1445
        %v1454 = vadd.f32 %v1310, %v1446
        %v1455 = vadd.f32 %v1311, %v1447
        %v1456 = vadd.f32 %v1312, %v1448
        %v1457 = vlaneseq
        %v1458 = vshrl.u32 %v1457, 7
        %v1459 = vsub.s32 0, %v1458
        %v1460 = vrot.slane %v283, %v1459
        %v1461 = vlaneseq
        %v1462 = vshrl.u32 %v1461, 7
        %v1463 = vsub.s32 0, %v1462
        %v1464 = vrot.slane %v285, %v1463
        %v1465 = vlaneseq
        %v1466 = vshrl.u32 %v1465, 7
        %v1467 = vsub.s32 0, %v1466
        %v1468 = vrot.slane %v287, %v1467
        %v1469 = vlaneseq
        %v1470 = vshrl.u32 %v1469, 7
        %v1471 = vsub.s32 0, %v1470
        %v1472 = vrot.slane %v289, %v1471
        %v1473 = vsub.f32 %v282, %v1460
        %v1474 = vsub.f32 %v283, %v1460
        %v1475 = vsub.f32 %v284, %v1464
        %v1476 = vsub.f32 %v285, %v1464
        %v1477 = vsub.f32 %v286, %v1468
        %v1478 = vsub.f32 %v287, %v1468
        %v1479 = vsub.f32 %v288, %v1472
        %v1480 = vsub.f32 %v289, %v1472
        %v1481 = vmul.f32 %v1473, %v1473
        %v1482 = vmul.f32 %v1474, %v1474
        %v1483 = vmul.f32 %v1475, %v1475
        %v1484 = vmul.f32 %v1476, %v1476
        %v1485 = vmul.f32 %v1477, %v1477
        %v1486 = vmul.f32 %v1478, %v1478
        %v1487 = vmul.f32 %v1479, %v1479
        %v1488 = vmul.f32 %v1480, %v1480
        %v1489 = vsel %vm324, %v1481, 0.0
        %1490 = vadd.xlane.f32.xlu0 %v1489
        %v1491 = vpop.xlane.xlu0 %1490
        %v1492 = vsel %vm324, %v1482, 0.0
        %1493 = vadd.xlane.f32.xlu0 %v1492
        %v1494 = vpop.xlane.xlu0 %1493
        %v1495 = vsel %vm324, %v1483, 0.0
        %1496 = vadd.xlane.f32.xlu0 %v1495
        %v1497 = vpop.xlane.xlu0 %1496
        %v1498 = vsel %vm324, %v1484, 0.0
        %1499 = vadd.xlane.f32.xlu0 %v1498
        %v1500 = vpop.xlane.xlu0 %1499
        %v1501 = vsel %vm324, %v1485, 0.0
        %1502 = vadd.xlane.f32.xlu0 %v1501
        %v1503 = vpop.xlane.xlu0 %1502
        %v1504 = vsel %vm324, %v1486, 0.0
        %1505 = vadd.xlane.f32.xlu0 %v1504
        %v1506 = vpop.xlane.xlu0 %1505
        %v1507 = vsel %vm324, %v1487, 0.0
        %1508 = vadd.xlane.f32.xlu0 %v1507
        %v1509 = vpop.xlane.xlu0 %1508
        %v1510 = vsel %vm324, %v1488, 0.0
        %1511 = vadd.xlane.f32.xlu0 %v1510
        %v1512 = vpop.xlane.xlu0 %1511
        %v1513 = vrsqrt.pop %v1491
        %v1514 = vmul.f32 %v1491, %v1513
        %vm1515 = vcmp.eq.f32.partialorder %v1491, inf
        %v1516 = vsel %vm1515, %v1491, %v1514
        %vm1517 = vcmp.eq.f32.partialorder %v1491, 0.0
        %v1518 = vand.u32 %v1491, 2147483648
        %v1519 = vsel %vm1517, %v1518, %v1516
        %v1520 = vrsqrt.pop %v1494
        %v1521 = vmul.f32 %v1494, %v1520
        %vm1522 = vcmp.eq.f32.partialorder %v1494, inf
        %v1523 = vsel %vm1522, %v1494, %v1521
        %vm1524 = vcmp.eq.f32.partialorder %v1494, 0.0
        %v1525 = vand.u32 %v1494, 2147483648
        %v1526 = vsel %vm1524, %v1525, %v1523
        %v1527 = vrsqrt.pop %v1497
        %v1528 = vmul.f32 %v1497, %v1527
        %vm1529 = vcmp.eq.f32.partialorder %v1497, inf
        %v1530 = vsel %vm1529, %v1497, %v1528
        %vm1531 = vcmp.eq.f32.partialorder %v1497, 0.0
        %v1532 = vand.u32 %v1497, 2147483648
        %v1533 = vsel %vm1531, %v1532, %v1530
        %v1534 = vrsqrt.pop %v1500
        %v1535 = vmul.f32 %v1500, %v1534
        %vm1536 = vcmp.eq.f32.partialorder %v1500, inf
        %v1537 = vsel %vm1536, %v1500, %v1535
        %vm1538 = vcmp.eq.f32.partialorder %v1500, 0.0
        %v1539 = vand.u32 %v1500, 2147483648
        %v1540 = vsel %vm1538, %v1539, %v1537
        %v1541 = vrsqrt.pop %v1503
        %v1542 = vmul.f32 %v1503, %v1541
        %vm1543 = vcmp.eq.f32.partialorder %v1503, inf
        %v1544 = vsel %vm1543, %v1503, %v1542
        %vm1545 = vcmp.eq.f32.partialorder %v1503, 0.0
        %v1546 = vand.u32 %v1503, 2147483648
        %v1547 = vsel %vm1545, %v1546, %v1544
        %v1548 = vrsqrt.pop %v1506
        %v1549 = vmul.f32 %v1506, %v1548
        %vm1550 = vcmp.eq.f32.partialorder %v1506, inf
        %v1551 = vsel %vm1550, %v1506, %v1549
        %vm1552 = vcmp.eq.f32.partialorder %v1506, 0.0
        %v1553 = vand.u32 %v1506, 2147483648
        %v1554 = vsel %vm1552, %v1553, %v1551
        %v1555 = vrsqrt.pop %v1509
        %v1556 = vmul.f32 %v1509, %v1555
        %vm1557 = vcmp.eq.f32.partialorder %v1509, inf
        %v1558 = vsel %vm1557, %v1509, %v1556
        %vm1559 = vcmp.eq.f32.partialorder %v1509, 0.0
        %v1560 = vand.u32 %v1509, 2147483648
        %v1561 = vsel %vm1559, %v1560, %v1558
        %v1562 = vrsqrt.pop %v1512
        %v1563 = vmul.f32 %v1512, %v1562
        %vm1564 = vcmp.eq.f32.partialorder %v1512, inf
        %v1565 = vsel %vm1564, %v1512, %v1563
        %vm1566 = vcmp.eq.f32.partialorder %v1512, 0.0
        %v1567 = vand.u32 %v1512, 2147483648
        %v1568 = vsel %vm1566, %v1567, %v1565
        %v1569 = vmul.f32 %v1519, %v409
        %v1570 = vmul.f32 %v1526, %v409
        %v1571 = vmul.f32 %v1533, %v409
        %v1572 = vmul.f32 %v1540, %v409
        %v1573 = vmul.f32 %v1547, %v409
        %v1574 = vmul.f32 %v1554, %v409
        %v1575 = vmul.f32 %v1561, %v409
        %v1576 = vmul.f32 %v1568, %v409
        %v1577 = vadd.f32 %v1569, %v423
        %v1578 = vadd.f32 %v1570, %v423
        %v1579 = vadd.f32 %v1571, %v423
        %v1580 = vadd.f32 %v1572, %v423
        %v1581 = vadd.f32 %v1573, %v423
        %v1582 = vadd.f32 %v1574, %v423
        %v1583 = vadd.f32 %v1575, %v423
        %v1584 = vadd.f32 %v1576, %v423
        %v1585 = vmax.f32 %v1577, 0.0
        %v1586 = vmax.f32 %v1578, 0.0
        %v1587 = vmax.f32 %v1579, 0.0
        %v1588 = vmax.f32 %v1580, 0.0
        %v1589 = vmax.f32 %v1581, 0.0
        %v1590 = vmax.f32 %v1582, 0.0
        %v1591 = vmax.f32 %v1583, 0.0
        %v1592 = vmax.f32 %v1584, 0.0
        %v1593 = vadd.f32 %v1449, %v1585
        %v1594 = vadd.f32 %v1450, %v1586
        %v1595 = vadd.f32 %v1451, %v1587
        %v1596 = vadd.f32 %v1452, %v1588
        %v1597 = vadd.f32 %v1453, %v1589
        %v1598 = vadd.f32 %v1454, %v1590
        %v1599 = vadd.f32 %v1455, %v1591
        %v1600 = vadd.f32 %v1456, %v1592
        %v1601 = vlaneseq
        %v1602 = vshrl.u32 %v1601, 7
        %v1603 = vsub.s32 1, %v1602
        %v1604 = vrot.slane %v283, %v1603
        %v1605 = vlaneseq
        %v1606 = vshrl.u32 %v1605, 7
        %v1607 = vsub.s32 1, %v1606
        %v1608 = vrot.slane %v285, %v1607
        %v1609 = vlaneseq
        %v1610 = vshrl.u32 %v1609, 7
        %v1611 = vsub.s32 1, %v1610
        %v1612 = vrot.slane %v287, %v1611
        %v1613 = vlaneseq
        %v1614 = vshrl.u32 %v1613, 7
        %v1615 = vsub.s32 1, %v1614
        %v1616 = vrot.slane %v289, %v1615
        %v1617 = vsub.f32 %v282, %v1604
        %v1618 = vsub.f32 %v283, %v1604
        %v1619 = vsub.f32 %v284, %v1608
        %v1620 = vsub.f32 %v285, %v1608
        %v1621 = vsub.f32 %v286, %v1612
        %v1622 = vsub.f32 %v287, %v1612
        %v1623 = vsub.f32 %v288, %v1616
        %v1624 = vsub.f32 %v289, %v1616
        %v1625 = vmul.f32 %v1617, %v1617
        %v1626 = vmul.f32 %v1618, %v1618
        %v1627 = vmul.f32 %v1619, %v1619
        %v1628 = vmul.f32 %v1620, %v1620
        %v1629 = vmul.f32 %v1621, %v1621
        %v1630 = vmul.f32 %v1622, %v1622
        %v1631 = vmul.f32 %v1623, %v1623
        %v1632 = vmul.f32 %v1624, %v1624
        %v1633 = vsel %vm324, %v1625, 0.0
        %1634 = vadd.xlane.f32.xlu0 %v1633
        %v1635 = vpop.xlane.xlu0 %1634
        %v1636 = vsel %vm324, %v1626, 0.0
        %1637 = vadd.xlane.f32.xlu0 %v1636
        %v1638 = vpop.xlane.xlu0 %1637
        %v1639 = vsel %vm324, %v1627, 0.0
        %1640 = vadd.xlane.f32.xlu0 %v1639
        %v1641 = vpop.xlane.xlu0 %1640
        %v1642 = vsel %vm324, %v1628, 0.0
        %1643 = vadd.xlane.f32.xlu0 %v1642
        %v1644 = vpop.xlane.xlu0 %1643
        %v1645 = vsel %vm324, %v1629, 0.0
        %1646 = vadd.xlane.f32.xlu0 %v1645
        %v1647 = vpop.xlane.xlu0 %1646
        %v1648 = vsel %vm324, %v1630, 0.0
        %1649 = vadd.xlane.f32.xlu0 %v1648
        %v1650 = vpop.xlane.xlu0 %1649
        %v1651 = vsel %vm324, %v1631, 0.0
        %1652 = vadd.xlane.f32.xlu0 %v1651
        %v1653 = vpop.xlane.xlu0 %1652
        %v1654 = vsel %vm324, %v1632, 0.0
        %1655 = vadd.xlane.f32.xlu0 %v1654
        %v1656 = vpop.xlane.xlu0 %1655
        %v1657 = vrsqrt.pop %v1635
        %v1658 = vmul.f32 %v1635, %v1657
        %vm1659 = vcmp.eq.f32.partialorder %v1635, inf
        %v1660 = vsel %vm1659, %v1635, %v1658
        %vm1661 = vcmp.eq.f32.partialorder %v1635, 0.0
        %v1662 = vand.u32 %v1635, 2147483648
        %v1663 = vsel %vm1661, %v1662, %v1660
        %v1664 = vrsqrt.pop %v1638
        %v1665 = vmul.f32 %v1638, %v1664
        %vm1666 = vcmp.eq.f32.partialorder %v1638, inf
        %v1667 = vsel %vm1666, %v1638, %v1665
        %vm1668 = vcmp.eq.f32.partialorder %v1638, 0.0
        %v1669 = vand.u32 %v1638, 2147483648
        %v1670 = vsel %vm1668, %v1669, %v1667
        %v1671 = vrsqrt.pop %v1641
        %v1672 = vmul.f32 %v1641, %v1671
        %vm1673 = vcmp.eq.f32.partialorder %v1641, inf
        %v1674 = vsel %vm1673, %v1641, %v1672
        %vm1675 = vcmp.eq.f32.partialorder %v1641, 0.0
        %v1676 = vand.u32 %v1641, 2147483648
        %v1677 = vsel %vm1675, %v1676, %v1674
        %v1678 = vrsqrt.pop %v1644
        %v1679 = vmul.f32 %v1644, %v1678
        %vm1680 = vcmp.eq.f32.partialorder %v1644, inf
        %v1681 = vsel %vm1680, %v1644, %v1679
        %vm1682 = vcmp.eq.f32.partialorder %v1644, 0.0
        %v1683 = vand.u32 %v1644, 2147483648
        %v1684 = vsel %vm1682, %v1683, %v1681
        %v1685 = vrsqrt.pop %v1647
        %v1686 = vmul.f32 %v1647, %v1685
        %vm1687 = vcmp.eq.f32.partialorder %v1647, inf
        %v1688 = vsel %vm1687, %v1647, %v1686
        %vm1689 = vcmp.eq.f32.partialorder %v1647, 0.0
        %v1690 = vand.u32 %v1647, 2147483648
        %v1691 = vsel %vm1689, %v1690, %v1688
        %v1692 = vrsqrt.pop %v1650
        %v1693 = vmul.f32 %v1650, %v1692
        %vm1694 = vcmp.eq.f32.partialorder %v1650, inf
        %v1695 = vsel %vm1694, %v1650, %v1693
        %vm1696 = vcmp.eq.f32.partialorder %v1650, 0.0
        %v1697 = vand.u32 %v1650, 2147483648
        %v1698 = vsel %vm1696, %v1697, %v1695
        %v1699 = vrsqrt.pop %v1653
        %v1700 = vmul.f32 %v1653, %v1699
        %vm1701 = vcmp.eq.f32.partialorder %v1653, inf
        %v1702 = vsel %vm1701, %v1653, %v1700
        %vm1703 = vcmp.eq.f32.partialorder %v1653, 0.0
        %v1704 = vand.u32 %v1653, 2147483648
        %v1705 = vsel %vm1703, %v1704, %v1702
        %v1706 = vrsqrt.pop %v1656
        %v1707 = vmul.f32 %v1656, %v1706
        %vm1708 = vcmp.eq.f32.partialorder %v1656, inf
        %v1709 = vsel %vm1708, %v1656, %v1707
        %vm1710 = vcmp.eq.f32.partialorder %v1656, 0.0
        %v1711 = vand.u32 %v1656, 2147483648
        %v1712 = vsel %vm1710, %v1711, %v1709
        %v1713 = vmul.f32 %v1663, %v409
        %v1714 = vmul.f32 %v1670, %v409
        %v1715 = vmul.f32 %v1677, %v409
        %v1716 = vmul.f32 %v1684, %v409
        %v1717 = vmul.f32 %v1691, %v409
        %v1718 = vmul.f32 %v1698, %v409
        %v1719 = vmul.f32 %v1705, %v409
        %v1720 = vmul.f32 %v1712, %v409
        %v1721 = vadd.f32 %v1713, %v423
        %v1722 = vadd.f32 %v1714, %v423
        %v1723 = vadd.f32 %v1715, %v423
        %v1724 = vadd.f32 %v1716, %v423
        %v1725 = vadd.f32 %v1717, %v423
        %v1726 = vadd.f32 %v1718, %v423
        %v1727 = vadd.f32 %v1719, %v423
        %v1728 = vadd.f32 %v1720, %v423
        %v1729 = vmax.f32 %v1721, 0.0
        %v1730 = vmax.f32 %v1722, 0.0
        %v1731 = vmax.f32 %v1723, 0.0
        %v1732 = vmax.f32 %v1724, 0.0
        %v1733 = vmax.f32 %v1725, 0.0
        %v1734 = vmax.f32 %v1726, 0.0
        %v1735 = vmax.f32 %v1727, 0.0
        %v1736 = vmax.f32 %v1728, 0.0
        %v1737 = vadd.f32 %v1593, %v1729
        %v1738 = vadd.f32 %v1594, %v1730
        %v1739 = vadd.f32 %v1595, %v1731
        %v1740 = vadd.f32 %v1596, %v1732
        %v1741 = vadd.f32 %v1597, %v1733
        %v1742 = vadd.f32 %v1598, %v1734
        %v1743 = vadd.f32 %v1599, %v1735
        %v1744 = vadd.f32 %v1600, %v1736
        %v1745 = vlaneseq
        %v1746 = vshrl.u32 %v1745, 7
        %v1747 = vsub.s32 2, %v1746
        %v1748 = vrot.slane %v283, %v1747
        %v1749 = vlaneseq
        %v1750 = vshrl.u32 %v1749, 7
        %v1751 = vsub.s32 2, %v1750
        %v1752 = vrot.slane %v285, %v1751
        %v1753 = vlaneseq
        %v1754 = vshrl.u32 %v1753, 7
        %v1755 = vsub.s32 2, %v1754
        %v1756 = vrot.slane %v287, %v1755
        %v1757 = vlaneseq
        %v1758 = vshrl.u32 %v1757, 7
        %v1759 = vsub.s32 2, %v1758
        %v1760 = vrot.slane %v289, %v1759
        %v1761 = vsub.f32 %v282, %v1748
        %v1762 = vsub.f32 %v283, %v1748
        %v1763 = vsub.f32 %v284, %v1752
        %v1764 = vsub.f32 %v285, %v1752
        %v1765 = vsub.f32 %v286, %v1756
        %v1766 = vsub.f32 %v287, %v1756
        %v1767 = vsub.f32 %v288, %v1760
        %v1768 = vsub.f32 %v289, %v1760
        %v1769 = vmul.f32 %v1761, %v1761
        %v1770 = vmul.f32 %v1762, %v1762
        %v1771 = vmul.f32 %v1763, %v1763
        %v1772 = vmul.f32 %v1764, %v1764
        %v1773 = vmul.f32 %v1765, %v1765
        %v1774 = vmul.f32 %v1766, %v1766
        %v1775 = vmul.f32 %v1767, %v1767
        %v1776 = vmul.f32 %v1768, %v1768
        %v1777 = vsel %vm324, %v1769, 0.0
        %1778 = vadd.xlane.f32.xlu0 %v1777
        %v1779 = vpop.xlane.xlu0 %1778
        %v1780 = vsel %vm324, %v1770, 0.0
        %1781 = vadd.xlane.f32.xlu0 %v1780
        %v1782 = vpop.xlane.xlu0 %1781
        %v1783 = vsel %vm324, %v1771, 0.0
        %1784 = vadd.xlane.f32.xlu0 %v1783
        %v1785 = vpop.xlane.xlu0 %1784
        %v1786 = vsel %vm324, %v1772, 0.0
        %1787 = vadd.xlane.f32.xlu0 %v1786
        %v1788 = vpop.xlane.xlu0 %1787
        %v1789 = vsel %vm324, %v1773, 0.0
        %1790 = vadd.xlane.f32.xlu0 %v1789
        %v1791 = vpop.xlane.xlu0 %1790
        %v1792 = vsel %vm324, %v1774, 0.0
        %1793 = vadd.xlane.f32.xlu0 %v1792
        %v1794 = vpop.xlane.xlu0 %1793
        %v1795 = vsel %vm324, %v1775, 0.0
        %1796 = vadd.xlane.f32.xlu0 %v1795
        %v1797 = vpop.xlane.xlu0 %1796
        %v1798 = vsel %vm324, %v1776, 0.0
        %1799 = vadd.xlane.f32.xlu0 %v1798
        %v1800 = vpop.xlane.xlu0 %1799
        %v1801 = vrsqrt.pop %v1779
        %v1802 = vmul.f32 %v1779, %v1801
        %vm1803 = vcmp.eq.f32.partialorder %v1779, inf
        %v1804 = vsel %vm1803, %v1779, %v1802
        %vm1805 = vcmp.eq.f32.partialorder %v1779, 0.0
        %v1806 = vand.u32 %v1779, 2147483648
        %v1807 = vsel %vm1805, %v1806, %v1804
        %v1808 = vrsqrt.pop %v1782
        %v1809 = vmul.f32 %v1782, %v1808
        %vm1810 = vcmp.eq.f32.partialorder %v1782, inf
        %v1811 = vsel %vm1810, %v1782, %v1809
        %vm1812 = vcmp.eq.f32.partialorder %v1782, 0.0
        %v1813 = vand.u32 %v1782, 2147483648
        %v1814 = vsel %vm1812, %v1813, %v1811
        %v1815 = vrsqrt.pop %v1785
        %v1816 = vmul.f32 %v1785, %v1815
        %vm1817 = vcmp.eq.f32.partialorder %v1785, inf
        %v1818 = vsel %vm1817, %v1785, %v1816
        %vm1819 = vcmp.eq.f32.partialorder %v1785, 0.0
        %v1820 = vand.u32 %v1785, 2147483648
        %v1821 = vsel %vm1819, %v1820, %v1818
        %v1822 = vrsqrt.pop %v1788
        %v1823 = vmul.f32 %v1788, %v1822
        %vm1824 = vcmp.eq.f32.partialorder %v1788, inf
        %v1825 = vsel %vm1824, %v1788, %v1823
        %vm1826 = vcmp.eq.f32.partialorder %v1788, 0.0
        %v1827 = vand.u32 %v1788, 2147483648
        %v1828 = vsel %vm1826, %v1827, %v1825
        %v1829 = vrsqrt.pop %v1791
        %v1830 = vmul.f32 %v1791, %v1829
        %vm1831 = vcmp.eq.f32.partialorder %v1791, inf
        %v1832 = vsel %vm1831, %v1791, %v1830
        %vm1833 = vcmp.eq.f32.partialorder %v1791, 0.0
        %v1834 = vand.u32 %v1791, 2147483648
        %v1835 = vsel %vm1833, %v1834, %v1832
        %v1836 = vrsqrt.pop %v1794
        %v1837 = vmul.f32 %v1794, %v1836
        %vm1838 = vcmp.eq.f32.partialorder %v1794, inf
        %v1839 = vsel %vm1838, %v1794, %v1837
        %vm1840 = vcmp.eq.f32.partialorder %v1794, 0.0
        %v1841 = vand.u32 %v1794, 2147483648
        %v1842 = vsel %vm1840, %v1841, %v1839
        %v1843 = vrsqrt.pop %v1797
        %v1844 = vmul.f32 %v1797, %v1843
        %vm1845 = vcmp.eq.f32.partialorder %v1797, inf
        %v1846 = vsel %vm1845, %v1797, %v1844
        %vm1847 = vcmp.eq.f32.partialorder %v1797, 0.0
        %v1848 = vand.u32 %v1797, 2147483648
        %v1849 = vsel %vm1847, %v1848, %v1846
        %v1850 = vrsqrt.pop %v1800
        %v1851 = vmul.f32 %v1800, %v1850
        %vm1852 = vcmp.eq.f32.partialorder %v1800, inf
        %v1853 = vsel %vm1852, %v1800, %v1851
        %vm1854 = vcmp.eq.f32.partialorder %v1800, 0.0
        %v1855 = vand.u32 %v1800, 2147483648
        %v1856 = vsel %vm1854, %v1855, %v1853
        %v1857 = vmul.f32 %v1807, %v409
        %v1858 = vmul.f32 %v1814, %v409
        %v1859 = vmul.f32 %v1821, %v409
        %v1860 = vmul.f32 %v1828, %v409
        %v1861 = vmul.f32 %v1835, %v409
        %v1862 = vmul.f32 %v1842, %v409
        %v1863 = vmul.f32 %v1849, %v409
        %v1864 = vmul.f32 %v1856, %v409
        %v1865 = vadd.f32 %v1857, %v423
        %v1866 = vadd.f32 %v1858, %v423
        %v1867 = vadd.f32 %v1859, %v423
        %v1868 = vadd.f32 %v1860, %v423
        %v1869 = vadd.f32 %v1861, %v423
        %v1870 = vadd.f32 %v1862, %v423
        %v1871 = vadd.f32 %v1863, %v423
        %v1872 = vadd.f32 %v1864, %v423
        %v1873 = vmax.f32 %v1865, 0.0
        %v1874 = vmax.f32 %v1866, 0.0
        %v1875 = vmax.f32 %v1867, 0.0
        %v1876 = vmax.f32 %v1868, 0.0
        %v1877 = vmax.f32 %v1869, 0.0
        %v1878 = vmax.f32 %v1870, 0.0
        %v1879 = vmax.f32 %v1871, 0.0
        %v1880 = vmax.f32 %v1872, 0.0
        %v1881 = vadd.f32 %v1737, %v1873
        %v1882 = vadd.f32 %v1738, %v1874
        %v1883 = vadd.f32 %v1739, %v1875
        %v1884 = vadd.f32 %v1740, %v1876
        %v1885 = vadd.f32 %v1741, %v1877
        %v1886 = vadd.f32 %v1742, %v1878
        %v1887 = vadd.f32 %v1743, %v1879
        %v1888 = vadd.f32 %v1744, %v1880
        %v1889 = vlaneseq
        %v1890 = vshrl.u32 %v1889, 7
        %v1891 = vsub.s32 3, %v1890
        %v1892 = vrot.slane %v283, %v1891
        %v1893 = vlaneseq
        %v1894 = vshrl.u32 %v1893, 7
        %v1895 = vsub.s32 3, %v1894
        %v1896 = vrot.slane %v285, %v1895
        %v1897 = vlaneseq
        %v1898 = vshrl.u32 %v1897, 7
        %v1899 = vsub.s32 3, %v1898
        %v1900 = vrot.slane %v287, %v1899
        %v1901 = vlaneseq
        %v1902 = vshrl.u32 %v1901, 7
        %v1903 = vsub.s32 3, %v1902
        %v1904 = vrot.slane %v289, %v1903
        %v1905 = vsub.f32 %v282, %v1892
        %v1906 = vsub.f32 %v283, %v1892
        %v1907 = vsub.f32 %v284, %v1896
        %v1908 = vsub.f32 %v285, %v1896
        %v1909 = vsub.f32 %v286, %v1900
        %v1910 = vsub.f32 %v287, %v1900
        %v1911 = vsub.f32 %v288, %v1904
        %v1912 = vsub.f32 %v289, %v1904
        %v1913 = vmul.f32 %v1905, %v1905
        %v1914 = vmul.f32 %v1906, %v1906
        %v1915 = vmul.f32 %v1907, %v1907
        %v1916 = vmul.f32 %v1908, %v1908
        %v1917 = vmul.f32 %v1909, %v1909
        %v1918 = vmul.f32 %v1910, %v1910
        %v1919 = vmul.f32 %v1911, %v1911
        %v1920 = vmul.f32 %v1912, %v1912
        %v1921 = vsel %vm324, %v1913, 0.0
        %1922 = vadd.xlane.f32.xlu0 %v1921
        %v1923 = vpop.xlane.xlu0 %1922
        %v1924 = vsel %vm324, %v1914, 0.0
        %1925 = vadd.xlane.f32.xlu0 %v1924
        %v1926 = vpop.xlane.xlu0 %1925
        %v1927 = vsel %vm324, %v1915, 0.0
        %1928 = vadd.xlane.f32.xlu0 %v1927
        %v1929 = vpop.xlane.xlu0 %1928
        %v1930 = vsel %vm324, %v1916, 0.0
        %1931 = vadd.xlane.f32.xlu0 %v1930
        %v1932 = vpop.xlane.xlu0 %1931
        %v1933 = vsel %vm324, %v1917, 0.0
        %1934 = vadd.xlane.f32.xlu0 %v1933
        %v1935 = vpop.xlane.xlu0 %1934
        %v1936 = vsel %vm324, %v1918, 0.0
        %1937 = vadd.xlane.f32.xlu0 %v1936
        %v1938 = vpop.xlane.xlu0 %1937
        %v1939 = vsel %vm324, %v1919, 0.0
        %1940 = vadd.xlane.f32.xlu0 %v1939
        %v1941 = vpop.xlane.xlu0 %1940
        %v1942 = vsel %vm324, %v1920, 0.0
        %1943 = vadd.xlane.f32.xlu0 %v1942
        %v1944 = vpop.xlane.xlu0 %1943
        %v1945 = vrsqrt.pop %v1923
        %v1946 = vmul.f32 %v1923, %v1945
        %vm1947 = vcmp.eq.f32.partialorder %v1923, inf
        %v1948 = vsel %vm1947, %v1923, %v1946
        %vm1949 = vcmp.eq.f32.partialorder %v1923, 0.0
        %v1950 = vand.u32 %v1923, 2147483648
        %v1951 = vsel %vm1949, %v1950, %v1948
        %v1952 = vrsqrt.pop %v1926
        %v1953 = vmul.f32 %v1926, %v1952
        %vm1954 = vcmp.eq.f32.partialorder %v1926, inf
        %v1955 = vsel %vm1954, %v1926, %v1953
        %vm1956 = vcmp.eq.f32.partialorder %v1926, 0.0
        %v1957 = vand.u32 %v1926, 2147483648
        %v1958 = vsel %vm1956, %v1957, %v1955
        %v1959 = vrsqrt.pop %v1929
        %v1960 = vmul.f32 %v1929, %v1959
        %vm1961 = vcmp.eq.f32.partialorder %v1929, inf
        %v1962 = vsel %vm1961, %v1929, %v1960
        %vm1963 = vcmp.eq.f32.partialorder %v1929, 0.0
        %v1964 = vand.u32 %v1929, 2147483648
        %v1965 = vsel %vm1963, %v1964, %v1962
        %v1966 = vrsqrt.pop %v1932
        %v1967 = vmul.f32 %v1932, %v1966
        %vm1968 = vcmp.eq.f32.partialorder %v1932, inf
        %v1969 = vsel %vm1968, %v1932, %v1967
        %vm1970 = vcmp.eq.f32.partialorder %v1932, 0.0
        %v1971 = vand.u32 %v1932, 2147483648
        %v1972 = vsel %vm1970, %v1971, %v1969
        %v1973 = vrsqrt.pop %v1935
        %v1974 = vmul.f32 %v1935, %v1973
        %vm1975 = vcmp.eq.f32.partialorder %v1935, inf
        %v1976 = vsel %vm1975, %v1935, %v1974
        %vm1977 = vcmp.eq.f32.partialorder %v1935, 0.0
        %v1978 = vand.u32 %v1935, 2147483648
        %v1979 = vsel %vm1977, %v1978, %v1976
        %v1980 = vrsqrt.pop %v1938
        %v1981 = vmul.f32 %v1938, %v1980
        %vm1982 = vcmp.eq.f32.partialorder %v1938, inf
        %v1983 = vsel %vm1982, %v1938, %v1981
        %vm1984 = vcmp.eq.f32.partialorder %v1938, 0.0
        %v1985 = vand.u32 %v1938, 2147483648
        %v1986 = vsel %vm1984, %v1985, %v1983
        %v1987 = vrsqrt.pop %v1941
        %v1988 = vmul.f32 %v1941, %v1987
        %vm1989 = vcmp.eq.f32.partialorder %v1941, inf
        %v1990 = vsel %vm1989, %v1941, %v1988
        %vm1991 = vcmp.eq.f32.partialorder %v1941, 0.0
        %v1992 = vand.u32 %v1941, 2147483648
        %v1993 = vsel %vm1991, %v1992, %v1990
        %v1994 = vrsqrt.pop %v1944
        %v1995 = vmul.f32 %v1944, %v1994
        %vm1996 = vcmp.eq.f32.partialorder %v1944, inf
        %v1997 = vsel %vm1996, %v1944, %v1995
        %vm1998 = vcmp.eq.f32.partialorder %v1944, 0.0
        %v1999 = vand.u32 %v1944, 2147483648
        %v2000 = vsel %vm1998, %v1999, %v1997
        %v2001 = vmul.f32 %v1951, %v409
        %v2002 = vmul.f32 %v1958, %v409
        %v2003 = vmul.f32 %v1965, %v409
        %v2004 = vmul.f32 %v1972, %v409
        %v2005 = vmul.f32 %v1979, %v409
        %v2006 = vmul.f32 %v1986, %v409
        %v2007 = vmul.f32 %v1993, %v409
        %v2008 = vmul.f32 %v2000, %v409
        %v2009 = vadd.f32 %v2001, %v423
        %v2010 = vadd.f32 %v2002, %v423
        %v2011 = vadd.f32 %v2003, %v423
        %v2012 = vadd.f32 %v2004, %v423
        %v2013 = vadd.f32 %v2005, %v423
        %v2014 = vadd.f32 %v2006, %v423
        %v2015 = vadd.f32 %v2007, %v423
        %v2016 = vadd.f32 %v2008, %v423
        %v2017 = vmax.f32 %v2009, 0.0
        %v2018 = vmax.f32 %v2010, 0.0
        %v2019 = vmax.f32 %v2011, 0.0
        %v2020 = vmax.f32 %v2012, 0.0
        %v2021 = vmax.f32 %v2013, 0.0
        %v2022 = vmax.f32 %v2014, 0.0
        %v2023 = vmax.f32 %v2015, 0.0
        %v2024 = vmax.f32 %v2016, 0.0
        %v2025 = vadd.f32 %v1881, %v2017
        %v2026 = vadd.f32 %v1882, %v2018
        %v2027 = vadd.f32 %v1883, %v2019
        %v2028 = vadd.f32 %v1884, %v2020
        %v2029 = vadd.f32 %v1885, %v2021
        %v2030 = vadd.f32 %v1886, %v2022
        %v2031 = vadd.f32 %v1887, %v2023
        %v2032 = vadd.f32 %v1888, %v2024
        %v2033 = vlaneseq
        %v2034 = vshrl.u32 %v2033, 7
        %v2035 = vsub.s32 4, %v2034
        %v2036 = vrot.slane %v283, %v2035
        %v2037 = vlaneseq
        %v2038 = vshrl.u32 %v2037, 7
        %v2039 = vsub.s32 4, %v2038
        %v2040 = vrot.slane %v285, %v2039
        %v2041 = vlaneseq
        %v2042 = vshrl.u32 %v2041, 7
        %v2043 = vsub.s32 4, %v2042
        %v2044 = vrot.slane %v287, %v2043
        %v2045 = vlaneseq
        %v2046 = vshrl.u32 %v2045, 7
        %v2047 = vsub.s32 4, %v2046
        %v2048 = vrot.slane %v289, %v2047
        %v2049 = vsub.f32 %v282, %v2036
        %v2050 = vsub.f32 %v283, %v2036
        %v2051 = vsub.f32 %v284, %v2040
        %v2052 = vsub.f32 %v285, %v2040
        %v2053 = vsub.f32 %v286, %v2044
        %v2054 = vsub.f32 %v287, %v2044
        %v2055 = vsub.f32 %v288, %v2048
        %v2056 = vsub.f32 %v289, %v2048
        %v2057 = vmul.f32 %v2049, %v2049
        %v2058 = vmul.f32 %v2050, %v2050
        %v2059 = vmul.f32 %v2051, %v2051
        %v2060 = vmul.f32 %v2052, %v2052
        %v2061 = vmul.f32 %v2053, %v2053
        %v2062 = vmul.f32 %v2054, %v2054
        %v2063 = vmul.f32 %v2055, %v2055
        %v2064 = vmul.f32 %v2056, %v2056
        %v2065 = vsel %vm324, %v2057, 0.0
        %2066 = vadd.xlane.f32.xlu0 %v2065
        %v2067 = vpop.xlane.xlu0 %2066
        %v2068 = vsel %vm324, %v2058, 0.0
        %2069 = vadd.xlane.f32.xlu0 %v2068
        %v2070 = vpop.xlane.xlu0 %2069
        %v2071 = vsel %vm324, %v2059, 0.0
        %2072 = vadd.xlane.f32.xlu0 %v2071
        %v2073 = vpop.xlane.xlu0 %2072
        %v2074 = vsel %vm324, %v2060, 0.0
        %2075 = vadd.xlane.f32.xlu0 %v2074
        %v2076 = vpop.xlane.xlu0 %2075
        %v2077 = vsel %vm324, %v2061, 0.0
        %2078 = vadd.xlane.f32.xlu0 %v2077
        %v2079 = vpop.xlane.xlu0 %2078
        %v2080 = vsel %vm324, %v2062, 0.0
        %2081 = vadd.xlane.f32.xlu0 %v2080
        %v2082 = vpop.xlane.xlu0 %2081
        %v2083 = vsel %vm324, %v2063, 0.0
        %2084 = vadd.xlane.f32.xlu0 %v2083
        %v2085 = vpop.xlane.xlu0 %2084
        %v2086 = vsel %vm324, %v2064, 0.0
        %2087 = vadd.xlane.f32.xlu0 %v2086
        %v2088 = vpop.xlane.xlu0 %2087
        %v2089 = vrsqrt.pop %v2067
        %v2090 = vmul.f32 %v2067, %v2089
        %vm2091 = vcmp.eq.f32.partialorder %v2067, inf
        %v2092 = vsel %vm2091, %v2067, %v2090
        %vm2093 = vcmp.eq.f32.partialorder %v2067, 0.0
        %v2094 = vand.u32 %v2067, 2147483648
        %v2095 = vsel %vm2093, %v2094, %v2092
        %v2096 = vrsqrt.pop %v2070
        %v2097 = vmul.f32 %v2070, %v2096
        %vm2098 = vcmp.eq.f32.partialorder %v2070, inf
        %v2099 = vsel %vm2098, %v2070, %v2097
        %vm2100 = vcmp.eq.f32.partialorder %v2070, 0.0
        %v2101 = vand.u32 %v2070, 2147483648
        %v2102 = vsel %vm2100, %v2101, %v2099
        %v2103 = vrsqrt.pop %v2073
        %v2104 = vmul.f32 %v2073, %v2103
        %vm2105 = vcmp.eq.f32.partialorder %v2073, inf
        %v2106 = vsel %vm2105, %v2073, %v2104
        %vm2107 = vcmp.eq.f32.partialorder %v2073, 0.0
        %v2108 = vand.u32 %v2073, 2147483648
        %v2109 = vsel %vm2107, %v2108, %v2106
        %v2110 = vrsqrt.pop %v2076
        %v2111 = vmul.f32 %v2076, %v2110
        %vm2112 = vcmp.eq.f32.partialorder %v2076, inf
        %v2113 = vsel %vm2112, %v2076, %v2111
        %vm2114 = vcmp.eq.f32.partialorder %v2076, 0.0
        %v2115 = vand.u32 %v2076, 2147483648
        %v2116 = vsel %vm2114, %v2115, %v2113
        %v2117 = vrsqrt.pop %v2079
        %v2118 = vmul.f32 %v2079, %v2117
        %vm2119 = vcmp.eq.f32.partialorder %v2079, inf
        %v2120 = vsel %vm2119, %v2079, %v2118
        %vm2121 = vcmp.eq.f32.partialorder %v2079, 0.0
        %v2122 = vand.u32 %v2079, 2147483648
        %v2123 = vsel %vm2121, %v2122, %v2120
        %v2124 = vrsqrt.pop %v2082
        %v2125 = vmul.f32 %v2082, %v2124
        %vm2126 = vcmp.eq.f32.partialorder %v2082, inf
        %v2127 = vsel %vm2126, %v2082, %v2125
        %vm2128 = vcmp.eq.f32.partialorder %v2082, 0.0
        %v2129 = vand.u32 %v2082, 2147483648
        %v2130 = vsel %vm2128, %v2129, %v2127
        %v2131 = vrsqrt.pop %v2085
        %v2132 = vmul.f32 %v2085, %v2131
        %vm2133 = vcmp.eq.f32.partialorder %v2085, inf
        %v2134 = vsel %vm2133, %v2085, %v2132
        %vm2135 = vcmp.eq.f32.partialorder %v2085, 0.0
        %v2136 = vand.u32 %v2085, 2147483648
        %v2137 = vsel %vm2135, %v2136, %v2134
        %v2138 = vrsqrt.pop %v2088
        %v2139 = vmul.f32 %v2088, %v2138
        %vm2140 = vcmp.eq.f32.partialorder %v2088, inf
        %v2141 = vsel %vm2140, %v2088, %v2139
        %vm2142 = vcmp.eq.f32.partialorder %v2088, 0.0
        %v2143 = vand.u32 %v2088, 2147483648
        %v2144 = vsel %vm2142, %v2143, %v2141
        %v2145 = vmul.f32 %v2095, %v409
        %v2146 = vmul.f32 %v2102, %v409
        %v2147 = vmul.f32 %v2109, %v409
        %v2148 = vmul.f32 %v2116, %v409
        %v2149 = vmul.f32 %v2123, %v409
        %v2150 = vmul.f32 %v2130, %v409
        %v2151 = vmul.f32 %v2137, %v409
        %v2152 = vmul.f32 %v2144, %v409
        %v2153 = vadd.f32 %v2145, %v423
        %v2154 = vadd.f32 %v2146, %v423
        %v2155 = vadd.f32 %v2147, %v423
        %v2156 = vadd.f32 %v2148, %v423
        %v2157 = vadd.f32 %v2149, %v423
        %v2158 = vadd.f32 %v2150, %v423
        %v2159 = vadd.f32 %v2151, %v423
        %v2160 = vadd.f32 %v2152, %v423
        %v2161 = vmax.f32 %v2153, 0.0
        %v2162 = vmax.f32 %v2154, 0.0
        %v2163 = vmax.f32 %v2155, 0.0
        %v2164 = vmax.f32 %v2156, 0.0
        %v2165 = vmax.f32 %v2157, 0.0
        %v2166 = vmax.f32 %v2158, 0.0
        %v2167 = vmax.f32 %v2159, 0.0
        %v2168 = vmax.f32 %v2160, 0.0
        %v2169 = vadd.f32 %v2025, %v2161
        %v2170 = vadd.f32 %v2026, %v2162
        %v2171 = vadd.f32 %v2027, %v2163
        %v2172 = vadd.f32 %v2028, %v2164
        %v2173 = vadd.f32 %v2029, %v2165
        %v2174 = vadd.f32 %v2030, %v2166
        %v2175 = vadd.f32 %v2031, %v2167
        %v2176 = vadd.f32 %v2032, %v2168
        %v2177 = vlaneseq
        %v2178 = vshrl.u32 %v2177, 7
        %v2179 = vsub.s32 5, %v2178
        %v2180 = vrot.slane %v283, %v2179
        %v2181 = vlaneseq
        %v2182 = vshrl.u32 %v2181, 7
        %v2183 = vsub.s32 5, %v2182
        %v2184 = vrot.slane %v285, %v2183
        %v2185 = vlaneseq
        %v2186 = vshrl.u32 %v2185, 7
        %v2187 = vsub.s32 5, %v2186
        %v2188 = vrot.slane %v287, %v2187
        %v2189 = vlaneseq
        %v2190 = vshrl.u32 %v2189, 7
        %v2191 = vsub.s32 5, %v2190
        %v2192 = vrot.slane %v289, %v2191
        %v2193 = vsub.f32 %v282, %v2180
        %v2194 = vsub.f32 %v283, %v2180
        %v2195 = vsub.f32 %v284, %v2184
        %v2196 = vsub.f32 %v285, %v2184
        %v2197 = vsub.f32 %v286, %v2188
        %v2198 = vsub.f32 %v287, %v2188
        %v2199 = vsub.f32 %v288, %v2192
        %v2200 = vsub.f32 %v289, %v2192
        %v2201 = vmul.f32 %v2193, %v2193
        %v2202 = vmul.f32 %v2194, %v2194
        %v2203 = vmul.f32 %v2195, %v2195
        %v2204 = vmul.f32 %v2196, %v2196
        %v2205 = vmul.f32 %v2197, %v2197
        %v2206 = vmul.f32 %v2198, %v2198
        %v2207 = vmul.f32 %v2199, %v2199
        %v2208 = vmul.f32 %v2200, %v2200
        %v2209 = vsel %vm324, %v2201, 0.0
        %2210 = vadd.xlane.f32.xlu0 %v2209
        %v2211 = vpop.xlane.xlu0 %2210
        %v2212 = vsel %vm324, %v2202, 0.0
        %2213 = vadd.xlane.f32.xlu0 %v2212
        %v2214 = vpop.xlane.xlu0 %2213
        %v2215 = vsel %vm324, %v2203, 0.0
        %2216 = vadd.xlane.f32.xlu0 %v2215
        %v2217 = vpop.xlane.xlu0 %2216
        %v2218 = vsel %vm324, %v2204, 0.0
        %2219 = vadd.xlane.f32.xlu0 %v2218
        %v2220 = vpop.xlane.xlu0 %2219
        %v2221 = vsel %vm324, %v2205, 0.0
        %2222 = vadd.xlane.f32.xlu0 %v2221
        %v2223 = vpop.xlane.xlu0 %2222
        %v2224 = vsel %vm324, %v2206, 0.0
        %2225 = vadd.xlane.f32.xlu0 %v2224
        %v2226 = vpop.xlane.xlu0 %2225
        %v2227 = vsel %vm324, %v2207, 0.0
        %2228 = vadd.xlane.f32.xlu0 %v2227
        %v2229 = vpop.xlane.xlu0 %2228
        %v2230 = vsel %vm324, %v2208, 0.0
        %2231 = vadd.xlane.f32.xlu0 %v2230
        %v2232 = vpop.xlane.xlu0 %2231
        %v2233 = vrsqrt.pop %v2211
        %v2234 = vmul.f32 %v2211, %v2233
        %vm2235 = vcmp.eq.f32.partialorder %v2211, inf
        %v2236 = vsel %vm2235, %v2211, %v2234
        %vm2237 = vcmp.eq.f32.partialorder %v2211, 0.0
        %v2238 = vand.u32 %v2211, 2147483648
        %v2239 = vsel %vm2237, %v2238, %v2236
        %v2240 = vrsqrt.pop %v2214
        %v2241 = vmul.f32 %v2214, %v2240
        %vm2242 = vcmp.eq.f32.partialorder %v2214, inf
        %v2243 = vsel %vm2242, %v2214, %v2241
        %vm2244 = vcmp.eq.f32.partialorder %v2214, 0.0
        %v2245 = vand.u32 %v2214, 2147483648
        %v2246 = vsel %vm2244, %v2245, %v2243
        %v2247 = vrsqrt.pop %v2217
        %v2248 = vmul.f32 %v2217, %v2247
        %vm2249 = vcmp.eq.f32.partialorder %v2217, inf
        %v2250 = vsel %vm2249, %v2217, %v2248
        %vm2251 = vcmp.eq.f32.partialorder %v2217, 0.0
        %v2252 = vand.u32 %v2217, 2147483648
        %v2253 = vsel %vm2251, %v2252, %v2250
        %v2254 = vrsqrt.pop %v2220
        %v2255 = vmul.f32 %v2220, %v2254
        %vm2256 = vcmp.eq.f32.partialorder %v2220, inf
        %v2257 = vsel %vm2256, %v2220, %v2255
        %vm2258 = vcmp.eq.f32.partialorder %v2220, 0.0
        %v2259 = vand.u32 %v2220, 2147483648
        %v2260 = vsel %vm2258, %v2259, %v2257
        %v2261 = vrsqrt.pop %v2223
        %v2262 = vmul.f32 %v2223, %v2261
        %vm2263 = vcmp.eq.f32.partialorder %v2223, inf
        %v2264 = vsel %vm2263, %v2223, %v2262
        %vm2265 = vcmp.eq.f32.partialorder %v2223, 0.0
        %v2266 = vand.u32 %v2223, 2147483648
        %v2267 = vsel %vm2265, %v2266, %v2264
        %v2268 = vrsqrt.pop %v2226
        %v2269 = vmul.f32 %v2226, %v2268
        %vm2270 = vcmp.eq.f32.partialorder %v2226, inf
        %v2271 = vsel %vm2270, %v2226, %v2269
        %vm2272 = vcmp.eq.f32.partialorder %v2226, 0.0
        %v2273 = vand.u32 %v2226, 2147483648
        %v2274 = vsel %vm2272, %v2273, %v2271
        %v2275 = vrsqrt.pop %v2229
        %v2276 = vmul.f32 %v2229, %v2275
        %vm2277 = vcmp.eq.f32.partialorder %v2229, inf
        %v2278 = vsel %vm2277, %v2229, %v2276
        %vm2279 = vcmp.eq.f32.partialorder %v2229, 0.0
        %v2280 = vand.u32 %v2229, 2147483648
        %v2281 = vsel %vm2279, %v2280, %v2278
        %v2282 = vrsqrt.pop %v2232
        %v2283 = vmul.f32 %v2232, %v2282
        %vm2284 = vcmp.eq.f32.partialorder %v2232, inf
        %v2285 = vsel %vm2284, %v2232, %v2283
        %vm2286 = vcmp.eq.f32.partialorder %v2232, 0.0
        %v2287 = vand.u32 %v2232, 2147483648
        %v2288 = vsel %vm2286, %v2287, %v2285
        %v2289 = vmul.f32 %v2239, %v409
        %v2290 = vmul.f32 %v2246, %v409
        %v2291 = vmul.f32 %v2253, %v409
        %v2292 = vmul.f32 %v2260, %v409
        %v2293 = vmul.f32 %v2267, %v409
        %v2294 = vmul.f32 %v2274, %v409
        %v2295 = vmul.f32 %v2281, %v409
        %v2296 = vmul.f32 %v2288, %v409
        %v2297 = vadd.f32 %v2289, %v423
        %v2298 = vadd.f32 %v2290, %v423
        %v2299 = vadd.f32 %v2291, %v423
        %v2300 = vadd.f32 %v2292, %v423
        %v2301 = vadd.f32 %v2293, %v423
        %v2302 = vadd.f32 %v2294, %v423
        %v2303 = vadd.f32 %v2295, %v423
        %v2304 = vadd.f32 %v2296, %v423
        %v2305 = vmax.f32 %v2297, 0.0
        %v2306 = vmax.f32 %v2298, 0.0
        %v2307 = vmax.f32 %v2299, 0.0
        %v2308 = vmax.f32 %v2300, 0.0
        %v2309 = vmax.f32 %v2301, 0.0
        %v2310 = vmax.f32 %v2302, 0.0
        %v2311 = vmax.f32 %v2303, 0.0
        %v2312 = vmax.f32 %v2304, 0.0
        %v2313 = vadd.f32 %v2169, %v2305
        %v2314 = vadd.f32 %v2170, %v2306
        %v2315 = vadd.f32 %v2171, %v2307
        %v2316 = vadd.f32 %v2172, %v2308
        %v2317 = vadd.f32 %v2173, %v2309
        %v2318 = vadd.f32 %v2174, %v2310
        %v2319 = vadd.f32 %v2175, %v2311
        %v2320 = vadd.f32 %v2176, %v2312
        %v2321 = vlaneseq
        %v2322 = vshrl.u32 %v2321, 7
        %v2323 = vsub.s32 6, %v2322
        %v2324 = vrot.slane %v283, %v2323
        %v2325 = vlaneseq
        %v2326 = vshrl.u32 %v2325, 7
        %v2327 = vsub.s32 6, %v2326
        %v2328 = vrot.slane %v285, %v2327
        %v2329 = vlaneseq
        %v2330 = vshrl.u32 %v2329, 7
        %v2331 = vsub.s32 6, %v2330
        %v2332 = vrot.slane %v287, %v2331
        %v2333 = vlaneseq
        %v2334 = vshrl.u32 %v2333, 7
        %v2335 = vsub.s32 6, %v2334
        %v2336 = vrot.slane %v289, %v2335
        %v2337 = vsub.f32 %v282, %v2324
        %v2338 = vsub.f32 %v283, %v2324
        %v2339 = vsub.f32 %v284, %v2328
        %v2340 = vsub.f32 %v285, %v2328
        %v2341 = vsub.f32 %v286, %v2332
        %v2342 = vsub.f32 %v287, %v2332
        %v2343 = vsub.f32 %v288, %v2336
        %v2344 = vsub.f32 %v289, %v2336
        %v2345 = vmul.f32 %v2337, %v2337
        %v2346 = vmul.f32 %v2338, %v2338
        %v2347 = vmul.f32 %v2339, %v2339
        %v2348 = vmul.f32 %v2340, %v2340
        %v2349 = vmul.f32 %v2341, %v2341
        %v2350 = vmul.f32 %v2342, %v2342
        %v2351 = vmul.f32 %v2343, %v2343
        %v2352 = vmul.f32 %v2344, %v2344
        %v2353 = vsel %vm324, %v2345, 0.0
        %2354 = vadd.xlane.f32.xlu0 %v2353
        %v2355 = vpop.xlane.xlu0 %2354
        %v2356 = vsel %vm324, %v2346, 0.0
        %2357 = vadd.xlane.f32.xlu0 %v2356
        %v2358 = vpop.xlane.xlu0 %2357
        %v2359 = vsel %vm324, %v2347, 0.0
        %2360 = vadd.xlane.f32.xlu0 %v2359
        %v2361 = vpop.xlane.xlu0 %2360
        %v2362 = vsel %vm324, %v2348, 0.0
        %2363 = vadd.xlane.f32.xlu0 %v2362
        %v2364 = vpop.xlane.xlu0 %2363
        %v2365 = vsel %vm324, %v2349, 0.0
        %2366 = vadd.xlane.f32.xlu0 %v2365
        %v2367 = vpop.xlane.xlu0 %2366
        %v2368 = vsel %vm324, %v2350, 0.0
        %2369 = vadd.xlane.f32.xlu0 %v2368
        %v2370 = vpop.xlane.xlu0 %2369
        %v2371 = vsel %vm324, %v2351, 0.0
        %2372 = vadd.xlane.f32.xlu0 %v2371
        %v2373 = vpop.xlane.xlu0 %2372
        %v2374 = vsel %vm324, %v2352, 0.0
        %2375 = vadd.xlane.f32.xlu0 %v2374
        %v2376 = vpop.xlane.xlu0 %2375
        %v2377 = vrsqrt.pop %v2355
        %v2378 = vmul.f32 %v2355, %v2377
        %vm2379 = vcmp.eq.f32.partialorder %v2355, inf
        %v2380 = vsel %vm2379, %v2355, %v2378
        %vm2381 = vcmp.eq.f32.partialorder %v2355, 0.0
        %v2382 = vand.u32 %v2355, 2147483648
        %v2383 = vsel %vm2381, %v2382, %v2380
        %v2384 = vrsqrt.pop %v2358
        %v2385 = vmul.f32 %v2358, %v2384
        %vm2386 = vcmp.eq.f32.partialorder %v2358, inf
        %v2387 = vsel %vm2386, %v2358, %v2385
        %vm2388 = vcmp.eq.f32.partialorder %v2358, 0.0
        %v2389 = vand.u32 %v2358, 2147483648
        %v2390 = vsel %vm2388, %v2389, %v2387
        %v2391 = vrsqrt.pop %v2361
        %v2392 = vmul.f32 %v2361, %v2391
        %vm2393 = vcmp.eq.f32.partialorder %v2361, inf
        %v2394 = vsel %vm2393, %v2361, %v2392
        %vm2395 = vcmp.eq.f32.partialorder %v2361, 0.0
        %v2396 = vand.u32 %v2361, 2147483648
        %v2397 = vsel %vm2395, %v2396, %v2394
        %v2398 = vrsqrt.pop %v2364
        %v2399 = vmul.f32 %v2364, %v2398
        %vm2400 = vcmp.eq.f32.partialorder %v2364, inf
        %v2401 = vsel %vm2400, %v2364, %v2399
        %vm2402 = vcmp.eq.f32.partialorder %v2364, 0.0
        %v2403 = vand.u32 %v2364, 2147483648
        %v2404 = vsel %vm2402, %v2403, %v2401
        %v2405 = vrsqrt.pop %v2367
        %v2406 = vmul.f32 %v2367, %v2405
        %vm2407 = vcmp.eq.f32.partialorder %v2367, inf
        %v2408 = vsel %vm2407, %v2367, %v2406
        %vm2409 = vcmp.eq.f32.partialorder %v2367, 0.0
        %v2410 = vand.u32 %v2367, 2147483648
        %v2411 = vsel %vm2409, %v2410, %v2408
        %v2412 = vrsqrt.pop %v2370
        %v2413 = vmul.f32 %v2370, %v2412
        %vm2414 = vcmp.eq.f32.partialorder %v2370, inf
        %v2415 = vsel %vm2414, %v2370, %v2413
        %vm2416 = vcmp.eq.f32.partialorder %v2370, 0.0
        %v2417 = vand.u32 %v2370, 2147483648
        %v2418 = vsel %vm2416, %v2417, %v2415
        %v2419 = vrsqrt.pop %v2373
        %v2420 = vmul.f32 %v2373, %v2419
        %vm2421 = vcmp.eq.f32.partialorder %v2373, inf
        %v2422 = vsel %vm2421, %v2373, %v2420
        %vm2423 = vcmp.eq.f32.partialorder %v2373, 0.0
        %v2424 = vand.u32 %v2373, 2147483648
        %v2425 = vsel %vm2423, %v2424, %v2422
        %v2426 = vrsqrt.pop %v2376
        %v2427 = vmul.f32 %v2376, %v2426
        %vm2428 = vcmp.eq.f32.partialorder %v2376, inf
        %v2429 = vsel %vm2428, %v2376, %v2427
        %vm2430 = vcmp.eq.f32.partialorder %v2376, 0.0
        %v2431 = vand.u32 %v2376, 2147483648
        %v2432 = vsel %vm2430, %v2431, %v2429
        %v2433 = vmul.f32 %v2383, %v409
        %v2434 = vmul.f32 %v2390, %v409
        %v2435 = vmul.f32 %v2397, %v409
        %v2436 = vmul.f32 %v2404, %v409
        %v2437 = vmul.f32 %v2411, %v409
        %v2438 = vmul.f32 %v2418, %v409
        %v2439 = vmul.f32 %v2425, %v409
        %v2440 = vmul.f32 %v2432, %v409
        %v2441 = vadd.f32 %v2433, %v423
        %v2442 = vadd.f32 %v2434, %v423
        %v2443 = vadd.f32 %v2435, %v423
        %v2444 = vadd.f32 %v2436, %v423
        %v2445 = vadd.f32 %v2437, %v423
        %v2446 = vadd.f32 %v2438, %v423
        %v2447 = vadd.f32 %v2439, %v423
        %v2448 = vadd.f32 %v2440, %v423
        %v2449 = vmax.f32 %v2441, 0.0
        %v2450 = vmax.f32 %v2442, 0.0
        %v2451 = vmax.f32 %v2443, 0.0
        %v2452 = vmax.f32 %v2444, 0.0
        %v2453 = vmax.f32 %v2445, 0.0
        %v2454 = vmax.f32 %v2446, 0.0
        %v2455 = vmax.f32 %v2447, 0.0
        %v2456 = vmax.f32 %v2448, 0.0
        %v2457 = vadd.f32 %v2313, %v2449
        %v2458 = vadd.f32 %v2314, %v2450
        %v2459 = vadd.f32 %v2315, %v2451
        %v2460 = vadd.f32 %v2316, %v2452
        %v2461 = vadd.f32 %v2317, %v2453
        %v2462 = vadd.f32 %v2318, %v2454
        %v2463 = vadd.f32 %v2319, %v2455
        %v2464 = vadd.f32 %v2320, %v2456
        %v2465 = vlaneseq
        %v2466 = vshrl.u32 %v2465, 7
        %v2467 = vsub.s32 7, %v2466
        %v2468 = vrot.slane %v283, %v2467
        %v2469 = vlaneseq
        %v2470 = vshrl.u32 %v2469, 7
        %v2471 = vsub.s32 7, %v2470
        %v2472 = vrot.slane %v285, %v2471
        %v2473 = vlaneseq
        %v2474 = vshrl.u32 %v2473, 7
        %v2475 = vsub.s32 7, %v2474
        %v2476 = vrot.slane %v287, %v2475
        %v2477 = vlaneseq
        %v2478 = vshrl.u32 %v2477, 7
        %v2479 = vsub.s32 7, %v2478
        %v2480 = vrot.slane %v289, %v2479
        %v2481 = vsub.f32 %v282, %v2468
        %v2482 = vsub.f32 %v283, %v2468
        %v2483 = vsub.f32 %v284, %v2472
        %v2484 = vsub.f32 %v285, %v2472
        %v2485 = vsub.f32 %v286, %v2476
        %v2486 = vsub.f32 %v287, %v2476
        %v2487 = vsub.f32 %v288, %v2480
        %v2488 = vsub.f32 %v289, %v2480
        %v2489 = vmul.f32 %v2481, %v2481
        %v2490 = vmul.f32 %v2482, %v2482
        %v2491 = vmul.f32 %v2483, %v2483
        %v2492 = vmul.f32 %v2484, %v2484
        %v2493 = vmul.f32 %v2485, %v2485
        %v2494 = vmul.f32 %v2486, %v2486
        %v2495 = vmul.f32 %v2487, %v2487
        %v2496 = vmul.f32 %v2488, %v2488
        %v2497 = vsel %vm324, %v2489, 0.0
        %2498 = vadd.xlane.f32.xlu0 %v2497
        %v2499 = vpop.xlane.xlu0 %2498
        %v2500 = vsel %vm324, %v2490, 0.0
        %2501 = vadd.xlane.f32.xlu0 %v2500
        %v2502 = vpop.xlane.xlu0 %2501
        %v2503 = vsel %vm324, %v2491, 0.0
        %2504 = vadd.xlane.f32.xlu0 %v2503
        %v2505 = vpop.xlane.xlu0 %2504
        %v2506 = vsel %vm324, %v2492, 0.0
        %2507 = vadd.xlane.f32.xlu0 %v2506
        %v2508 = vpop.xlane.xlu0 %2507
        %v2509 = vsel %vm324, %v2493, 0.0
        %2510 = vadd.xlane.f32.xlu0 %v2509
        %v2511 = vpop.xlane.xlu0 %2510
        %v2512 = vsel %vm324, %v2494, 0.0
        %2513 = vadd.xlane.f32.xlu0 %v2512
        %v2514 = vpop.xlane.xlu0 %2513
        %v2515 = vsel %vm324, %v2495, 0.0
        %2516 = vadd.xlane.f32.xlu0 %v2515
        %v2517 = vpop.xlane.xlu0 %2516
        %v2518 = vsel %vm324, %v2496, 0.0
        %2519 = vadd.xlane.f32.xlu0 %v2518
        %v2520 = vpop.xlane.xlu0 %2519
        %v2521 = vrsqrt.pop %v2499
        %v2522 = vmul.f32 %v2499, %v2521
        %vm2523 = vcmp.eq.f32.partialorder %v2499, inf
        %v2524 = vsel %vm2523, %v2499, %v2522
        %vm2525 = vcmp.eq.f32.partialorder %v2499, 0.0
        %v2526 = vand.u32 %v2499, 2147483648
        %v2527 = vsel %vm2525, %v2526, %v2524
        %v2528 = vrsqrt.pop %v2502
        %v2529 = vmul.f32 %v2502, %v2528
        %vm2530 = vcmp.eq.f32.partialorder %v2502, inf
        %v2531 = vsel %vm2530, %v2502, %v2529
        %vm2532 = vcmp.eq.f32.partialorder %v2502, 0.0
        %v2533 = vand.u32 %v2502, 2147483648
        %v2534 = vsel %vm2532, %v2533, %v2531
        %v2535 = vrsqrt.pop %v2505
        %v2536 = vmul.f32 %v2505, %v2535
        %vm2537 = vcmp.eq.f32.partialorder %v2505, inf
        %v2538 = vsel %vm2537, %v2505, %v2536
        %vm2539 = vcmp.eq.f32.partialorder %v2505, 0.0
        %v2540 = vand.u32 %v2505, 2147483648
        %v2541 = vsel %vm2539, %v2540, %v2538
        %v2542 = vrsqrt.pop %v2508
        %v2543 = vmul.f32 %v2508, %v2542
        %vm2544 = vcmp.eq.f32.partialorder %v2508, inf
        %v2545 = vsel %vm2544, %v2508, %v2543
        %vm2546 = vcmp.eq.f32.partialorder %v2508, 0.0
        %v2547 = vand.u32 %v2508, 2147483648
        %v2548 = vsel %vm2546, %v2547, %v2545
        %v2549 = vrsqrt.pop %v2511
        %v2550 = vmul.f32 %v2511, %v2549
        %vm2551 = vcmp.eq.f32.partialorder %v2511, inf
        %v2552 = vsel %vm2551, %v2511, %v2550
        %vm2553 = vcmp.eq.f32.partialorder %v2511, 0.0
        %v2554 = vand.u32 %v2511, 2147483648
        %v2555 = vsel %vm2553, %v2554, %v2552
        %v2556 = vrsqrt.pop %v2514
        %v2557 = vmul.f32 %v2514, %v2556
        %vm2558 = vcmp.eq.f32.partialorder %v2514, inf
        %v2559 = vsel %vm2558, %v2514, %v2557
        %vm2560 = vcmp.eq.f32.partialorder %v2514, 0.0
        %v2561 = vand.u32 %v2514, 2147483648
        %v2562 = vsel %vm2560, %v2561, %v2559
        %v2563 = vrsqrt.pop %v2517
        %v2564 = vmul.f32 %v2517, %v2563
        %vm2565 = vcmp.eq.f32.partialorder %v2517, inf
        %v2566 = vsel %vm2565, %v2517, %v2564
        %vm2567 = vcmp.eq.f32.partialorder %v2517, 0.0
        %v2568 = vand.u32 %v2517, 2147483648
        %v2569 = vsel %vm2567, %v2568, %v2566
        %v2570 = vrsqrt.pop %v2520
        %v2571 = vmul.f32 %v2520, %v2570
        %vm2572 = vcmp.eq.f32.partialorder %v2520, inf
        %v2573 = vsel %vm2572, %v2520, %v2571
        %vm2574 = vcmp.eq.f32.partialorder %v2520, 0.0
        %v2575 = vand.u32 %v2520, 2147483648
        %v2576 = vsel %vm2574, %v2575, %v2573
        %v2577 = vmul.f32 %v2527, %v409
        %v2578 = vmul.f32 %v2534, %v409
        %v2579 = vmul.f32 %v2541, %v409
        %v2580 = vmul.f32 %v2548, %v409
        %v2581 = vmul.f32 %v2555, %v409
        %v2582 = vmul.f32 %v2562, %v409
        %v2583 = vmul.f32 %v2569, %v409
        %v2584 = vmul.f32 %v2576, %v409
        %v2585 = vadd.f32 %v2577, %v423
        %v2586 = vadd.f32 %v2578, %v423
        %v2587 = vadd.f32 %v2579, %v423
        %v2588 = vadd.f32 %v2580, %v423
        %v2589 = vadd.f32 %v2581, %v423
        %v2590 = vadd.f32 %v2582, %v423
        %v2591 = vadd.f32 %v2583, %v423
        %v2592 = vadd.f32 %v2584, %v423
        %v2593 = vmax.f32 %v2585, 0.0
        %v2594 = vmax.f32 %v2586, 0.0
        %v2595 = vmax.f32 %v2587, 0.0
        %v2596 = vmax.f32 %v2588, 0.0
        %v2597 = vmax.f32 %v2589, 0.0
        %v2598 = vmax.f32 %v2590, 0.0
        %v2599 = vmax.f32 %v2591, 0.0
        %v2600 = vmax.f32 %v2592, 0.0
        %v2601 = vadd.f32 %v2457, %v2593
        %v2602 = vadd.f32 %v2458, %v2594
        %v2603 = vadd.f32 %v2459, %v2595
        %v2604 = vadd.f32 %v2460, %v2596
        %v2605 = vadd.f32 %v2461, %v2597
        %v2606 = vadd.f32 %v2462, %v2598
        %v2607 = vadd.f32 %v2463, %v2599
        %v2608 = vadd.f32 %v2464, %v2600
        %v2609 = vld [vmem:[%s3] sm:$0xff]
        %v2610 = vld [vmem:[%s3 + $0x8] sm:$0xff]
        %v2611 = vld [vmem:[%s3 + $0x10] sm:$0xff]
        %v2612 = vld [vmem:[%s3 + $0x18] sm:$0xff]
        %v2613 = vld [vmem:[%s4] sm:$0x1]
        %v2615 = vlaneseq
        %v2616 = vshrl.u32 %v2615, 7
        %v2617 = vsub.s32 0, %v2616
        %v2618 = vrot.slane %v2613, %v2617
        %vm2620 = vcmask 261120
        %v2622 = vsel %vm2620, %v2601, 0
        %v2625 = vsel %vm2620, %v2602, 0
        %v2628 = vsel %vm2620, %v2603, 0
        %v2631 = vsel %vm2620, %v2604, 0
        %v2634 = vsel %vm2620, %v2605, 0
        %v2637 = vsel %vm2620, %v2606, 0
        %v2640 = vsel %vm2620, %v2607, 0
        %v2643 = vsel %vm2620, %v2608, 0
        %2645 = vmatprep.subr.mxu0 0.0
        %2646 = vmatpush1.msra.mxu0 %v2609
        %2647 = vmatprep.subr.mxu0 0.0
        %2648 = vmatpush1.msra.mxu0 %v2610
        %2649 = vmatprep.subr.mxu0 0.0
        %2650 = vmatpush1.msra.mxu0 %v2611
        %2651 = vmatprep.subr.mxu0 0.0
        %2652 = vmatpush1.msra.mxu0 %v2612
        %2653 = vmatprep.subr.mxu0 0.0
        %2654 = vmatpush1.msra.mxu0 0.0
        %2655 = vmatprep.subr.mxu0 0.0
        %2656 = vmatpush1.msra.mxu0 0.0
        %2657 = vmatprep.subr.mxu0 0.0
        %2658 = vmatpush1.msra.mxu0 0.0
        %2659 = vmatprep.subr.mxu0 0.0
        %2660 = vmatpush1.msra.mxu0 0.0
        %2661 = vmatprep.subr.mxu0 0.0
        %2662 = vmatpush1.msra.mxu0 0.0
        %2663 = vmatprep.subr.mxu0 0.0
        %2664 = vmatpush1.msra.mxu0 0.0
        %2665 = vmatprep.subr.mxu0 0.0
        %2666 = vmatpush1.msra.mxu0 0.0
        %2667 = vmatprep.subr.mxu0 0.0
        %2668 = vmatpush1.msra.mxu0 0.0
        %2669 = vmatprep.subr.mxu0 0.0
        %2670 = vmatpush1.msra.mxu0 0.0
        %2671 = vmatprep.subr.mxu0 0.0
        %2672 = vmatpush1.msra.mxu0 0.0
        %2673 = vmatprep.subr.mxu0 0.0
        %2674 = vmatpush1.msra.mxu0 0.0
        %2675 = vmatprep.subr.mxu0 0.0
        %2676 = vmatpush1.msra.mxu0 0.0
        %2677 = vmatprep.subr.mxu0 0.0
        %2678 = vmatpush1.msra.mxu0 0.0
        %2679 = vmatprep.subr.mxu0 0.0
        %2680 = vmatpush1.msra.mxu0 0.0
        %2681 = vmatprep.subr.mxu0 0.0
        %2682 = vmatpush1.msra.mxu0 0.0
        %2683 = vmatprep.subr.mxu0 0.0
        %2684 = vmatpush1.msra.mxu0 0.0
        %2685 = vmatprep.subr.mxu0 0.0
        %2686 = vmatpush1.msra.mxu0 0.0
        %2687 = vmatprep.subr.mxu0 0.0
        %2688 = vmatpush1.msra.mxu0 0.0
        %2689 = vmatprep.subr.mxu0 0.0
        %2690 = vmatpush1.msra.mxu0 0.0
        %2691 = vmatprep.subr.mxu0 0.0
        %2692 = vmatpush1.msra.mxu0 0.0
        %2693 = vmatprep.subr.mxu0 0.0
        %2694 = vmatpush1.msra.mxu0 0.0
        %2695 = vmatprep.subr.mxu0 0.0
        %2696 = vmatpush1.msra.mxu0 0.0
        %2697 = vmatprep.subr.mxu0 0.0
        %2698 = vmatpush1.msra.mxu0 0.0
        %2699 = vmatprep.subr.mxu0 0.0
        %2700 = vmatpush1.msra.mxu0 0.0
        %2701 = vmatprep.subr.mxu0 0.0
        %2702 = vmatpush1.msra.mxu0 0.0
        %2703 = vmatprep.subr.mxu0 0.0
        %2704 = vmatpush1.msra.mxu0 0.0
        %2705 = vmatprep.subr.mxu0 0.0
        %2706 = vmatpush1.msra.mxu0 0.0
        %2707 = vmatprep.subr.mxu0 0.0
        %2708 = vmatpush1.msra.mxu0 0.0
        %2709 = vmatprep.mubr.f32.mxu0 0.0
        %2710 = vmatmul.mubr.f32.gmra.mrb[0].mxu0 %v2622
        %v2711 = vpop.f32.mrb[0].mxu0
        %v2712 = vadd.f32 %v2618, %v2711
        %v2713 = vpop.f32.mrb[0].mxu0
        %2714 = vmatprep.mubr.f32.mxu0 0.0
        %2715 = vmatmul.mubr.f32.gmra.mrb[0].mxu0 %v2625
        %v2716 = vpop.f32.mrb[0].mxu0
        %v2717 = vadd.f32 %v2618, %v2716
        %v2718 = vpop.f32.mrb[0].mxu0
        %2719 = vmatprep.mubr.f32.mxu0 0.0
        %2720 = vmatmul.mubr.f32.gmra.mrb[0].mxu0 %v2628
        %v2721 = vpop.f32.mrb[0].mxu0
        %v2722 = vadd.f32 %v2618, %v2721
        %v2723 = vpop.f32.mrb[0].mxu0
        %2724 = vmatprep.mubr.f32.mxu0 0.0
        %2725 = vmatmul.mubr.f32.gmra.mrb[0].mxu0 %v2631
        %v2726 = vpop.f32.mrb[0].mxu0
        %v2727 = vadd.f32 %v2618, %v2726
        %v2728 = vpop.f32.mrb[0].mxu0
        %2729 = vmatprep.mubr.f32.mxu0 0.0
        %2730 = vmatmul.mubr.f32.gmra.mrb[0].mxu0 %v2634
        %v2731 = vpop.f32.mrb[0].mxu0
        %v2732 = vadd.f32 %v2618, %v2731
        %v2733 = vpop.f32.mrb[0].mxu0
        %2734 = vmatprep.mubr.f32.mxu0 0.0
        %2735 = vmatmul.mubr.f32.gmra.mrb[0].mxu0 %v2637
        %v2736 = vpop.f32.mrb[0].mxu0
        %v2737 = vadd.f32 %v2618, %v2736
        %v2738 = vpop.f32.mrb[0].mxu0
        %2739 = vmatprep.mubr.f32.mxu0 0.0
        %2740 = vmatmul.mubr.f32.gmra.mrb[0].mxu0 %v2640
        %v2741 = vpop.f32.mrb[0].mxu0
        %v2742 = vadd.f32 %v2618, %v2741
        %v2743 = vpop.f32.mrb[0].mxu0
        %2744 = vmatprep.mubr.f32.mxu0 0.0
        %2745 = vmatmul.mubr.f32.gmra.mrb[0].mxu0 %v2643
        %v2746 = vpop.f32.mrb[0].mxu0
        %v2747 = vadd.f32 %v2618, %v2746
        %v2748 = vpop.f32.mrb[0].mxu0
        %2749 = vdwg.mxu0
        %v2750 = vmax.f32 %v2712, 0.0
        %v2751 = vmax.f32 %v2717, 0.0
        %v2752 = vmax.f32 %v2722, 0.0
        %v2753 = vmax.f32 %v2727, 0.0
        %v2754 = vmax.f32 %v2732, 0.0
        %v2755 = vmax.f32 %v2737, 0.0
        %v2756 = vmax.f32 %v2742, 0.0
        %v2757 = vmax.f32 %v2747, 0.0
        %v2758 = vsel %vm2620, %v2750, 0.0
        %v2759 = vsel %vm2620, %v2751, 0.0
        %v2760 = vadd.f32 %v2758, %v2759
        %v2761 = vrot.slane %v2760, 4
        %v2762 = vadd.f32 %v2760, %v2761
        %v2763 = vrot.slane %v2762, 2
        %v2764 = vadd.f32 %v2762, %v2763
        %v2765 = vrot.slane %v2764, 1
        %v2766 = vadd.f32 %v2764, %v2765
        %v2767 = vsel %vm2620, %v2752, 0.0
        %v2768 = vsel %vm2620, %v2753, 0.0
        %v2769 = vadd.f32 %v2767, %v2768
        %v2770 = vrot.slane %v2769, 4
        %v2771 = vadd.f32 %v2769, %v2770
        %v2772 = vrot.slane %v2771, 2
        %v2773 = vadd.f32 %v2771, %v2772
        %v2774 = vrot.slane %v2773, 1
        %v2775 = vadd.f32 %v2773, %v2774
        %v2776 = vsel %vm2620, %v2754, 0.0
        %v2777 = vsel %vm2620, %v2755, 0.0
        %v2778 = vadd.f32 %v2776, %v2777
        %v2779 = vrot.slane %v2778, 4
        %v2780 = vadd.f32 %v2778, %v2779
        %v2781 = vrot.slane %v2780, 2
        %v2782 = vadd.f32 %v2780, %v2781
        %v2783 = vrot.slane %v2782, 1
        %v2784 = vadd.f32 %v2782, %v2783
        %v2785 = vsel %vm2620, %v2756, 0.0
        %v2786 = vsel %vm2620, %v2757, 0.0
        %v2787 = vadd.f32 %v2785, %v2786
        %v2788 = vrot.slane %v2787, 4
        %v2789 = vadd.f32 %v2787, %v2788
        %v2790 = vrot.slane %v2789, 2
        %v2791 = vadd.f32 %v2789, %v2790
        %v2792 = vrot.slane %v2791, 1
        %v2793 = vadd.f32 %v2791, %v2792
        %v2794 = vld [vmem:[%s5] sm:$0xff]
        %v2795 = vld [vmem:[%s5 + $0x8] sm:$0xff]
        %v2796 = vld [vmem:[%s5 + $0x10] sm:$0xff]
        %v2797 = vld [vmem:[%s5 + $0x18] sm:$0xff]
        %v2798 = vld [vmem:[%s6] sm:$0x1]
        %v2800 = vlaneseq
        %v2801 = vshrl.u32 %v2800, 7
        %v2802 = vsub.s32 0, %v2801
        %v2803 = vrot.slane %v2798, %v2802
        %vm2809 = vcmask 1041409
        %v2810 = vsel %vm2809, %v2775, %v2766
        %vm2811 = vcmask 1042434
        %v2812 = vsel %vm2811, %v2784, %v2810
        %vm2813 = vcmask 1043459
        %v2814 = vsel %vm2813, %v2793, %v2812
        %v2815 = vsel %vm2620, %v2814, 0
        %2817 = vmatprep.subr.mxu0 0.0
        %2818 = vmatpush1.msra.mxu0 %v2794
        %2819 = vmatprep.subr.mxu0 0.0
        %2820 = vmatpush1.msra.mxu0 %v2795
        %2821 = vmatprep.subr.mxu0 0.0
        %2822 = vmatpush1.msra.mxu0 %v2796
        %2823 = vmatprep.subr.mxu0 0.0
        %2824 = vmatpush1.msra.mxu0 %v2797
        %2825 = vmatprep.subr.mxu0 0.0
        %2826 = vmatpush1.msra.mxu0 0.0
        %2827 = vmatprep.subr.mxu0 0.0
        %2828 = vmatpush1.msra.mxu0 0.0
        %2829 = vmatprep.subr.mxu0 0.0
        %2830 = vmatpush1.msra.mxu0 0.0
        %2831 = vmatprep.subr.mxu0 0.0
        %2832 = vmatpush1.msra.mxu0 0.0
        %2833 = vmatprep.subr.mxu0 0.0
        %2834 = vmatpush1.msra.mxu0 0.0
        %2835 = vmatprep.subr.mxu0 0.0
        %2836 = vmatpush1.msra.mxu0 0.0
        %2837 = vmatprep.subr.mxu0 0.0
        %2838 = vmatpush1.msra.mxu0 0.0
        %2839 = vmatprep.subr.mxu0 0.0
        %2840 = vmatpush1.msra.mxu0 0.0
        %2841 = vmatprep.subr.mxu0 0.0
        %2842 = vmatpush1.msra.mxu0 0.0
        %2843 = vmatprep.subr.mxu0 0.0
        %2844 = vmatpush1.msra.mxu0 0.0
        %2845 = vmatprep.subr.mxu0 0.0
        %2846 = vmatpush1.msra.mxu0 0.0
        %2847 = vmatprep.subr.mxu0 0.0
        %2848 = vmatpush1.msra.mxu0 0.0
        %2849 = vmatprep.subr.mxu0 0.0
        %2850 = vmatpush1.msra.mxu0 0.0
        %2851 = vmatprep.subr.mxu0 0.0
        %2852 = vmatpush1.msra.mxu0 0.0
        %2853 = vmatprep.subr.mxu0 0.0
        %2854 = vmatpush1.msra.mxu0 0.0
        %2855 = vmatprep.subr.mxu0 0.0
        %2856 = vmatpush1.msra.mxu0 0.0
        %2857 = vmatprep.subr.mxu0 0.0
        %2858 = vmatpush1.msra.mxu0 0.0
        %2859 = vmatprep.subr.mxu0 0.0
        %2860 = vmatpush1.msra.mxu0 0.0
        %2861 = vmatprep.subr.mxu0 0.0
        %2862 = vmatpush1.msra.mxu0 0.0
        %2863 = vmatprep.subr.mxu0 0.0
        %2864 = vmatpush1.msra.mxu0 0.0
        %2865 = vmatprep.subr.mxu0 0.0
        %2866 = vmatpush1.msra.mxu0 0.0
        %2867 = vmatprep.subr.mxu0 0.0
        %2868 = vmatpush1.msra.mxu0 0.0
        %2869 = vmatprep.subr.mxu0 0.0
        %2870 = vmatpush1.msra.mxu0 0.0
        %2871 = vmatprep.subr.mxu0 0.0
        %2872 = vmatpush1.msra.mxu0 0.0
        %2873 = vmatprep.subr.mxu0 0.0
        %2874 = vmatpush1.msra.mxu0 0.0
        %2875 = vmatprep.subr.mxu0 0.0
        %2876 = vmatpush1.msra.mxu0 0.0
        %2877 = vmatprep.subr.mxu0 0.0
        %2878 = vmatpush1.msra.mxu0 0.0
        %2879 = vmatprep.subr.mxu0 0.0
        %2880 = vmatpush1.msra.mxu0 0.0
        %2881 = vmatprep.mubr.f32.mxu0 0.0
        %2882 = vmatmul.mubr.f32.gmra.mrb[0].mxu0 %v2815
        %v2883 = vpop.f32.mrb[0].mxu0
        %v2884 = vadd.f32 %v2803, %v2883
        %v2885 = vpop.f32.mrb[0].mxu0
        %2886 = vdwg.mxu0
        %2887 = vst [vmem:[%s274] sm:$0xf] %v2884
        %s2888 = sand.u32 %s181, 1
        %s2889 = scalar_lea.sflag [#allocation3], %s2888
        %s2890 = sand.u32 %s181, 1
        %s2891 = smul.addr %s2890, 4
        %s2892 = scalar_lea.vmem [#allocation2], %s2891
        // Predicated region
        $region49: #{pc_feature_net.1} parent=47 // pred_check
          %p2893 = pneg %p191
        $region50: #{pc_feature_net.1} parent=47 // pred_check_branch
          %2895 = sbr.rel (%p2893) target = $region52
        $region51: #{pc_feature_net.1} parent=47 // pred_region
          %s2897 = ssub.s32 64, 64
          %2898 = vsyncadd %s2889, %s2897
          %s2899 = smul.addr %s21, 64
          %s2900 = scalar_lea.hbm %s7, %s2899
          %s2902 = sshll.u32 %s2892, 4
          %s2903 = int_to_ptr.vmem [resolvable:$true] %s2902
          %2905 = dma.vmem_to_hbm [thread:$0]  %s2903, 64, %s2900, %s2889
        $region52: #{pc_feature_net.1} parent=47 // pred_fallthru
          _
      $region48: #{pc_feature_net.1} parent=5 // pred_fallthru
        _
      %p2906 = scmp.le.s32.totalorder 2, %s16
      // Predicated region
      $region53: #{pc_feature_net.1} parent=5 // pred_check
        %p2907 = pneg %p2906
      $region54: #{pc_feature_net.1} parent=5 // pred_check_branch
        %2909 = sbr.rel (%p2907) target = $region56
      $region55: #{pc_feature_net.1} parent=5 // pred_region
        %s2910 = ssub.s32 %s16, 2
        // Predicated region
        $region57: #{pc_feature_net.1} parent=55 // pred_check
          %p2911 = pneg %p197
        $region58: #{pc_feature_net.1} parent=55 // pred_check_branch
          %2913 = sbr.rel (%p2911) target = $region60
        $region59: #{pc_feature_net.1} parent=55 // pred_region
          %s2914 = sand.u32 %s182, 1
          %s2915 = scalar_lea.sflag [#allocation3], %s2914
          %s2916 = sand.u32 %s182, 1
          %s2917 = smul.addr %s2916, 4
          %s2918 = scalar_lea.vmem [#allocation2], %s2917
          %2919 = dma.done %s2915, 64
        $region60: #{pc_feature_net.1} parent=55 // pred_fallthru
          _
      $region56: #{pc_feature_net.1} parent=5 // pred_fallthru
        _
    $region6: #{pc_feature_net.1} parent=1 // loop_footer
      %s20 = sadd.s32 1, %s16
    $region7: #{pc_feature_net.1} parent=1 // loop_footer_branch
      %15 = sbr.rel target = $region3
    $region8: #{pc_feature_net.1} parent=1 // loop_exit
      _
    %2920 = vsyncpa [#allocation3], 1
    %s2921 = scalar_lea.sflag [#allocation3], 1
    %2922 = vsyncpa %s2921, 1

</llo_original>
